<compile_context>
chip_gen: v7x
topology: tpu7x:2x2x1
jax: 0.10.0
libtpu: 0.0.40
codegen_flags: <defaults>
</compile_context>

<pallas_src>
import numpy as np

import jax
import jax.numpy as jnp
from jax.experimental import pallas as pl
from jax.experimental.pallas import tpu as pltpu


# --------------------------------------------------------------------------- #
#                               Pallas kernel                                  #
# --------------------------------------------------------------------------- #

def _full_spec(shape):
    nd = len(shape)
    return pl.BlockSpec(shape, lambda i, nd=nd: (0,) * nd)


def _res_group_kernel(x_ref, as1_ref, s_ref,
                      bf_ref, bbf_ref, bh_ref, bbh_ref,
                      bs_ref, bbs_ref, bt_ref, bbt_ref,
                      b1_ref, bb1_ref, out_ref):
    f32 = jnp.float32

    def mm(a, b):
        return jnp.dot(a, b, preferred_element_type=f32)

    def shifted3(x):
        """[x(i-1) | x(i) | x(i+1)] along lanes, zero rows at the H borders."""
        z = jnp.zeros((1, x.shape[1]), f32)
        up = jnp.concatenate([z, x[:-1, :]], axis=0)   # row i -> x[i-1]
        dn = jnp.concatenate([x[1:, :], z], axis=0)    # row i -> x[i+1]
        return jnp.concatenate([up, x, dn], axis=1)

    def conv_full(x, idx, relu=False, residual=None):
        acc = mm(shifted3(x), bf_ref[idx]) + bbf_ref[idx]
        if relu:
            acc = jnp.maximum(acc, 0.0)
        if residual is not None:
            acc = acc + residual
        return acc

    def conv_half(x, idx, relu=False, residual=None):
        acc = mm(shifted3(x), bh_ref[idx]) + bbh_ref[idx]
        if relu:
            acc = jnp.maximum(acc, 0.0)
        if residual is not None:
            acc = acc + residual
        return acc

    def rb_full(x, i0):
        return conv_full(conv_full(x, i0, relu=True), i0 + 1, residual=x)

    def rb_half(x, i0):
        return conv_half(conv_half(x, i0, relu=True), i0 + 1, residual=x)

    x = x_ref[...]

    # ---- ResAttModuleDownUpPlus -------------------------------------------
    rb1 = rb_full(x, 0)                                  # RA_RB1
    tx = rb_full(rb_full(rb1, 2), 4)                     # trunk (TB0, TB1)
    m1 = rb_full(rb1, 6)                                 # MB_RB1

    # MB_Down: 3x3 conv, stride 2, pad 1: select even rows of the shifted
    # stack, then one column-mixing matmul directly at half resolution.
    md = mm(mm(as1_ref[...], shifted3(m1)), bs_ref[...]) + bbs_ref[...]

    m2 = rb_half(rb_half(md, 0), 2)                      # MB_RB2_0, MB_RB2_1

    # MB_Up: ConvTranspose2d(6, s2, p2) as 2 sub-pixel row phases + interleave.
    x3h = shifted3(m2)
    ph0 = mm(x3h, bt_ref[0]) + bbt_ref[...]
    ph1 = mm(x3h, bt_ref[1]) + bbt_ref[...]
    pre3 = mm(s_ref[0], ph0) + mm(s_ref[1], ph1) + m1    # x_Up + x_RB1

    m3 = rb_full(pre3, 8)                                # MB_RB3

    # 1x1 conv + sigmoid + attention fuse (all in-kernel).
    pre_sig = mm(m3, b1_ref[...]) + bb1_ref[...]
    mx = 1.0 / (1.0 + jnp.exp(-pre_sig))
    hx = tx * mx + rb1

    hx = rb_full(rb_full(hx, 10), 12)                    # tail (TAIL0, TAIL1)
    out_ref[...] = conv_full(hx, 14).astype(out_ref.dtype)  # final conv


def _res_group_pallas(xf, pk, *, N, C, H, W):
    operands = (xf, pk['A_s1'], pk['S'],
                pk['B_f'], pk['b_f'], pk['B_h'], pk['b_h'],
                pk['B_s'], pk['b_s'], pk['B_t'], pk['b_t'],
                pk['B_1'], pk['b_1'])
    out_shape = jax.ShapeDtypeStruct((H, N * W * C), jnp.float32)
    return pl.pallas_call(
        _res_group_kernel,
        out_shape=out_shape,
        grid=(1,),
        in_specs=[_full_spec(a.shape) for a in operands],
        out_specs=_full_spec((H, N * W * C)),
        compiler_params=pltpu.CompilerParams(
            dimension_semantics=("arbitrary",)),
    )(*operands)


# --------------------------------------------------------------------------- #
#        Weight packing (pure numpy): convs -> stacked matmul operands         #
# --------------------------------------------------------------------------- #

def _row_select_matrix(n_out, n_in, ky, stride=1, pad=1):
    """A: (n_out, n_in); A[i, i*stride + ky - pad] = 1 (zero if OOB)."""
    A = np.zeros((n_out, n_in), np.float32)
    for i in range(n_out):
        src = i * stride + ky - pad
        if 0 <= src < n_in:
            A[i, src] = 1.0
    return A


def _col_matrix_conv(w_hwio, ky, N, Wi, Wo, stride, pad):
    """B_ky: (N*Wi*Cin, N*Wo*Cout) for a KxK conv kernel-row ky (HWIO weights)."""
    w = np.asarray(w_hwio, np.float32)
    K, _, Cin, Cout = w.shape
    B = np.zeros((Wi * Cin, Wo * Cout), np.float32)
    for j in range(Wo):
        for kx in range(K):
            jj = j * stride + kx - pad
            if 0 <= jj < Wi:
                B[jj * Cin:(jj + 1) * Cin, j * Cout:(j + 1) * Cout] += w[ky, kx]
    return np.kron(np.eye(N, dtype=np.float32), B)


def _col_matrix_convT(wt, ry, ky, N, Wh):
    """Bt_{ry,ky}: (N*Wh*Cin, N*2*Wh*Cout) for ConvTranspose2d(6, s2, p2).

    Sub-pixel decomposition: out[2i+ry, 2j+rx, co] =
        sum_{ky,kx,ci} x[i+ky-1, j+kx-1, ci] * wt[ci, co, 4-2ky+ry, 4-2kx+rx].
    wt in torch layout (Cin, Cout, 6, 6).
    """
    w = np.asarray(wt, np.float32)
    Cin, Cout = w.shape[0], w.shape[1]
    p = 4 - 2 * ky + ry
    B = np.zeros((Wh * Cin, 2 * Wh * Cout), np.float32)
    for j in range(Wh):
        for kx in range(3):
            jj = j + kx - 1
            if not (0 <= jj < Wh):
                continue
            for rx in range(2):
                q = 4 - 2 * kx + rx
                B[jj * Cin:(jj + 1) * Cin,
                  (2 * j + rx) * Cout:(2 * j + rx + 1) * Cout] += w[:, :, p, q]
    return np.kron(np.eye(N, dtype=np.float32), B)


def pack_params(params, *, N, H, W):
    assert H % 2 == 0 and W % 2 == 0
    Hh, Wh = H // 2, W // 2

    def conv_B_stack(w, Wi, Wo, stride, pad):
        K = np.asarray(w).shape[0]
        return np.concatenate(
            [_col_matrix_conv(w, ky, N, Wi, Wo, stride, pad) for ky in range(K)],
            axis=0)

    def conv_bias(b, Wo):
        return np.tile(np.asarray(b, np.float32).reshape(1, -1), (1, N * Wo))

    # full-resolution 3x3 convs (kernel indices 0..14)
    full_order = ['RA_RB1', 'TB0', 'TB1', 'MB_RB1', 'MB_RB3', 'TAIL0', 'TAIL1']
    Bf, bf = [], []
    for name in full_order:
        w1, b1, w2, b2 = params[name]
        Bf += [conv_B_stack(w1, W, W, 1, 1), conv_B_stack(w2, W, W, 1, 1)]
        bf += [conv_bias(b1, W), conv_bias(b2, W)]
    wfin, bfin = params['FINAL']
    Bf.append(conv_B_stack(wfin, W, W, 1, 1))
    bf.append(conv_bias(bfin, W))
    B_f, b_f = jnp.asarray(np.stack(Bf)), jnp.asarray(np.stack(bf))

    # half-resolution 3x3 convs (kernel indices 0..3)
    Bh, bh = [], []
    for name in ['MB_RB2_0', 'MB_RB2_1']:
        w1, b1, w2, b2 = params[name]
        Bh += [conv_B_stack(w1, Wh, Wh, 1, 1), conv_B_stack(w2, Wh, Wh, 1, 1)]
        bh += [conv_bias(b1, Wh), conv_bias(b2, Wh)]
    B_h, b_h = jnp.asarray(np.stack(Bh)), jnp.asarray(np.stack(bh))

    # strided 3x3 conv (MB_Down), ConvTranspose (MB_Up), 1x1 conv
    wd, bd = params['MB_Down']
    B_s = jnp.asarray(conv_B_stack(wd, W, Wh, 2, 1))
    b_s = jnp.asarray(conv_bias(bd, Wh))

    wt, bt = params['MB_Up']
    B_t = jnp.asarray(np.stack([
        np.concatenate([_col_matrix_convT(wt, ry, ky, N, Wh) for ky in range(3)],
                       axis=0)
        for ry in range(2)]))
    b_t = jnp.asarray(conv_bias(bt, W))

    w1x1, b1x1 = params['MB_1x1']
    B_1 = jnp.asarray(_col_matrix_conv(w1x1, 0, N, W, W, 1, 0))
    b_1 = jnp.asarray(conv_bias(b1x1, W))

    # row selection (stride-2 down) and row interleave (convT up) matrices
    A_s1 = jnp.asarray(_row_select_matrix(Hh, H, 1, stride=2, pad=1))  # (Hh, H)
    S = np.zeros((2, H, Hh), np.float32)
    for ry in range(2):
        for i in range(Hh):
            S[ry, 2 * i + ry, i] = 1.0
    S = jnp.asarray(S)

    return dict(A_s1=A_s1, S=S,
                B_f=B_f, b_f=b_f, B_h=B_h, b_h=b_h,
                B_s=B_s, b_s=b_s, B_t=B_t, b_t=b_t, B_1=B_1, b_1=b_1)


# --------------------------------------------------------------------------- #
#                              forward wrapper                                 #
# --------------------------------------------------------------------------- #

def res_group_apply(x_nchw, packed):
    """x_nchw: (N, C, H, W) -> (N, C, H, W), PyTorch-equivalent forward."""
    N, C, H, W = x_nchw.shape
    # lane-dense layout: rows = H, cols = (N, W, C)
    xf = jnp.transpose(x_nchw, (2, 0, 3, 1)).reshape(H, N * W * C)
    out2d = _res_group_pallas(xf, packed, N=N, C=C, H=H, W=W)
    y = out2d.reshape(H, N, W, C)
    return jnp.transpose(y, (1, 3, 0, 2))


# --------------------------------------------------------------------------- #
#                              parameter init                                  #
# --------------------------------------------------------------------------- #

def _init_conv(key, K, cin, cout, scale=0.1):
    kw, kb = jax.random.split(key)
    w = scale * jax.random.normal(kw, (K, K, cin, cout), jnp.float32)
    b = scale * jax.random.normal(kb, (1, cout), jnp.float32)
    return w, b


def _init_resblock(key, K, c):
    k1, k2 = jax.random.split(key)
    return _init_conv(k1, K, c, c) + _init_conv(k2, K, c, c)


def init_params(key, n_feats=4, kernel_size=3):
    rb_names = ['RA_RB1', 'TB0', 'TB1', 'MB_RB1', 'MB_RB2_0', 'MB_RB2_1',
                'MB_RB3', 'TAIL0', 'TAIL1']
    keys = jax.random.split(key, len(rb_names) + 4)
    params = {}
    for name, k in zip(rb_names, keys[:len(rb_names)]):
        params[name] = _init_resblock(k, kernel_size, n_feats)
    k_down, k_up, k_1x1, k_fin = keys[len(rb_names):]
    params['MB_Down'] = _init_conv(k_down, 3, n_feats, n_feats)
    kw, kb = jax.random.split(k_up)
    params['MB_Up'] = (0.1 * jax.random.normal(kw, (n_feats, n_feats, 6, 6),
                                               jnp.float32),
                       0.1 * jax.random.normal(kb, (1, n_feats), jnp.float32))
    params['MB_1x1'] = _init_conv(k_1x1, 1, n_feats, n_feats)
    params['FINAL'] = _init_conv(k_fin, kernel_size, n_feats, n_feats)
    return params


# --------------------------------------------------------------------------- #
#                  pure-JAX reference (for in-script validation)               #
# --------------------------------------------------------------------------- #

def _ref_conv(x, w, b, stride=1, pad=1):
    y = jax.lax.conv_general_dilated(
        x, w, (stride, stride), [(pad, pad), (pad, pad)],
        dimension_numbers=("NHWC", "HWIO", "NHWC"),
        precision=jax.lax.Precision.HIGHEST)
    return y + b.reshape(1, 1, 1, -1)


def _ref_convT(x, wt, b):
    w = jnp.transpose(wt, (2, 3, 0, 1))[::-1, ::-1, :, :]
    y = jax.lax.conv_general_dilated(
        x, w, (1, 1), [(3, 3), (3, 3)], lhs_dilation=(2, 2),
        dimension_numbers=("NHWC", "HWIO", "NHWC"),
        precision=jax.lax.Precision.HIGHEST)
    return y + b.reshape(1, 1, 1, -1)


def _ref_rb(x, p):
    w1, b1, w2, b2 = p
    return _ref_conv(jnp.maximum(_ref_conv(x, w1, b1), 0.0), w2, b2) + x


def res_group_reference(x_nchw, params):
    x = jnp.transpose(x_nchw, (0, 2, 3, 1))
    rb1 = _ref_rb(x, params['RA_RB1'])
    tx = _ref_rb(_ref_rb(rb1, params['TB0']), params['TB1'])
    m1 = _ref_rb(rb1, params['MB_RB1'])
    wd, bd = params['MB_Down']
    md = _ref_conv(m1, wd, bd, stride=2, pad=1)
    m2 = _ref_rb(_ref_rb(md, params['MB_RB2_0']), params['MB_RB2_1'])
    wu, bu = params['MB_Up']
    pre3 = _ref_convT(m2, wu, bu) + m1
    m3 = _ref_rb(pre3, params['MB_RB3'])
    w1x1, b1x1 = params['MB_1x1']
    mx = jax.nn.sigmoid(_ref_conv(m3, w1x1, b1x1, pad=0))
    hx = tx * mx + rb1
    hx = _ref_rb(_ref_rb(hx, params['TAIL0']), params['TAIL1'])
    wf, bf = params['FINAL']
    y = _ref_conv(hx, wf, bf, pad=1)
    return jnp.transpose(y, (0, 3, 1, 2))


# --------------------------------------------------------------------------- #
#                                    main                                      #
# --------------------------------------------------------------------------- #

if __name__ == "__main__":
    key = jax.random.PRNGKey(0)
    kx, kp = jax.random.split(key)
    n_feats, kernel_size = 4, 3
    N, H, W = 2, 16, 16

    x = jax.random.normal(kx, (N, n_feats, H, W), jnp.float32)   # NCHW input
    params = init_params(kp, n_feats=n_feats, kernel_size=kernel_size)
    packed = pack_params(params, N=N, H=H, W=W)                  # pack once

    fwd = jax.jit(lambda inp: res_group_apply(inp, packed))
    out = fwd(x)
    jax.block_until_ready(out)
    assert out.shape == (N, n_feats, H, W) and out.dtype == jnp.float32

    # validate against a pure-JAX/XLA reference of the same module
    ref = jax.jit(lambda inp: res_group_reference(inp, params))(x)
    jax.block_until_ready(ref)
    np.testing.assert_allclose(np.asarray(out), np.asarray(ref),
                               rtol=2e-2, atol=2e-2)
    print("KERNEL_OK")
</pallas_src>

<mosaic_0001>
module attributes {stable_mosaic.version = 11 : i64} {
  func.func @_res_group_kernel(%arg0: i32, %arg1: memref<16x128xf32, #tpu.memory_space<vmem>>, %arg2: memref<8x16xf32, #tpu.memory_space<vmem>>, %arg3: memref<2x16x8xf32, #tpu.memory_space<vmem>>, %arg4: memref<15x384x128xf32, #tpu.memory_space<vmem>>, %arg5: memref<15x1x128xf32, #tpu.memory_space<vmem>>, %arg6: memref<4x192x64xf32, #tpu.memory_space<vmem>>, %arg7: memref<4x1x64xf32, #tpu.memory_space<vmem>>, %arg8: memref<384x64xf32, #tpu.memory_space<vmem>>, %arg9: memref<1x64xf32, #tpu.memory_space<vmem>>, %arg10: memref<2x192x128xf32, #tpu.memory_space<vmem>>, %arg11: memref<1x128xf32, #tpu.memory_space<vmem>>, %arg12: memref<128x128xf32, #tpu.memory_space<vmem>>, %arg13: memref<1x128xf32, #tpu.memory_space<vmem>>, %arg14: memref<16x128xf32, #tpu.memory_space<vmem>>) attributes {dimension_semantics = [#tpu.dimension_semantics<arbitrary>], iteration_bounds = array<i64: 1>, scalar_prefetch = 0 : i64, scratch_operands = 0 : i64, tpu.core_type = #tpu.core_type<tc>, window_params = [{pipeline_mode = #tpu.pipeline_mode<synchronous>, transform_indices = @transform_0, window_bounds = array<i64: 16, 128>}, {pipeline_mode = #tpu.pipeline_mode<synchronous>, transform_indices = @transform_1, window_bounds = array<i64: 8, 16>}, {pipeline_mode = #tpu.pipeline_mode<synchronous>, transform_indices = @transform_2, window_bounds = array<i64: 2, 16, 8>}, {pipeline_mode = #tpu.pipeline_mode<synchronous>, transform_indices = @transform_3, window_bounds = array<i64: 15, 384, 128>}, {pipeline_mode = #tpu.pipeline_mode<synchronous>, transform_indices = @transform_4, window_bounds = array<i64: 15, 1, 128>}, {pipeline_mode = #tpu.pipeline_mode<synchronous>, transform_indices = @transform_5, window_bounds = array<i64: 4, 192, 64>}, {pipeline_mode = #tpu.pipeline_mode<synchronous>, transform_indices = @transform_6, window_bounds = array<i64: 4, 1, 64>}, {pipeline_mode = #tpu.pipeline_mode<synchronous>, transform_indices = @transform_7, window_bounds = array<i64: 384, 64>}, {pipeline_mode = #tpu.pipeline_mode<synchronous>, transform_indices = @transform_8, window_bounds = array<i64: 1, 64>}, {pipeline_mode = #tpu.pipeline_mode<synchronous>, transform_indices = @transform_9, window_bounds = array<i64: 2, 192, 128>}, {pipeline_mode = #tpu.pipeline_mode<synchronous>, transform_indices = @transform_10, window_bounds = array<i64: 1, 128>}, {pipeline_mode = #tpu.pipeline_mode<synchronous>, transform_indices = @transform_11, window_bounds = array<i64: 128, 128>}, {pipeline_mode = #tpu.pipeline_mode<synchronous>, transform_indices = @transform_12, window_bounds = array<i64: 1, 128>}, {pipeline_mode = #tpu.pipeline_mode<synchronous>, transform_indices = @transform_13, window_bounds = array<i64: 16, 128>}]} {
    %c0 = arith.constant 0 : index
    %c0_0 = arith.constant 0 : index
    %0 = vector.load %arg1[%c0, %c0_0] : memref<16x128xf32, #tpu.memory_space<vmem>>, vector<16x128xf32>
    %cst = arith.constant 0.000000e+00 : f32
    %1 = vector.broadcast %cst : f32 to vector<1x128xf32>
    %2 = vector.extract_strided_slice %0 {offsets = [0, 0], sizes = [15, 128], strides = [1, 1]} : vector<16x128xf32> to vector<15x128xf32>
    %3 = tpu.concatenate %1, %2 in 0 : vector<1x128xf32>, vector<15x128xf32> -> vector<16x128xf32>
    %4 = vector.extract_strided_slice %0 {offsets = [1, 0], sizes = [15, 128], strides = [1, 1]} : vector<16x128xf32> to vector<15x128xf32>
    %5 = tpu.concatenate %4, %1 in 0 : vector<15x128xf32>, vector<1x128xf32> -> vector<16x128xf32>
    %6 = tpu.concatenate %3, %0, %5 in 1 : vector<16x128xf32>, vector<16x128xf32>, vector<16x128xf32> -> vector<16x384xf32>
    %c0_1 = arith.constant 0 : index
    %c0_2 = arith.constant 0 : index
    %c0_3 = arith.constant 0 : index
    %7 = vector.load %arg4[%c0_1, %c0_2, %c0_3] : memref<15x384x128xf32, #tpu.memory_space<vmem>>, vector<1x384x128xf32>
    %8 = vector.shape_cast %7 : vector<1x384x128xf32> to vector<384x128xf32>
    %cst_4 = arith.constant dense<0.000000e+00> : vector<16x128xf32>
    %9 = tpu.matmul %6, %8, %cst_4 {dimension_numbers = #tpu.dot_dimension_numbers<[1], [0], [0], [1], [0, 0, 1, 1], [], []>} : vector<16x384xf32>, vector<384x128xf32>, vector<16x128xf32> -> vector<16x128xf32>
    %c0_5 = arith.constant 0 : index
    %c0_6 = arith.constant 0 : index
    %c0_7 = arith.constant 0 : index
    %10 = vector.load %arg5[%c0_5, %c0_6, %c0_7] : memref<15x1x128xf32, #tpu.memory_space<vmem>>, vector<1x1x128xf32>
    %11 = vector.shape_cast %10 : vector<1x1x128xf32> to vector<1x128xf32>
    %12 = vector.broadcast %11 : vector<1x128xf32> to vector<16x128xf32>
    %13 = arith.addf %9, %12 : vector<16x128xf32>
    %cst_8 = arith.constant 0.000000e+00 : f32
    %14 = vector.broadcast %cst_8 : f32 to vector<16x128xf32>
    %15 = arith.maximumf %13, %14 : vector<16x128xf32>
    %cst_9 = arith.constant 0.000000e+00 : f32
    %16 = vector.broadcast %cst_9 : f32 to vector<1x128xf32>
    %17 = vector.extract_strided_slice %15 {offsets = [0, 0], sizes = [15, 128], strides = [1, 1]} : vector<16x128xf32> to vector<15x128xf32>
    %18 = tpu.concatenate %16, %17 in 0 : vector<1x128xf32>, vector<15x128xf32> -> vector<16x128xf32>
    %19 = vector.extract_strided_slice %15 {offsets = [1, 0], sizes = [15, 128], strides = [1, 1]} : vector<16x128xf32> to vector<15x128xf32>
    %20 = tpu.concatenate %19, %16 in 0 : vector<15x128xf32>, vector<1x128xf32> -> vector<16x128xf32>
    %21 = tpu.concatenate %18, %15, %20 in 1 : vector<16x128xf32>, vector<16x128xf32>, vector<16x128xf32> -> vector<16x384xf32>
    %c1 = arith.constant 1 : index
    %c0_10 = arith.constant 0 : index
    %c0_11 = arith.constant 0 : index
    %22 = vector.load %arg4[%c1, %c0_10, %c0_11] : memref<15x384x128xf32, #tpu.memory_space<vmem>>, vector<1x384x128xf32>
    %23 = vector.shape_cast %22 : vector<1x384x128xf32> to vector<384x128xf32>
    %cst_12 = arith.constant dense<0.000000e+00> : vector<16x128xf32>
    %24 = tpu.matmul %21, %23, %cst_12 {dimension_numbers = #tpu.dot_dimension_numbers<[1], [0], [0], [1], [0, 0, 1, 1], [], []>} : vector<16x384xf32>, vector<384x128xf32>, vector<16x128xf32> -> vector<16x128xf32>
    %c1_13 = arith.constant 1 : index
    %c0_14 = arith.constant 0 : index
    %c0_15 = arith.constant 0 : index
    %25 = vector.load %arg5[%c1_13, %c0_14, %c0_15] : memref<15x1x128xf32, #tpu.memory_space<vmem>>, vector<1x1x128xf32>
    %26 = vector.shape_cast %25 : vector<1x1x128xf32> to vector<1x128xf32>
    %27 = vector.broadcast %26 : vector<1x128xf32> to vector<16x128xf32>
    %28 = arith.addf %24, %27 : vector<16x128xf32>
    %29 = arith.addf %28, %0 : vector<16x128xf32>
    %cst_16 = arith.constant 0.000000e+00 : f32
    %30 = vector.broadcast %cst_16 : f32 to vector<1x128xf32>
    %31 = vector.extract_strided_slice %29 {offsets = [0, 0], sizes = [15, 128], strides = [1, 1]} : vector<16x128xf32> to vector<15x128xf32>
    %32 = tpu.concatenate %30, %31 in 0 : vector<1x128xf32>, vector<15x128xf32> -> vector<16x128xf32>
    %33 = vector.extract_strided_slice %29 {offsets = [1, 0], sizes = [15, 128], strides = [1, 1]} : vector<16x128xf32> to vector<15x128xf32>
    %34 = tpu.concatenate %33, %30 in 0 : vector<15x128xf32>, vector<1x128xf32> -> vector<16x128xf32>
    %35 = tpu.concatenate %32, %29, %34 in 1 : vector<16x128xf32>, vector<16x128xf32>, vector<16x128xf32> -> vector<16x384xf32>
    %c2 = arith.constant 2 : index
    %c0_17 = arith.constant 0 : index
    %c0_18 = arith.constant 0 : index
    %36 = vector.load %arg4[%c2, %c0_17, %c0_18] : memref<15x384x128xf32, #tpu.memory_space<vmem>>, vector<1x384x128xf32>
    %37 = vector.shape_cast %36 : vector<1x384x128xf32> to vector<384x128xf32>
    %cst_19 = arith.constant dense<0.000000e+00> : vector<16x128xf32>
    %38 = tpu.matmul %35, %37, %cst_19 {dimension_numbers = #tpu.dot_dimension_numbers<[1], [0], [0], [1], [0, 0, 1, 1], [], []>} : vector<16x384xf32>, vector<384x128xf32>, vector<16x128xf32> -> vector<16x128xf32>
    %c2_20 = arith.constant 2 : index
    %c0_21 = arith.constant 0 : index
    %c0_22 = arith.constant 0 : index
    %39 = vector.load %arg5[%c2_20, %c0_21, %c0_22] : memref<15x1x128xf32, #tpu.memory_space<vmem>>, vector<1x1x128xf32>
    %40 = vector.shape_cast %39 : vector<1x1x128xf32> to vector<1x128xf32>
    %41 = vector.broadcast %40 : vector<1x128xf32> to vector<16x128xf32>
    %42 = arith.addf %38, %41 : vector<16x128xf32>
    %cst_23 = arith.constant 0.000000e+00 : f32
    %43 = vector.broadcast %cst_23 : f32 to vector<16x128xf32>
    %44 = arith.maximumf %42, %43 : vector<16x128xf32>
    %cst_24 = arith.constant 0.000000e+00 : f32
    %45 = vector.broadcast %cst_24 : f32 to vector<1x128xf32>
    %46 = vector.extract_strided_slice %44 {offsets = [0, 0], sizes = [15, 128], strides = [1, 1]} : vector<16x128xf32> to vector<15x128xf32>
    %47 = tpu.concatenate %45, %46 in 0 : vector<1x128xf32>, vector<15x128xf32> -> vector<16x128xf32>
    %48 = vector.extract_strided_slice %44 {offsets = [1, 0], sizes = [15, 128], strides = [1, 1]} : vector<16x128xf32> to vector<15x128xf32>
    %49 = tpu.concatenate %48, %45 in 0 : vector<15x128xf32>, vector<1x128xf32> -> vector<16x128xf32>
    %50 = tpu.concatenate %47, %44, %49 in 1 : vector<16x128xf32>, vector<16x128xf32>, vector<16x128xf32> -> vector<16x384xf32>
    %c3 = arith.constant 3 : index
    %c0_25 = arith.constant 0 : index
    %c0_26 = arith.constant 0 : index
    %51 = vector.load %arg4[%c3, %c0_25, %c0_26] : memref<15x384x128xf32, #tpu.memory_space<vmem>>, vector<1x384x128xf32>
    %52 = vector.shape_cast %51 : vector<1x384x128xf32> to vector<384x128xf32>
    %cst_27 = arith.constant dense<0.000000e+00> : vector<16x128xf32>
    %53 = tpu.matmul %50, %52, %cst_27 {dimension_numbers = #tpu.dot_dimension_numbers<[1], [0], [0], [1], [0, 0, 1, 1], [], []>} : vector<16x384xf32>, vector<384x128xf32>, vector<16x128xf32> -> vector<16x128xf32>
    %c3_28 = arith.constant 3 : index
    %c0_29 = arith.constant 0 : index
    %c0_30 = arith.constant 0 : index
    %54 = vector.load %arg5[%c3_28, %c0_29, %c0_30] : memref<15x1x128xf32, #tpu.memory_space<vmem>>, vector<1x1x128xf32>
    %55 = vector.shape_cast %54 : vector<1x1x128xf32> to vector<1x128xf32>
    %56 = vector.broadcast %55 : vector<1x128xf32> to vector<16x128xf32>
    %57 = arith.addf %53, %56 : vector<16x128xf32>
    %58 = arith.addf %57, %29 : vector<16x128xf32>
    %cst_31 = arith.constant 0.000000e+00 : f32
    %59 = vector.broadcast %cst_31 : f32 to vector<1x128xf32>
    %60 = vector.extract_strided_slice %58 {offsets = [0, 0], sizes = [15, 128], strides = [1, 1]} : vector<16x128xf32> to vector<15x128xf32>
    %61 = tpu.concatenate %59, %60 in 0 : vector<1x128xf32>, vector<15x128xf32> -> vector<16x128xf32>
    %62 = vector.extract_strided_slice %58 {offsets = [1, 0], sizes = [15, 128], strides = [1, 1]} : vector<16x128xf32> to vector<15x128xf32>
    %63 = tpu.concatenate %62, %59 in 0 : vector<15x128xf32>, vector<1x128xf32> -> vector<16x128xf32>
    %64 = tpu.concatenate %61, %58, %63 in 1 : vector<16x128xf32>, vector<16x128xf32>, vector<16x128xf32> -> vector<16x384xf32>
    %c4 = arith.constant 4 : index
    %c0_32 = arith.constant 0 : index
    %c0_33 = arith.constant 0 : index
    %65 = vector.load %arg4[%c4, %c0_32, %c0_33] : memref<15x384x128xf32, #tpu.memory_space<vmem>>, vector<1x384x128xf32>
    %66 = vector.shape_cast %65 : vector<1x384x128xf32> to vector<384x128xf32>
    %cst_34 = arith.constant dense<0.000000e+00> : vector<16x128xf32>
    %67 = tpu.matmul %64, %66, %cst_34 {dimension_numbers = #tpu.dot_dimension_numbers<[1], [0], [0], [1], [0, 0, 1, 1], [], []>} : vector<16x384xf32>, vector<384x128xf32>, vector<16x128xf32> -> vector<16x128xf32>
    %c4_35 = arith.constant 4 : index
    %c0_36 = arith.constant 0 : index
    %c0_37 = arith.constant 0 : index
    %68 = vector.load %arg5[%c4_35, %c0_36, %c0_37] : memref<15x1x128xf32, #tpu.memory_space<vmem>>, vector<1x1x128xf32>
    %69 = vector.shape_cast %68 : vector<1x1x128xf32> to vector<1x128xf32>
    %70 = vector.broadcast %69 : vector<1x128xf32> to vector<16x128xf32>
    %71 = arith.addf %67, %70 : vector<16x128xf32>
    %cst_38 = arith.constant 0.000000e+00 : f32
    %72 = vector.broadcast %cst_38 : f32 to vector<16x128xf32>
    %73 = arith.maximumf %71, %72 : vector<16x128xf32>
    %cst_39 = arith.constant 0.000000e+00 : f32
    %74 = vector.broadcast %cst_39 : f32 to vector<1x128xf32>
    %75 = vector.extract_strided_slice %73 {offsets = [0, 0], sizes = [15, 128], strides = [1, 1]} : vector<16x128xf32> to vector<15x128xf32>
    %76 = tpu.concatenate %74, %75 in 0 : vector<1x128xf32>, vector<15x128xf32> -> vector<16x128xf32>
    %77 = vector.extract_strided_slice %73 {offsets = [1, 0], sizes = [15, 128], strides = [1, 1]} : vector<16x128xf32> to vector<15x128xf32>
    %78 = tpu.concatenate %77, %74 in 0 : vector<15x128xf32>, vector<1x128xf32> -> vector<16x128xf32>
    %79 = tpu.concatenate %76, %73, %78 in 1 : vector<16x128xf32>, vector<16x128xf32>, vector<16x128xf32> -> vector<16x384xf32>
    %c5 = arith.constant 5 : index
    %c0_40 = arith.constant 0 : index
    %c0_41 = arith.constant 0 : index
    %80 = vector.load %arg4[%c5, %c0_40, %c0_41] : memref<15x384x128xf32, #tpu.memory_space<vmem>>, vector<1x384x128xf32>
    %81 = vector.shape_cast %80 : vector<1x384x128xf32> to vector<384x128xf32>
    %cst_42 = arith.constant dense<0.000000e+00> : vector<16x128xf32>
    %82 = tpu.matmul %79, %81, %cst_42 {dimension_numbers = #tpu.dot_dimension_numbers<[1], [0], [0], [1], [0, 0, 1, 1], [], []>} : vector<16x384xf32>, vector<384x128xf32>, vector<16x128xf32> -> vector<16x128xf32>
    %c5_43 = arith.constant 5 : index
    %c0_44 = arith.constant 0 : index
    %c0_45 = arith.constant 0 : index
    %83 = vector.load %arg5[%c5_43, %c0_44, %c0_45] : memref<15x1x128xf32, #tpu.memory_space<vmem>>, vector<1x1x128xf32>
    %84 = vector.shape_cast %83 : vector<1x1x128xf32> to vector<1x128xf32>
    %85 = vector.broadcast %84 : vector<1x128xf32> to vector<16x128xf32>
    %86 = arith.addf %82, %85 : vector<16x128xf32>
    %87 = arith.addf %86, %58 : vector<16x128xf32>
    %cst_46 = arith.constant 0.000000e+00 : f32
    %88 = vector.broadcast %cst_46 : f32 to vector<1x128xf32>
    %89 = vector.extract_strided_slice %29 {offsets = [0, 0], sizes = [15, 128], strides = [1, 1]} : vector<16x128xf32> to vector<15x128xf32>
    %90 = tpu.concatenate %88, %89 in 0 : vector<1x128xf32>, vector<15x128xf32> -> vector<16x128xf32>
    %91 = vector.extract_strided_slice %29 {offsets = [1, 0], sizes = [15, 128], strides = [1, 1]} : vector<16x128xf32> to vector<15x128xf32>
    %92 = tpu.concatenate %91, %88 in 0 : vector<15x128xf32>, vector<1x128xf32> -> vector<16x128xf32>
    %93 = tpu.concatenate %90, %29, %92 in 1 : vector<16x128xf32>, vector<16x128xf32>, vector<16x128xf32> -> vector<16x384xf32>
    %c6 = arith.constant 6 : index
    %c0_47 = arith.constant 0 : index
    %c0_48 = arith.constant 0 : index
    %94 = vector.load %arg4[%c6, %c0_47, %c0_48] : memref<15x384x128xf32, #tpu.memory_space<vmem>>, vector<1x384x128xf32>
    %95 = vector.shape_cast %94 : vector<1x384x128xf32> to vector<384x128xf32>
    %cst_49 = arith.constant dense<0.000000e+00> : vector<16x128xf32>
    %96 = tpu.matmul %93, %95, %cst_49 {dimension_numbers = #tpu.dot_dimension_numbers<[1], [0], [0], [1], [0, 0, 1, 1], [], []>} : vector<16x384xf32>, vector<384x128xf32>, vector<16x128xf32> -> vector<16x128xf32>
    %c6_50 = arith.constant 6 : index
    %c0_51 = arith.constant 0 : index
    %c0_52 = arith.constant 0 : index
    %97 = vector.load %arg5[%c6_50, %c0_51, %c0_52] : memref<15x1x128xf32, #tpu.memory_space<vmem>>, vector<1x1x128xf32>
    %98 = vector.shape_cast %97 : vector<1x1x128xf32> to vector<1x128xf32>
    %99 = vector.broadcast %98 : vector<1x128xf32> to vector<16x128xf32>
    %100 = arith.addf %96, %99 : vector<16x128xf32>
    %cst_53 = arith.constant 0.000000e+00 : f32
    %101 = vector.broadcast %cst_53 : f32 to vector<16x128xf32>
    %102 = arith.maximumf %100, %101 : vector<16x128xf32>
    %cst_54 = arith.constant 0.000000e+00 : f32
    %103 = vector.broadcast %cst_54 : f32 to vector<1x128xf32>
    %104 = vector.extract_strided_slice %102 {offsets = [0, 0], sizes = [15, 128], strides = [1, 1]} : vector<16x128xf32> to vector<15x128xf32>
    %105 = tpu.concatenate %103, %104 in 0 : vector<1x128xf32>, vector<15x128xf32> -> vector<16x128xf32>
    %106 = vector.extract_strided_slice %102 {offsets = [1, 0], sizes = [15, 128], strides = [1, 1]} : vector<16x128xf32> to vector<15x128xf32>
    %107 = tpu.concatenate %106, %103 in 0 : vector<15x128xf32>, vector<1x128xf32> -> vector<16x128xf32>
    %108 = tpu.concatenate %105, %102, %107 in 1 : vector<16x128xf32>, vector<16x128xf32>, vector<16x128xf32> -> vector<16x384xf32>
    %c7 = arith.constant 7 : index
    %c0_55 = arith.constant 0 : index
    %c0_56 = arith.constant 0 : index
    %109 = vector.load %arg4[%c7, %c0_55, %c0_56] : memref<15x384x128xf32, #tpu.memory_space<vmem>>, vector<1x384x128xf32>
    %110 = vector.shape_cast %109 : vector<1x384x128xf32> to vector<384x128xf32>
    %cst_57 = arith.constant dense<0.000000e+00> : vector<16x128xf32>
    %111 = tpu.matmul %108, %110, %cst_57 {dimension_numbers = #tpu.dot_dimension_numbers<[1], [0], [0], [1], [0, 0, 1, 1], [], []>} : vector<16x384xf32>, vector<384x128xf32>, vector<16x128xf32> -> vector<16x128xf32>
    %c7_58 = arith.constant 7 : index
    %c0_59 = arith.constant 0 : index
    %c0_60 = arith.constant 0 : index
    %112 = vector.load %arg5[%c7_58, %c0_59, %c0_60] : memref<15x1x128xf32, #tpu.memory_space<vmem>>, vector<1x1x128xf32>
    %113 = vector.shape_cast %112 : vector<1x1x128xf32> to vector<1x128xf32>
    %114 = vector.broadcast %113 : vector<1x128xf32> to vector<16x128xf32>
    %115 = arith.addf %111, %114 : vector<16x128xf32>
    %116 = arith.addf %115, %29 : vector<16x128xf32>
    %c0_61 = arith.constant 0 : index
    %c0_62 = arith.constant 0 : index
    %117 = vector.load %arg2[%c0_61, %c0_62] : memref<8x16xf32, #tpu.memory_space<vmem>>, vector<8x16xf32>
    %cst_63 = arith.constant 0.000000e+00 : f32
    %118 = vector.broadcast %cst_63 : f32 to vector<1x128xf32>
    %119 = vector.extract_strided_slice %116 {offsets = [0, 0], sizes = [15, 128], strides = [1, 1]} : vector<16x128xf32> to vector<15x128xf32>
    %120 = tpu.concatenate %118, %119 in 0 : vector<1x128xf32>, vector<15x128xf32> -> vector<16x128xf32>
    %121 = vector.extract_strided_slice %116 {offsets = [1, 0], sizes = [15, 128], strides = [1, 1]} : vector<16x128xf32> to vector<15x128xf32>
    %122 = tpu.concatenate %121, %118 in 0 : vector<15x128xf32>, vector<1x128xf32> -> vector<16x128xf32>
    %123 = tpu.concatenate %120, %116, %122 in 1 : vector<16x128xf32>, vector<16x128xf32>, vector<16x128xf32> -> vector<16x384xf32>
    %cst_64 = arith.constant dense<0.000000e+00> : vector<8x384xf32>
    %124 = tpu.matmul %117, %123, %cst_64 {dimension_numbers = #tpu.dot_dimension_numbers<[1], [0], [0], [1], [0, 0, 1, 1], [], []>} : vector<8x16xf32>, vector<16x384xf32>, vector<8x384xf32> -> vector<8x384xf32>
    %c0_65 = arith.constant 0 : index
    %c0_66 = arith.constant 0 : index
    %125 = vector.load %arg8[%c0_65, %c0_66] : memref<384x64xf32, #tpu.memory_space<vmem>>, vector<384x64xf32>
    %cst_67 = arith.constant dense<0.000000e+00> : vector<8x64xf32>
    %126 = tpu.matmul %124, %125, %cst_67 {dimension_numbers = #tpu.dot_dimension_numbers<[1], [0], [0], [1], [0, 0, 1, 1], [], []>} : vector<8x384xf32>, vector<384x64xf32>, vector<8x64xf32> -> vector<8x64xf32>
    %c0_68 = arith.constant 0 : index
    %c0_69 = arith.constant 0 : index
    %127 = vector.load %arg9[%c0_68, %c0_69] : memref<1x64xf32, #tpu.memory_space<vmem>>, vector<1x64xf32>
    %128 = vector.broadcast %127 : vector<1x64xf32> to vector<8x64xf32>
    %129 = arith.addf %126, %128 : vector<8x64xf32>
    %cst_70 = arith.constant 0.000000e+00 : f32
    %130 = vector.broadcast %cst_70 : f32 to vector<1x64xf32>
    %131 = vector.extract_strided_slice %129 {offsets = [0, 0], sizes = [7, 64], strides = [1, 1]} : vector<8x64xf32> to vector<7x64xf32>
    %132 = tpu.concatenate %130, %131 in 0 : vector<1x64xf32>, vector<7x64xf32> -> vector<8x64xf32>
    %133 = vector.extract_strided_slice %129 {offsets = [1, 0], sizes = [7, 64], strides = [1, 1]} : vector<8x64xf32> to vector<7x64xf32>
    %134 = tpu.concatenate %133, %130 in 0 : vector<7x64xf32>, vector<1x64xf32> -> vector<8x64xf32>
    %135 = tpu.concatenate %132, %129, %134 in 1 : vector<8x64xf32>, vector<8x64xf32>, vector<8x64xf32> -> vector<8x192xf32>
    %c0_71 = arith.constant 0 : index
    %c0_72 = arith.constant 0 : index
    %c0_73 = arith.constant 0 : index
    %136 = vector.load %arg6[%c0_71, %c0_72, %c0_73] : memref<4x192x64xf32, #tpu.memory_space<vmem>>, vector<1x192x64xf32>
    %137 = vector.shape_cast %136 : vector<1x192x64xf32> to vector<192x64xf32>
    %cst_74 = arith.constant dense<0.000000e+00> : vector<8x64xf32>
    %138 = tpu.matmul %135, %137, %cst_74 {dimension_numbers = #tpu.dot_dimension_numbers<[1], [0], [0], [1], [0, 0, 1, 1], [], []>} : vector<8x192xf32>, vector<192x64xf32>, vector<8x64xf32> -> vector<8x64xf32>
    %c0_75 = arith.constant 0 : index
    %c0_76 = arith.constant 0 : index
    %c0_77 = arith.constant 0 : index
    %139 = vector.load %arg7[%c0_75, %c0_76, %c0_77] : memref<4x1x64xf32, #tpu.memory_space<vmem>>, vector<1x1x64xf32>
    %140 = vector.shape_cast %139 : vector<1x1x64xf32> to vector<1x64xf32>
    %141 = vector.broadcast %140 : vector<1x64xf32> to vector<8x64xf32>
    %142 = arith.addf %138, %141 : vector<8x64xf32>
    %cst_78 = arith.constant 0.000000e+00 : f32
    %143 = vector.broadcast %cst_78 : f32 to vector<8x64xf32>
    %144 = arith.maximumf %142, %143 : vector<8x64xf32>
    %cst_79 = arith.constant 0.000000e+00 : f32
    %145 = vector.broadcast %cst_79 : f32 to vector<1x64xf32>
    %146 = vector.extract_strided_slice %144 {offsets = [0, 0], sizes = [7, 64], strides = [1, 1]} : vector<8x64xf32> to vector<7x64xf32>
    %147 = tpu.concatenate %145, %146 in 0 : vector<1x64xf32>, vector<7x64xf32> -> vector<8x64xf32>
    %148 = vector.extract_strided_slice %144 {offsets = [1, 0], sizes = [7, 64], strides = [1, 1]} : vector<8x64xf32> to vector<7x64xf32>
    %149 = tpu.concatenate %148, %145 in 0 : vector<7x64xf32>, vector<1x64xf32> -> vector<8x64xf32>
    %150 = tpu.concatenate %147, %144, %149 in 1 : vector<8x64xf32>, vector<8x64xf32>, vector<8x64xf32> -> vector<8x192xf32>
    %c1_80 = arith.constant 1 : index
    %c0_81 = arith.constant 0 : index
    %c0_82 = arith.constant 0 : index
    %151 = vector.load %arg6[%c1_80, %c0_81, %c0_82] : memref<4x192x64xf32, #tpu.memory_space<vmem>>, vector<1x192x64xf32>
    %152 = vector.shape_cast %151 : vector<1x192x64xf32> to vector<192x64xf32>
    %cst_83 = arith.constant dense<0.000000e+00> : vector<8x64xf32>
    %153 = tpu.matmul %150, %152, %cst_83 {dimension_numbers = #tpu.dot_dimension_numbers<[1], [0], [0], [1], [0, 0, 1, 1], [], []>} : vector<8x192xf32>, vector<192x64xf32>, vector<8x64xf32> -> vector<8x64xf32>
    %c1_84 = arith.constant 1 : index
    %c0_85 = arith.constant 0 : index
    %c0_86 = arith.constant 0 : index
    %154 = vector.load %arg7[%c1_84, %c0_85, %c0_86] : memref<4x1x64xf32, #tpu.memory_space<vmem>>, vector<1x1x64xf32>
    %155 = vector.shape_cast %154 : vector<1x1x64xf32> to vector<1x64xf32>
    %156 = vector.broadcast %155 : vector<1x64xf32> to vector<8x64xf32>
    %157 = arith.addf %153, %156 : vector<8x64xf32>
    %158 = arith.addf %157, %129 : vector<8x64xf32>
    %cst_87 = arith.constant 0.000000e+00 : f32
    %159 = vector.broadcast %cst_87 : f32 to vector<1x64xf32>
    %160 = vector.extract_strided_slice %158 {offsets = [0, 0], sizes = [7, 64], strides = [1, 1]} : vector<8x64xf32> to vector<7x64xf32>
    %161 = tpu.concatenate %159, %160 in 0 : vector<1x64xf32>, vector<7x64xf32> -> vector<8x64xf32>
    %162 = vector.extract_strided_slice %158 {offsets = [1, 0], sizes = [7, 64], strides = [1, 1]} : vector<8x64xf32> to vector<7x64xf32>
    %163 = tpu.concatenate %162, %159 in 0 : vector<7x64xf32>, vector<1x64xf32> -> vector<8x64xf32>
    %164 = tpu.concatenate %161, %158, %163 in 1 : vector<8x64xf32>, vector<8x64xf32>, vector<8x64xf32> -> vector<8x192xf32>
    %c2_88 = arith.constant 2 : index
    %c0_89 = arith.constant 0 : index
    %c0_90 = arith.constant 0 : index
    %165 = vector.load %arg6[%c2_88, %c0_89, %c0_90] : memref<4x192x64xf32, #tpu.memory_space<vmem>>, vector<1x192x64xf32>
    %166 = vector.shape_cast %165 : vector<1x192x64xf32> to vector<192x64xf32>
    %cst_91 = arith.constant dense<0.000000e+00> : vector<8x64xf32>
    %167 = tpu.matmul %164, %166, %cst_91 {dimension_numbers = #tpu.dot_dimension_numbers<[1], [0], [0], [1], [0, 0, 1, 1], [], []>} : vector<8x192xf32>, vector<192x64xf32>, vector<8x64xf32> -> vector<8x64xf32>
    %c2_92 = arith.constant 2 : index
    %c0_93 = arith.constant 0 : index
    %c0_94 = arith.constant 0 : index
    %168 = vector.load %arg7[%c2_92, %c0_93, %c0_94] : memref<4x1x64xf32, #tpu.memory_space<vmem>>, vector<1x1x64xf32>
    %169 = vector.shape_cast %168 : vector<1x1x64xf32> to vector<1x64xf32>
    %170 = vector.broadcast %169 : vector<1x64xf32> to vector<8x64xf32>
    %171 = arith.addf %167, %170 : vector<8x64xf32>
    %cst_95 = arith.constant 0.000000e+00 : f32
    %172 = vector.broadcast %cst_95 : f32 to vector<8x64xf32>
    %173 = arith.maximumf %171, %172 : vector<8x64xf32>
    %cst_96 = arith.constant 0.000000e+00 : f32
    %174 = vector.broadcast %cst_96 : f32 to vector<1x64xf32>
    %175 = vector.extract_strided_slice %173 {offsets = [0, 0], sizes = [7, 64], strides = [1, 1]} : vector<8x64xf32> to vector<7x64xf32>
    %176 = tpu.concatenate %174, %175 in 0 : vector<1x64xf32>, vector<7x64xf32> -> vector<8x64xf32>
    %177 = vector.extract_strided_slice %173 {offsets = [1, 0], sizes = [7, 64], strides = [1, 1]} : vector<8x64xf32> to vector<7x64xf32>
    %178 = tpu.concatenate %177, %174 in 0 : vector<7x64xf32>, vector<1x64xf32> -> vector<8x64xf32>
    %179 = tpu.concatenate %176, %173, %178 in 1 : vector<8x64xf32>, vector<8x64xf32>, vector<8x64xf32> -> vector<8x192xf32>
    %c3_97 = arith.constant 3 : index
    %c0_98 = arith.constant 0 : index
    %c0_99 = arith.constant 0 : index
    %180 = vector.load %arg6[%c3_97, %c0_98, %c0_99] : memref<4x192x64xf32, #tpu.memory_space<vmem>>, vector<1x192x64xf32>
    %181 = vector.shape_cast %180 : vector<1x192x64xf32> to vector<192x64xf32>
    %cst_100 = arith.constant dense<0.000000e+00> : vector<8x64xf32>
    %182 = tpu.matmul %179, %181, %cst_100 {dimension_numbers = #tpu.dot_dimension_numbers<[1], [0], [0], [1], [0, 0, 1, 1], [], []>} : vector<8x192xf32>, vector<192x64xf32>, vector<8x64xf32> -> vector<8x64xf32>
    %c3_101 = arith.constant 3 : index
    %c0_102 = arith.constant 0 : index
    %c0_103 = arith.constant 0 : index
    %183 = vector.load %arg7[%c3_101, %c0_102, %c0_103] : memref<4x1x64xf32, #tpu.memory_space<vmem>>, vector<1x1x64xf32>
    %184 = vector.shape_cast %183 : vector<1x1x64xf32> to vector<1x64xf32>
    %185 = vector.broadcast %184 : vector<1x64xf32> to vector<8x64xf32>
    %186 = arith.addf %182, %185 : vector<8x64xf32>
    %187 = arith.addf %186, %158 : vector<8x64xf32>
    %cst_104 = arith.constant 0.000000e+00 : f32
    %188 = vector.broadcast %cst_104 : f32 to vector<1x64xf32>
    %189 = vector.extract_strided_slice %187 {offsets = [0, 0], sizes = [7, 64], strides = [1, 1]} : vector<8x64xf32> to vector<7x64xf32>
    %190 = tpu.concatenate %188, %189 in 0 : vector<1x64xf32>, vector<7x64xf32> -> vector<8x64xf32>
    %191 = vector.extract_strided_slice %187 {offsets = [1, 0], sizes = [7, 64], strides = [1, 1]} : vector<8x64xf32> to vector<7x64xf32>
    %192 = tpu.concatenate %191, %188 in 0 : vector<7x64xf32>, vector<1x64xf32> -> vector<8x64xf32>
    %193 = tpu.concatenate %190, %187, %192 in 1 : vector<8x64xf32>, vector<8x64xf32>, vector<8x64xf32> -> vector<8x192xf32>
    %c0_105 = arith.constant 0 : index
    %c0_106 = arith.constant 0 : index
    %c0_107 = arith.constant 0 : index
    %194 = vector.load %arg10[%c0_105, %c0_106, %c0_107] : memref<2x192x128xf32, #tpu.memory_space<vmem>>, vector<1x192x128xf32>
    %195 = vector.shape_cast %194 : vector<1x192x128xf32> to vector<192x128xf32>
    %cst_108 = arith.constant dense<0.000000e+00> : vector<8x128xf32>
    %196 = tpu.matmul %193, %195, %cst_108 {dimension_numbers = #tpu.dot_dimension_numbers<[1], [0], [0], [1], [0, 0, 1, 1], [], []>} : vector<8x192xf32>, vector<192x128xf32>, vector<8x128xf32> -> vector<8x128xf32>
    %c0_109 = arith.constant 0 : index
    %c0_110 = arith.constant 0 : index
    %197 = vector.load %arg11[%c0_109, %c0_110] : memref<1x128xf32, #tpu.memory_space<vmem>>, vector<1x128xf32>
    %198 = vector.broadcast %197 : vector<1x128xf32> to vector<8x128xf32>
    %199 = arith.addf %196, %198 : vector<8x128xf32>
    %c1_111 = arith.constant 1 : index
    %c0_112 = arith.constant 0 : index
    %c0_113 = arith.constant 0 : index
    %200 = vector.load %arg10[%c1_111, %c0_112, %c0_113] : memref<2x192x128xf32, #tpu.memory_space<vmem>>, vector<1x192x128xf32>
    %201 = vector.shape_cast %200 : vector<1x192x128xf32> to vector<192x128xf32>
    %cst_114 = arith.constant dense<0.000000e+00> : vector<8x128xf32>
    %202 = tpu.matmul %193, %201, %cst_114 {dimension_numbers = #tpu.dot_dimension_numbers<[1], [0], [0], [1], [0, 0, 1, 1], [], []>} : vector<8x192xf32>, vector<192x128xf32>, vector<8x128xf32> -> vector<8x128xf32>
    %c0_115 = arith.constant 0 : index
    %c0_116 = arith.constant 0 : index
    %203 = vector.load %arg11[%c0_115, %c0_116] : memref<1x128xf32, #tpu.memory_space<vmem>>, vector<1x128xf32>
    %204 = vector.broadcast %203 : vector<1x128xf32> to vector<8x128xf32>
    %205 = arith.addf %202, %204 : vector<8x128xf32>
    %c0_117 = arith.constant 0 : index
    %c0_118 = arith.constant 0 : index
    %c0_119 = arith.constant 0 : index
    %206 = vector.load %arg3[%c0_117, %c0_118, %c0_119] : memref<2x16x8xf32, #tpu.memory_space<vmem>>, vector<1x16x8xf32>
    %207 = vector.shape_cast %206 : vector<1x16x8xf32> to vector<16x8xf32>
    %cst_120 = arith.constant dense<0.000000e+00> : vector<16x128xf32>
    %208 = tpu.matmul %207, %199, %cst_120 {dimension_numbers = #tpu.dot_dimension_numbers<[1], [0], [0], [1], [0, 0, 1, 1], [], []>} : vector<16x8xf32>, vector<8x128xf32>, vector<16x128xf32> -> vector<16x128xf32>
    %c1_121 = arith.constant 1 : index
    %c0_122 = arith.constant 0 : index
    %c0_123 = arith.constant 0 : index
    %209 = vector.load %arg3[%c1_121, %c0_122, %c0_123] : memref<2x16x8xf32, #tpu.memory_space<vmem>>, vector<1x16x8xf32>
    %210 = vector.shape_cast %209 : vector<1x16x8xf32> to vector<16x8xf32>
    %cst_124 = arith.constant dense<0.000000e+00> : vector<16x128xf32>
    %211 = tpu.matmul %210, %205, %cst_124 {dimension_numbers = #tpu.dot_dimension_numbers<[1], [0], [0], [1], [0, 0, 1, 1], [], []>} : vector<16x8xf32>, vector<8x128xf32>, vector<16x128xf32> -> vector<16x128xf32>
    %212 = arith.addf %208, %211 : vector<16x128xf32>
    %213 = arith.addf %212, %116 : vector<16x128xf32>
    %cst_125 = arith.constant 0.000000e+00 : f32
    %214 = vector.broadcast %cst_125 : f32 to vector<1x128xf32>
    %215 = vector.extract_strided_slice %213 {offsets = [0, 0], sizes = [15, 128], strides = [1, 1]} : vector<16x128xf32> to vector<15x128xf32>
    %216 = tpu.concatenate %214, %215 in 0 : vector<1x128xf32>, vector<15x128xf32> -> vector<16x128xf32>
    %217 = vector.extract_strided_slice %213 {offsets = [1, 0], sizes = [15, 128], strides = [1, 1]} : vector<16x128xf32> to vector<15x128xf32>
    %218 = tpu.concatenate %217, %214 in 0 : vector<15x128xf32>, vector<1x128xf32> -> vector<16x128xf32>
    %219 = tpu.concatenate %216, %213, %218 in 1 : vector<16x128xf32>, vector<16x128xf32>, vector<16x128xf32> -> vector<16x384xf32>
    %c8 = arith.constant 8 : index
    %c0_126 = arith.constant 0 : index
    %c0_127 = arith.constant 0 : index
    %220 = vector.load %arg4[%c8, %c0_126, %c0_127] : memref<15x384x128xf32, #tpu.memory_space<vmem>>, vector<1x384x128xf32>
    %221 = vector.shape_cast %220 : vector<1x384x128xf32> to vector<384x128xf32>
    %cst_128 = arith.constant dense<0.000000e+00> : vector<16x128xf32>
    %222 = tpu.matmul %219, %221, %cst_128 {dimension_numbers = #tpu.dot_dimension_numbers<[1], [0], [0], [1], [0, 0, 1, 1], [], []>} : vector<16x384xf32>, vector<384x128xf32>, vector<16x128xf32> -> vector<16x128xf32>
    %c8_129 = arith.constant 8 : index
    %c0_130 = arith.constant 0 : index
    %c0_131 = arith.constant 0 : index
    %223 = vector.load %arg5[%c8_129, %c0_130, %c0_131] : memref<15x1x128xf32, #tpu.memory_space<vmem>>, vector<1x1x128xf32>
    %224 = vector.shape_cast %223 : vector<1x1x128xf32> to vector<1x128xf32>
    %225 = vector.broadcast %224 : vector<1x128xf32> to vector<16x128xf32>
    %226 = arith.addf %222, %225 : vector<16x128xf32>
    %cst_132 = arith.constant 0.000000e+00 : f32
    %227 = vector.broadcast %cst_132 : f32 to vector<16x128xf32>
    %228 = arith.maximumf %226, %227 : vector<16x128xf32>
    %cst_133 = arith.constant 0.000000e+00 : f32
    %229 = vector.broadcast %cst_133 : f32 to vector<1x128xf32>
    %230 = vector.extract_strided_slice %228 {offsets = [0, 0], sizes = [15, 128], strides = [1, 1]} : vector<16x128xf32> to vector<15x128xf32>
    %231 = tpu.concatenate %229, %230 in 0 : vector<1x128xf32>, vector<15x128xf32> -> vector<16x128xf32>
    %232 = vector.extract_strided_slice %228 {offsets = [1, 0], sizes = [15, 128], strides = [1, 1]} : vector<16x128xf32> to vector<15x128xf32>
    %233 = tpu.concatenate %232, %229 in 0 : vector<15x128xf32>, vector<1x128xf32> -> vector<16x128xf32>
    %234 = tpu.concatenate %231, %228, %233 in 1 : vector<16x128xf32>, vector<16x128xf32>, vector<16x128xf32> -> vector<16x384xf32>
    %c9 = arith.constant 9 : index
    %c0_134 = arith.constant 0 : index
    %c0_135 = arith.constant 0 : index
    %235 = vector.load %arg4[%c9, %c0_134, %c0_135] : memref<15x384x128xf32, #tpu.memory_space<vmem>>, vector<1x384x128xf32>
    %236 = vector.shape_cast %235 : vector<1x384x128xf32> to vector<384x128xf32>
    %cst_136 = arith.constant dense<0.000000e+00> : vector<16x128xf32>
    %237 = tpu.matmul %234, %236, %cst_136 {dimension_numbers = #tpu.dot_dimension_numbers<[1], [0], [0], [1], [0, 0, 1, 1], [], []>} : vector<16x384xf32>, vector<384x128xf32>, vector<16x128xf32> -> vector<16x128xf32>
    %c9_137 = arith.constant 9 : index
    %c0_138 = arith.constant 0 : index
    %c0_139 = arith.constant 0 : index
    %238 = vector.load %arg5[%c9_137, %c0_138, %c0_139] : memref<15x1x128xf32, #tpu.memory_space<vmem>>, vector<1x1x128xf32>
    %239 = vector.shape_cast %238 : vector<1x1x128xf32> to vector<1x128xf32>
    %240 = vector.broadcast %239 : vector<1x128xf32> to vector<16x128xf32>
    %241 = arith.addf %237, %240 : vector<16x128xf32>
    %242 = arith.addf %241, %213 : vector<16x128xf32>
    %c0_140 = arith.constant 0 : index
    %c0_141 = arith.constant 0 : index
    %243 = vector.load %arg12[%c0_140, %c0_141] : memref<128x128xf32, #tpu.memory_space<vmem>>, vector<128x128xf32>
    %cst_142 = arith.constant dense<0.000000e+00> : vector<16x128xf32>
    %244 = tpu.matmul %242, %243, %cst_142 {dimension_numbers = #tpu.dot_dimension_numbers<[1], [0], [0], [1], [0, 0, 1, 1], [], []>} : vector<16x128xf32>, vector<128x128xf32>, vector<16x128xf32> -> vector<16x128xf32>
    %c0_143 = arith.constant 0 : index
    %c0_144 = arith.constant 0 : index
    %245 = vector.load %arg13[%c0_143, %c0_144] : memref<1x128xf32, #tpu.memory_space<vmem>>, vector<1x128xf32>
    %246 = vector.broadcast %245 : vector<1x128xf32> to vector<16x128xf32>
    %247 = arith.addf %244, %246 : vector<16x128xf32>
    %cst_145 = arith.constant 0.000000e+00 : f32
    %248 = vector.broadcast %cst_145 : f32 to vector<16x128xf32>
    %249 = arith.subf %248, %247 : vector<16x128xf32>
    %250 = math.exp %249 : vector<16x128xf32>
    %cst_146 = arith.constant 1.000000e+00 : f32
    %251 = vector.broadcast %cst_146 : f32 to vector<16x128xf32>
    %252 = arith.addf %251, %250 : vector<16x128xf32>
    %cst_147 = arith.constant 1.000000e+00 : f32
    %253 = vector.broadcast %cst_147 : f32 to vector<16x128xf32>
    %254 = arith.divf %253, %252 : vector<16x128xf32>
    %255 = arith.mulf %87, %254 : vector<16x128xf32>
    %256 = arith.addf %255, %29 : vector<16x128xf32>
    %cst_148 = arith.constant 0.000000e+00 : f32
    %257 = vector.broadcast %cst_148 : f32 to vector<1x128xf32>
    %258 = vector.extract_strided_slice %256 {offsets = [0, 0], sizes = [15, 128], strides = [1, 1]} : vector<16x128xf32> to vector<15x128xf32>
    %259 = tpu.concatenate %257, %258 in 0 : vector<1x128xf32>, vector<15x128xf32> -> vector<16x128xf32>
    %260 = vector.extract_strided_slice %256 {offsets = [1, 0], sizes = [15, 128], strides = [1, 1]} : vector<16x128xf32> to vector<15x128xf32>
    %261 = tpu.concatenate %260, %257 in 0 : vector<15x128xf32>, vector<1x128xf32> -> vector<16x128xf32>
    %262 = tpu.concatenate %259, %256, %261 in 1 : vector<16x128xf32>, vector<16x128xf32>, vector<16x128xf32> -> vector<16x384xf32>
    %c10 = arith.constant 10 : index
    %c0_149 = arith.constant 0 : index
    %c0_150 = arith.constant 0 : index
    %263 = vector.load %arg4[%c10, %c0_149, %c0_150] : memref<15x384x128xf32, #tpu.memory_space<vmem>>, vector<1x384x128xf32>
    %264 = vector.shape_cast %263 : vector<1x384x128xf32> to vector<384x128xf32>
    %cst_151 = arith.constant dense<0.000000e+00> : vector<16x128xf32>
    %265 = tpu.matmul %262, %264, %cst_151 {dimension_numbers = #tpu.dot_dimension_numbers<[1], [0], [0], [1], [0, 0, 1, 1], [], []>} : vector<16x384xf32>, vector<384x128xf32>, vector<16x128xf32> -> vector<16x128xf32>
    %c10_152 = arith.constant 10 : index
    %c0_153 = arith.constant 0 : index
    %c0_154 = arith.constant 0 : index
    %266 = vector.load %arg5[%c10_152, %c0_153, %c0_154] : memref<15x1x128xf32, #tpu.memory_space<vmem>>, vector<1x1x128xf32>
    %267 = vector.shape_cast %266 : vector<1x1x128xf32> to vector<1x128xf32>
    %268 = vector.broadcast %267 : vector<1x128xf32> to vector<16x128xf32>
    %269 = arith.addf %265, %268 : vector<16x128xf32>
    %cst_155 = arith.constant 0.000000e+00 : f32
    %270 = vector.broadcast %cst_155 : f32 to vector<16x128xf32>
    %271 = arith.maximumf %269, %270 : vector<16x128xf32>
    %cst_156 = arith.constant 0.000000e+00 : f32
    %272 = vector.broadcast %cst_156 : f32 to vector<1x128xf32>
    %273 = vector.extract_strided_slice %271 {offsets = [0, 0], sizes = [15, 128], strides = [1, 1]} : vector<16x128xf32> to vector<15x128xf32>
    %274 = tpu.concatenate %272, %273 in 0 : vector<1x128xf32>, vector<15x128xf32> -> vector<16x128xf32>
    %275 = vector.extract_strided_slice %271 {offsets = [1, 0], sizes = [15, 128], strides = [1, 1]} : vector<16x128xf32> to vector<15x128xf32>
    %276 = tpu.concatenate %275, %272 in 0 : vector<15x128xf32>, vector<1x128xf32> -> vector<16x128xf32>
    %277 = tpu.concatenate %274, %271, %276 in 1 : vector<16x128xf32>, vector<16x128xf32>, vector<16x128xf32> -> vector<16x384xf32>
    %c11 = arith.constant 11 : index
    %c0_157 = arith.constant 0 : index
    %c0_158 = arith.constant 0 : index
    %278 = vector.load %arg4[%c11, %c0_157, %c0_158] : memref<15x384x128xf32, #tpu.memory_space<vmem>>, vector<1x384x128xf32>
    %279 = vector.shape_cast %278 : vector<1x384x128xf32> to vector<384x128xf32>
    %cst_159 = arith.constant dense<0.000000e+00> : vector<16x128xf32>
    %280 = tpu.matmul %277, %279, %cst_159 {dimension_numbers = #tpu.dot_dimension_numbers<[1], [0], [0], [1], [0, 0, 1, 1], [], []>} : vector<16x384xf32>, vector<384x128xf32>, vector<16x128xf32> -> vector<16x128xf32>
    %c11_160 = arith.constant 11 : index
    %c0_161 = arith.constant 0 : index
    %c0_162 = arith.constant 0 : index
    %281 = vector.load %arg5[%c11_160, %c0_161, %c0_162] : memref<15x1x128xf32, #tpu.memory_space<vmem>>, vector<1x1x128xf32>
    %282 = vector.shape_cast %281 : vector<1x1x128xf32> to vector<1x128xf32>
    %283 = vector.broadcast %282 : vector<1x128xf32> to vector<16x128xf32>
    %284 = arith.addf %280, %283 : vector<16x128xf32>
    %285 = arith.addf %284, %256 : vector<16x128xf32>
    %cst_163 = arith.constant 0.000000e+00 : f32
    %286 = vector.broadcast %cst_163 : f32 to vector<1x128xf32>
    %287 = vector.extract_strided_slice %285 {offsets = [0, 0], sizes = [15, 128], strides = [1, 1]} : vector<16x128xf32> to vector<15x128xf32>
    %288 = tpu.concatenate %286, %287 in 0 : vector<1x128xf32>, vector<15x128xf32> -> vector<16x128xf32>
    %289 = vector.extract_strided_slice %285 {offsets = [1, 0], sizes = [15, 128], strides = [1, 1]} : vector<16x128xf32> to vector<15x128xf32>
    %290 = tpu.concatenate %289, %286 in 0 : vector<15x128xf32>, vector<1x128xf32> -> vector<16x128xf32>
    %291 = tpu.concatenate %288, %285, %290 in 1 : vector<16x128xf32>, vector<16x128xf32>, vector<16x128xf32> -> vector<16x384xf32>
    %c12 = arith.constant 12 : index
    %c0_164 = arith.constant 0 : index
    %c0_165 = arith.constant 0 : index
    %292 = vector.load %arg4[%c12, %c0_164, %c0_165] : memref<15x384x128xf32, #tpu.memory_space<vmem>>, vector<1x384x128xf32>
    %293 = vector.shape_cast %292 : vector<1x384x128xf32> to vector<384x128xf32>
    %cst_166 = arith.constant dense<0.000000e+00> : vector<16x128xf32>
    %294 = tpu.matmul %291, %293, %cst_166 {dimension_numbers = #tpu.dot_dimension_numbers<[1], [0], [0], [1], [0, 0, 1, 1], [], []>} : vector<16x384xf32>, vector<384x128xf32>, vector<16x128xf32> -> vector<16x128xf32>
    %c12_167 = arith.constant 12 : index
    %c0_168 = arith.constant 0 : index
    %c0_169 = arith.constant 0 : index
    %295 = vector.load %arg5[%c12_167, %c0_168, %c0_169] : memref<15x1x128xf32, #tpu.memory_space<vmem>>, vector<1x1x128xf32>
    %296 = vector.shape_cast %295 : vector<1x1x128xf32> to vector<1x128xf32>
    %297 = vector.broadcast %296 : vector<1x128xf32> to vector<16x128xf32>
    %298 = arith.addf %294, %297 : vector<16x128xf32>
    %cst_170 = arith.constant 0.000000e+00 : f32
    %299 = vector.broadcast %cst_170 : f32 to vector<16x128xf32>
    %300 = arith.maximumf %298, %299 : vector<16x128xf32>
    %cst_171 = arith.constant 0.000000e+00 : f32
    %301 = vector.broadcast %cst_171 : f32 to vector<1x128xf32>
    %302 = vector.extract_strided_slice %300 {offsets = [0, 0], sizes = [15, 128], strides = [1, 1]} : vector<16x128xf32> to vector<15x128xf32>
    %303 = tpu.concatenate %301, %302 in 0 : vector<1x128xf32>, vector<15x128xf32> -> vector<16x128xf32>
    %304 = vector.extract_strided_slice %300 {offsets = [1, 0], sizes = [15, 128], strides = [1, 1]} : vector<16x128xf32> to vector<15x128xf32>
    %305 = tpu.concatenate %304, %301 in 0 : vector<15x128xf32>, vector<1x128xf32> -> vector<16x128xf32>
    %306 = tpu.concatenate %303, %300, %305 in 1 : vector<16x128xf32>, vector<16x128xf32>, vector<16x128xf32> -> vector<16x384xf32>
    %c13 = arith.constant 13 : index
    %c0_172 = arith.constant 0 : index
    %c0_173 = arith.constant 0 : index
    %307 = vector.load %arg4[%c13, %c0_172, %c0_173] : memref<15x384x128xf32, #tpu.memory_space<vmem>>, vector<1x384x128xf32>
    %308 = vector.shape_cast %307 : vector<1x384x128xf32> to vector<384x128xf32>
    %cst_174 = arith.constant dense<0.000000e+00> : vector<16x128xf32>
    %309 = tpu.matmul %306, %308, %cst_174 {dimension_numbers = #tpu.dot_dimension_numbers<[1], [0], [0], [1], [0, 0, 1, 1], [], []>} : vector<16x384xf32>, vector<384x128xf32>, vector<16x128xf32> -> vector<16x128xf32>
    %c13_175 = arith.constant 13 : index
    %c0_176 = arith.constant 0 : index
    %c0_177 = arith.constant 0 : index
    %310 = vector.load %arg5[%c13_175, %c0_176, %c0_177] : memref<15x1x128xf32, #tpu.memory_space<vmem>>, vector<1x1x128xf32>
    %311 = vector.shape_cast %310 : vector<1x1x128xf32> to vector<1x128xf32>
    %312 = vector.broadcast %311 : vector<1x128xf32> to vector<16x128xf32>
    %313 = arith.addf %309, %312 : vector<16x128xf32>
    %314 = arith.addf %313, %285 : vector<16x128xf32>
    %cst_178 = arith.constant 0.000000e+00 : f32
    %315 = vector.broadcast %cst_178 : f32 to vector<1x128xf32>
    %316 = vector.extract_strided_slice %314 {offsets = [0, 0], sizes = [15, 128], strides = [1, 1]} : vector<16x128xf32> to vector<15x128xf32>
    %317 = tpu.concatenate %315, %316 in 0 : vector<1x128xf32>, vector<15x128xf32> -> vector<16x128xf32>
    %318 = vector.extract_strided_slice %314 {offsets = [1, 0], sizes = [15, 128], strides = [1, 1]} : vector<16x128xf32> to vector<15x128xf32>
    %319 = tpu.concatenate %318, %315 in 0 : vector<15x128xf32>, vector<1x128xf32> -> vector<16x128xf32>
    %320 = tpu.concatenate %317, %314, %319 in 1 : vector<16x128xf32>, vector<16x128xf32>, vector<16x128xf32> -> vector<16x384xf32>
    %c14 = arith.constant 14 : index
    %c0_179 = arith.constant 0 : index
    %c0_180 = arith.constant 0 : index
    %321 = vector.load %arg4[%c14, %c0_179, %c0_180] : memref<15x384x128xf32, #tpu.memory_space<vmem>>, vector<1x384x128xf32>
    %322 = vector.shape_cast %321 : vector<1x384x128xf32> to vector<384x128xf32>
    %cst_181 = arith.constant dense<0.000000e+00> : vector<16x128xf32>
    %323 = tpu.matmul %320, %322, %cst_181 {dimension_numbers = #tpu.dot_dimension_numbers<[1], [0], [0], [1], [0, 0, 1, 1], [], []>} : vector<16x384xf32>, vector<384x128xf32>, vector<16x128xf32> -> vector<16x128xf32>
    %c14_182 = arith.constant 14 : index
    %c0_183 = arith.constant 0 : index
    %c0_184 = arith.constant 0 : index
    %324 = vector.load %arg5[%c14_182, %c0_183, %c0_184] : memref<15x1x128xf32, #tpu.memory_space<vmem>>, vector<1x1x128xf32>
    %325 = vector.shape_cast %324 : vector<1x1x128xf32> to vector<1x128xf32>
    %326 = vector.broadcast %325 : vector<1x128xf32> to vector<16x128xf32>
    %327 = arith.addf %323, %326 : vector<16x128xf32>
    %c0_185 = arith.constant 0 : index
    %c0_186 = arith.constant 0 : index
    %328 = vector.load %arg14[%c0_185, %c0_186] : memref<16x128xf32, #tpu.memory_space<vmem>>, vector<16x128xf32>
    tpu.vector_store %arg14[%c0_185, %c0_186], %327 {strides = array<i32>} : memref<16x128xf32, #tpu.memory_space<vmem>>, vector<16x128xf32>,
    return
  }
  func.func @transform_0(%arg0: i32) -> (i32, i32) {
    %c0_i32 = arith.constant 0 : i32
    %c0_i32_0 = arith.constant 0 : i32
    %c0_i32_1 = arith.constant 0 : i32
    return %c0_i32, %c0_i32_0 : i32, i32
  }
  func.func @transform_1(%arg0: i32) -> (i32, i32) {
    %c0_i32 = arith.constant 0 : i32
    %c0_i32_0 = arith.constant 0 : i32
    %c0_i32_1 = arith.constant 0 : i32
    return %c0_i32, %c0_i32_0 : i32, i32
  }
  func.func @transform_2(%arg0: i32) -> (i32, i32, i32) {
    %c0_i32 = arith.constant 0 : i32
    %c0_i32_0 = arith.constant 0 : i32
    %c0_i32_1 = arith.constant 0 : i32
    %c0_i32_2 = arith.constant 0 : i32
    return %c0_i32, %c0_i32_0, %c0_i32_1 : i32, i32, i32
  }
  func.func @transform_3(%arg0: i32) -> (i32, i32, i32) {
    %c0_i32 = arith.constant 0 : i32
    %c0_i32_0 = arith.constant 0 : i32
    %c0_i32_1 = arith.constant 0 : i32
    %c0_i32_2 = arith.constant 0 : i32
    return %c0_i32, %c0_i32_0, %c0_i32_1 : i32, i32, i32
  }
  func.func @transform_4(%arg0: i32) -> (i32, i32, i32) {
    %c0_i32 = arith.constant 0 : i32
    %c0_i32_0 = arith.constant 0 : i32
    %c0_i32_1 = arith.constant 0 : i32
    %c0_i32_2 = arith.constant 0 : i32
    return %c0_i32, %c0_i32_0, %c0_i32_1 : i32, i32, i32
  }
  func.func @transform_5(%arg0: i32) -> (i32, i32, i32) {
    %c0_i32 = arith.constant 0 : i32
    %c0_i32_0 = arith.constant 0 : i32
    %c0_i32_1 = arith.constant 0 : i32
    %c0_i32_2 = arith.constant 0 : i32
    return %c0_i32, %c0_i32_0, %c0_i32_1 : i32, i32, i32
  }
  func.func @transform_6(%arg0: i32) -> (i32, i32, i32) {
    %c0_i32 = arith.constant 0 : i32
    %c0_i32_0 = arith.constant 0 : i32
    %c0_i32_1 = arith.constant 0 : i32
    %c0_i32_2 = arith.constant 0 : i32
    return %c0_i32, %c0_i32_0, %c0_i32_1 : i32, i32, i32
  }
  func.func @transform_7(%arg0: i32) -> (i32, i32) {
    %c0_i32 = arith.constant 0 : i32
    %c0_i32_0 = arith.constant 0 : i32
    %c0_i32_1 = arith.constant 0 : i32
    return %c0_i32, %c0_i32_0 : i32, i32
  }
  func.func @transform_8(%arg0: i32) -> (i32, i32) {
    %c0_i32 = arith.constant 0 : i32
    %c0_i32_0 = arith.constant 0 : i32
    %c0_i32_1 = arith.constant 0 : i32
    return %c0_i32, %c0_i32_0 : i32, i32
  }
  func.func @transform_9(%arg0: i32) -> (i32, i32, i32) {
    %c0_i32 = arith.constant 0 : i32
    %c0_i32_0 = arith.constant 0 : i32
    %c0_i32_1 = arith.constant 0 : i32
    %c0_i32_2 = arith.constant 0 : i32
    return %c0_i32, %c0_i32_0, %c0_i32_1 : i32, i32, i32
  }
  func.func @transform_10(%arg0: i32) -> (i32, i32) {
    %c0_i32 = arith.constant 0 : i32
    %c0_i32_0 = arith.constant 0 : i32
    %c0_i32_1 = arith.constant 0 : i32
    return %c0_i32, %c0_i32_0 : i32, i32
  }
  func.func @transform_11(%arg0: i32) -> (i32, i32) {
    %c0_i32 = arith.constant 0 : i32
    %c0_i32_0 = arith.constant 0 : i32
    %c0_i32_1 = arith.constant 0 : i32
    return %c0_i32, %c0_i32_0 : i32, i32
  }
  func.func @transform_12(%arg0: i32) -> (i32, i32) {
    %c0_i32 = arith.constant 0 : i32
    %c0_i32_0 = arith.constant 0 : i32
    %c0_i32_1 = arith.constant 0 : i32
    return %c0_i32, %c0_i32_0 : i32, i32
  }
  func.func @transform_13(%arg0: i32) -> (i32, i32) {
    %c0_i32 = arith.constant 0 : i32
    %c0_i32_0 = arith.constant 0 : i32
    %c0_i32_1 = arith.constant 0 : i32
    return %c0_i32, %c0_i32_0 : i32, i32
  }
}

</mosaic_0001>

<llo_original>
// kernel: _lambda_.1
$region0: #{_lambda_.1}
  #allocation0 [shape = 'u32[]', space=smem, size = 0x4, offset = 0x4, fixed_abs, tag = 'smem constant byte address 0x4 - core index']
  #allocation1 [shape = 'u32[144,128]{1,0:T(1,128)}', space=vmem, size = 0x12000, scoped, tag = 'internal scratch']
  %s0 = inlined_call_operand.vmem [shape: f32[16,128], index: 0, kind: input, shape index: {}]
  %s1 = inlined_call_operand.hbm [shape: f32[8,16], index: 1, kind: input, shape index: {}]
  %s2 = inlined_call_operand.hbm [shape: f32[2,16,8], index: 2, kind: input, shape index: {}]
  %s3 = inlined_call_operand.hbm [shape: f32[15,384,128], index: 3, kind: input, shape index: {}]
  %s4 = inlined_call_operand.hbm [shape: f32[15,1,128], index: 4, kind: input, shape index: {}]
  %s5 = inlined_call_operand.hbm [shape: f32[4,192,64], index: 5, kind: input, shape index: {}]
  %s6 = inlined_call_operand.hbm [shape: f32[4,1,64], index: 6, kind: input, shape index: {}]
  %s7 = inlined_call_operand.hbm [shape: f32[384,64], index: 7, kind: input, shape index: {}]
  %s8 = inlined_call_operand.hbm [shape: f32[1,64], index: 8, kind: input, shape index: {}]
  %s9 = inlined_call_operand.hbm [shape: f32[2,192,128], index: 9, kind: input, shape index: {}]
  %s10 = inlined_call_operand.hbm [shape: f32[1,128], index: 10, kind: input, shape index: {}]
  %s11 = inlined_call_operand.hbm [shape: f32[128,128], index: 11, kind: input, shape index: {}]
  %s12 = inlined_call_operand.hbm [shape: f32[1,128], index: 12, kind: input, shape index: {}]
  %s13 = inlined_call_operand.vmem [shape: f32[16,128], index: 13, kind: output, shape index: {}]
  %s14 = sld [smem:[#allocation0]]
  $region110: #{_lambda_.1} parent=0
    _
  %s16 = ssub.s32 1, %s14
  %s17 = scalar_select 0, %s16, %s14
  $region1: #{_lambda_.1} parent=0
    #allocation2 [shape = 'u8[4096]{0}', space=vmem, size = 0x1000, scoped, tag = 'input window, operand 1, single buffered']
    #allocation3 [shape = 's32[1]{0}', space=sflag, size = 0x4, scoped, tag = 'scoped memory for _lambda_.1']
    #allocation4 [shape = 'u8[16384]{0}', space=vmem, size = 0x4000, scoped, tag = 'input window, operand 2, single buffered']
    #allocation5 [shape = 's32[1]{0}', space=sflag, size = 0x4, scoped, tag = 'scoped memory for _lambda_.1']
    #allocation6 [shape = 'u8[2949120]{0}', space=vmem, size = 0x2d0000, scoped, tag = 'input window, operand 3, single buffered']
    #allocation7 [shape = 'u8[7680]{0}', space=vmem, size = 0x2000, scoped, tag = 'input window, operand 4, single buffered']
    #allocation8 [shape = 's32[1]{0}', space=sflag, size = 0x4, scoped, tag = 'scoped memory for _lambda_.1']
    #allocation9 [shape = 'u8[393216]{0}', space=vmem, size = 0x60000, scoped, tag = 'input window, operand 5, single buffered']
    #allocation10 [shape = 'u8[2048]{0}', space=vmem, size = 0x800, scoped, tag = 'input window, operand 6, single buffered']
    #allocation11 [shape = 's32[1]{0}', space=sflag, size = 0x4, scoped, tag = 'scoped memory for _lambda_.1']
    #allocation12 [shape = 'u8[196608]{0}', space=vmem, size = 0x30000, scoped, tag = 'input window, operand 7, single buffered']
    #allocation13 [shape = 'u8[512]{0}', space=vmem, size = 0x400, scoped, tag = 'input window, operand 8, single buffered']
    #allocation14 [shape = 's32[1]{0}', space=sflag, size = 0x4, scoped, tag = 'scoped memory for _lambda_.1']
    #allocation15 [shape = 'u8[196608]{0}', space=vmem, size = 0x30000, scoped, tag = 'input window, operand 9, single buffered']
    #allocation16 [shape = 'u8[512]{0}', space=vmem, size = 0x400, scoped, tag = 'input window, operand 10, single buffered']
    #allocation17 [shape = 's32[1]{0}', space=sflag, size = 0x4, scoped, tag = 'scoped memory for _lambda_.1']
    #allocation18 [shape = 'u8[65536]{0}', space=vmem, size = 0x10000, scoped, tag = 'input window, operand 11, single buffered']
    #allocation19 [shape = 'u8[512]{0}', space=vmem, size = 0x400, scoped, tag = 'input window, operand 12, single buffered']
    #allocation20 [shape = 's32[1]{0}', space=sflag, size = 0x4, scoped, tag = 'scoped memory for _lambda_.1']
    %18 = vsyncpa [#allocation3], 0
    %19 = vsyncpa [#allocation5], 0
    %20 = vsyncpa [#allocation8], 0
    %21 = vsyncpa [#allocation11], 0
    %22 = vsyncpa [#allocation14], 0
    %23 = vsyncpa [#allocation17], 0
    %24 = vsyncpa [#allocation20], 0
    // Predicated region
    $region2: #{_lambda_.1} parent=1 // pred_check
      _
    $region3: #{_lambda_.1} parent=1 // pred_check_branch
      %26 = sbr.rel (0) target = $region5
    $region4: #{_lambda_.1} parent=1 // pred_region
      _
    $region5: #{_lambda_.1} parent=1 // pred_fallthru
      _
    // Predicated region
    $region6: #{_lambda_.1} parent=1 // pred_check
      _
    $region7: #{_lambda_.1} parent=1 // pred_check_branch
      %28 = sbr.rel (0) target = $region9
    $region8: #{_lambda_.1} parent=1 // pred_region
      %s30 = ssub.s32 128, 128
      %31 = vsyncadd [#allocation3], %s30
      %s33 = sshll.u32 [#allocation2], 4
      %s34 = int_to_ptr.vmem [resolvable:$true] %s33
      %36 = dma.hbm_to_vmem [thread:$0]  %s1, 128, %s34, [#allocation3]
    $region9: #{_lambda_.1} parent=1 // pred_fallthru
      _
    // Predicated region
    $region10: #{_lambda_.1} parent=1 // pred_check
      _
    $region11: #{_lambda_.1} parent=1 // pred_check_branch
      %38 = sbr.rel (0) target = $region13
    $region12: #{_lambda_.1} parent=1 // pred_region
      %s40 = ssub.s32 512, 512
      %41 = vsyncadd [#allocation5], %s40
      %s42 = sshll.u32 [#allocation4], 4
      %s43 = int_to_ptr.vmem [resolvable:$true] %s42
      %48 = dma.hbm_to_vmem [thread:$0]  %s2, 512, %s43, [#allocation5], 128, 128, 8
    $region13: #{_lambda_.1} parent=1 // pred_fallthru
      _
    // Predicated region
    $region14: #{_lambda_.1} parent=1 // pred_check
      _
    $region15: #{_lambda_.1} parent=1 // pred_check_branch
      %50 = sbr.rel (0) target = $region17
    $region16: #{_lambda_.1} parent=1 // pred_region
      %s52 = ssub.s32 92160, 92160
      %53 = vsyncadd [#allocation5], %s52
      %s54 = sshll.u32 [#allocation6], 4
      %s55 = int_to_ptr.vmem [resolvable:$true] %s54
      %60 = dma.hbm_to_vmem [thread:$0]  %s3, 92160, %s55, [#allocation5], 128, 128, 8
    $region17: #{_lambda_.1} parent=1 // pred_fallthru
      _
    // Predicated region
    $region18: #{_lambda_.1} parent=1 // pred_check
      _
    $region19: #{_lambda_.1} parent=1 // pred_check_branch
      %62 = sbr.rel (0) target = $region21
    $region20: #{_lambda_.1} parent=1 // pred_region
      %s64 = ssub.s32 240, 240
      %65 = vsyncadd [#allocation8], %s64
      %s66 = sshll.u32 [#allocation7], 4
      %s67 = int_to_ptr.vmem [resolvable:$true] %s66
      %72 = dma.hbm_to_vmem [thread:$0]  %s4, 240, %s67, [#allocation8], 16, 16, 1
    $region21: #{_lambda_.1} parent=1 // pred_fallthru
      _
    // Predicated region
    $region22: #{_lambda_.1} parent=1 // pred_check
      _
    $region23: #{_lambda_.1} parent=1 // pred_check_branch
      %74 = sbr.rel (0) target = $region25
    $region24: #{_lambda_.1} parent=1 // pred_region
      %s76 = ssub.s32 12288, 12288
      %77 = vsyncadd [#allocation8], %s76
      %s78 = sshll.u32 [#allocation9], 4
      %s79 = int_to_ptr.vmem [resolvable:$true] %s78
      %84 = dma.hbm_to_vmem [thread:$0]  %s5, 12288, %s79, [#allocation8], 128, 128, 8
    $region25: #{_lambda_.1} parent=1 // pred_fallthru
      _
    // Predicated region
    $region26: #{_lambda_.1} parent=1 // pred_check
      _
    $region27: #{_lambda_.1} parent=1 // pred_check_branch
      %86 = sbr.rel (0) target = $region29
    $region28: #{_lambda_.1} parent=1 // pred_region
      %s88 = ssub.s32 64, 64
      %89 = vsyncadd [#allocation11], %s88
      %s90 = sshll.u32 [#allocation10], 4
      %s91 = int_to_ptr.vmem [resolvable:$true] %s90
      %96 = dma.hbm_to_vmem [thread:$0]  %s6, 64, %s91, [#allocation11], 16, 16, 1
    $region29: #{_lambda_.1} parent=1 // pred_fallthru
      _
    // Predicated region
    $region30: #{_lambda_.1} parent=1 // pred_check
      _
    $region31: #{_lambda_.1} parent=1 // pred_check_branch
      %98 = sbr.rel (0) target = $region33
    $region32: #{_lambda_.1} parent=1 // pred_region
      %s100 = ssub.s32 6144, 6144
      %101 = vsyncadd [#allocation11], %s100
      %s102 = sshll.u32 [#allocation12], 4
      %s103 = int_to_ptr.vmem [resolvable:$true] %s102
      %108 = dma.hbm_to_vmem [thread:$0]  %s7, 6144, %s103, [#allocation11], 128, 128, 8
    $region33: #{_lambda_.1} parent=1 // pred_fallthru
      _
    // Predicated region
    $region34: #{_lambda_.1} parent=1 // pred_check
      _
    $region35: #{_lambda_.1} parent=1 // pred_check_branch
      %110 = sbr.rel (0) target = $region37
    $region36: #{_lambda_.1} parent=1 // pred_region
      %s112 = ssub.s32 16, 16
      %113 = vsyncadd [#allocation14], %s112
      %s115 = sshll.u32 [#allocation13], 4
      %s116 = int_to_ptr.vmem [resolvable:$true] %s115
      %118 = dma.hbm_to_vmem [thread:$0]  %s8, 16, %s116, [#allocation14]
    $region37: #{_lambda_.1} parent=1 // pred_fallthru
      _
    // Predicated region
    $region38: #{_lambda_.1} parent=1 // pred_check
      _
    $region39: #{_lambda_.1} parent=1 // pred_check_branch
      %120 = sbr.rel (0) target = $region41
    $region40: #{_lambda_.1} parent=1 // pred_region
      %s122 = ssub.s32 6144, 6144
      %123 = vsyncadd [#allocation14], %s122
      %s124 = sshll.u32 [#allocation15], 4
      %s125 = int_to_ptr.vmem [resolvable:$true] %s124
      %130 = dma.hbm_to_vmem [thread:$0]  %s9, 6144, %s125, [#allocation14], 128, 128, 8
    $region41: #{_lambda_.1} parent=1 // pred_fallthru
      _
    // Predicated region
    $region42: #{_lambda_.1} parent=1 // pred_check
      _
    $region43: #{_lambda_.1} parent=1 // pred_check_branch
      %132 = sbr.rel (0) target = $region45
    $region44: #{_lambda_.1} parent=1 // pred_region
      %s134 = ssub.s32 16, 16
      %135 = vsyncadd [#allocation17], %s134
      %s137 = sshll.u32 [#allocation16], 4
      %s138 = int_to_ptr.vmem [resolvable:$true] %s137
      %140 = dma.hbm_to_vmem [thread:$0]  %s10, 16, %s138, [#allocation17]
    $region45: #{_lambda_.1} parent=1 // pred_fallthru
      _
    // Predicated region
    $region46: #{_lambda_.1} parent=1 // pred_check
      _
    $region47: #{_lambda_.1} parent=1 // pred_check_branch
      %142 = sbr.rel (0) target = $region49
    $region48: #{_lambda_.1} parent=1 // pred_region
      %s144 = ssub.s32 2048, 2048
      %145 = vsyncadd [#allocation17], %s144
      %s146 = sshll.u32 [#allocation18], 4
      %s147 = int_to_ptr.vmem [resolvable:$true] %s146
      %152 = dma.hbm_to_vmem [thread:$0]  %s11, 2048, %s147, [#allocation17], 128, 128, 8
    $region49: #{_lambda_.1} parent=1 // pred_fallthru
      _
    // Predicated region
    $region50: #{_lambda_.1} parent=1 // pred_check
      _
    $region51: #{_lambda_.1} parent=1 // pred_check_branch
      %154 = sbr.rel (0) target = $region53
    $region52: #{_lambda_.1} parent=1 // pred_region
      %s156 = ssub.s32 16, 16
      %157 = vsyncadd [#allocation20], %s156
      %s159 = sshll.u32 [#allocation19], 4
      %s160 = int_to_ptr.vmem [resolvable:$true] %s159
      %162 = dma.hbm_to_vmem [thread:$0]  %s12, 16, %s160, [#allocation20]
    $region53: #{_lambda_.1} parent=1 // pred_fallthru
      _
    // Predicated region
    $region54: #{_lambda_.1} parent=1 // pred_check
      _
    $region55: #{_lambda_.1} parent=1 // pred_check_branch
      %164 = sbr.rel (0) target = $region57
    $region56: #{_lambda_.1} parent=1 // pred_region
      %165 = dma.done [#allocation3], 128
    $region57: #{_lambda_.1} parent=1 // pred_fallthru
      _
    // Predicated region
    $region58: #{_lambda_.1} parent=1 // pred_check
      _
    $region59: #{_lambda_.1} parent=1 // pred_check_branch
      %167 = sbr.rel (0) target = $region61
    $region60: #{_lambda_.1} parent=1 // pred_region
      %168 = dma.done [#allocation5], 512
    $region61: #{_lambda_.1} parent=1 // pred_fallthru
      _
    // Predicated region
    $region62: #{_lambda_.1} parent=1 // pred_check
      _
    $region63: #{_lambda_.1} parent=1 // pred_check_branch
      %170 = sbr.rel (0) target = $region65
    $region64: #{_lambda_.1} parent=1 // pred_region
      %171 = dma.done [#allocation5], 92160
    $region65: #{_lambda_.1} parent=1 // pred_fallthru
      _
    // Predicated region
    $region66: #{_lambda_.1} parent=1 // pred_check
      _
    $region67: #{_lambda_.1} parent=1 // pred_check_branch
      %173 = sbr.rel (0) target = $region69
    $region68: #{_lambda_.1} parent=1 // pred_region
      %174 = dma.done [#allocation8], 240
    $region69: #{_lambda_.1} parent=1 // pred_fallthru
      _
    // Predicated region
    $region70: #{_lambda_.1} parent=1 // pred_check
      _
    $region71: #{_lambda_.1} parent=1 // pred_check_branch
      %176 = sbr.rel (0) target = $region73
    $region72: #{_lambda_.1} parent=1 // pred_region
      %177 = dma.done [#allocation8], 12288
    $region73: #{_lambda_.1} parent=1 // pred_fallthru
      _
    // Predicated region
    $region74: #{_lambda_.1} parent=1 // pred_check
      _
    $region75: #{_lambda_.1} parent=1 // pred_check_branch
      %179 = sbr.rel (0) target = $region77
    $region76: #{_lambda_.1} parent=1 // pred_region
      %180 = dma.done [#allocation11], 64
    $region77: #{_lambda_.1} parent=1 // pred_fallthru
      _
    // Predicated region
    $region78: #{_lambda_.1} parent=1 // pred_check
      _
    $region79: #{_lambda_.1} parent=1 // pred_check_branch
      %182 = sbr.rel (0) target = $region81
    $region80: #{_lambda_.1} parent=1 // pred_region
      %183 = dma.done [#allocation11], 6144
    $region81: #{_lambda_.1} parent=1 // pred_fallthru
      _
    // Predicated region
    $region82: #{_lambda_.1} parent=1 // pred_check
      _
    $region83: #{_lambda_.1} parent=1 // pred_check_branch
      %185 = sbr.rel (0) target = $region85
    $region84: #{_lambda_.1} parent=1 // pred_region
      %186 = dma.done [#allocation14], 16
    $region85: #{_lambda_.1} parent=1 // pred_fallthru
      _
    // Predicated region
    $region86: #{_lambda_.1} parent=1 // pred_check
      _
    $region87: #{_lambda_.1} parent=1 // pred_check_branch
      %188 = sbr.rel (0) target = $region89
    $region88: #{_lambda_.1} parent=1 // pred_region
      %189 = dma.done [#allocation14], 6144
    $region89: #{_lambda_.1} parent=1 // pred_fallthru
      _
    // Predicated region
    $region90: #{_lambda_.1} parent=1 // pred_check
      _
    $region91: #{_lambda_.1} parent=1 // pred_check_branch
      %191 = sbr.rel (0) target = $region93
    $region92: #{_lambda_.1} parent=1 // pred_region
      %192 = dma.done [#allocation17], 16
    $region93: #{_lambda_.1} parent=1 // pred_fallthru
      _
    // Predicated region
    $region94: #{_lambda_.1} parent=1 // pred_check
      _
    $region95: #{_lambda_.1} parent=1 // pred_check_branch
      %194 = sbr.rel (0) target = $region97
    $region96: #{_lambda_.1} parent=1 // pred_region
      %195 = dma.done [#allocation17], 2048
    $region97: #{_lambda_.1} parent=1 // pred_fallthru
      _
    // Predicated region
    $region98: #{_lambda_.1} parent=1 // pred_check
      _
    $region99: #{_lambda_.1} parent=1 // pred_check_branch
      %197 = sbr.rel (0) target = $region101
    $region100: #{_lambda_.1} parent=1 // pred_region
      %198 = dma.done [#allocation20], 16
    $region101: #{_lambda_.1} parent=1 // pred_fallthru
      _
    %v199 = vld [vmem:[%s0] sm:$0xff]
    %v200 = vld [vmem:[%s0 + $0x8] sm:$0xff]
    %vm203 = vcmask 1040384
    %v204 = vrot.slane %v199, 7
    %v205 = vrot.slane %v200, 7
    %v206 = vsel %vm203, %v204, %v205
    %v209 = vsel %vm203, 0.0, %v204
    %vm210 = vcmask 1046528
    %v211 = vrot.slane %v199, 1
    %v212 = vrot.slane %v200, 1
    %v213 = vsel %vm210, %v211, %v212
    %v216 = vsel %vm210, %v212, 0.0
    %v217 = vld [vmem:[#allocation6] sm:$0xff]
    %v218 = vld [vmem:[#allocation6 + $0x8] sm:$0xff]
    %v219 = vld [vmem:[#allocation6 + $0x10] sm:$0xff]
    %v220 = vld [vmem:[#allocation6 + $0x18] sm:$0xff]
    %v221 = vld [vmem:[#allocation6 + $0x20] sm:$0xff]
    %v222 = vld [vmem:[#allocation6 + $0x28] sm:$0xff]
    %v223 = vld [vmem:[#allocation6 + $0x30] sm:$0xff]
    %v224 = vld [vmem:[#allocation6 + $0x38] sm:$0xff]
    %v225 = vld [vmem:[#allocation6 + $0x40] sm:$0xff]
    %v226 = vld [vmem:[#allocation6 + $0x48] sm:$0xff]
    %v227 = vld [vmem:[#allocation6 + $0x50] sm:$0xff]
    %v228 = vld [vmem:[#allocation6 + $0x58] sm:$0xff]
    %v229 = vld [vmem:[#allocation6 + $0x60] sm:$0xff]
    %v230 = vld [vmem:[#allocation6 + $0x68] sm:$0xff]
    %v231 = vld [vmem:[#allocation6 + $0x70] sm:$0xff]
    %v232 = vld [vmem:[#allocation6 + $0x78] sm:$0xff]
    %v233 = vld [vmem:[#allocation6 + $0x80] sm:$0xff]
    %v234 = vld [vmem:[#allocation6 + $0x88] sm:$0xff]
    %v235 = vld [vmem:[#allocation6 + $0x90] sm:$0xff]
    %v236 = vld [vmem:[#allocation6 + $0x98] sm:$0xff]
    %v237 = vld [vmem:[#allocation6 + $0xa0] sm:$0xff]
    %v238 = vld [vmem:[#allocation6 + $0xa8] sm:$0xff]
    %v239 = vld [vmem:[#allocation6 + $0xb0] sm:$0xff]
    %v240 = vld [vmem:[#allocation6 + $0xb8] sm:$0xff]
    %v241 = vld [vmem:[#allocation6 + $0xc0] sm:$0xff]
    %v242 = vld [vmem:[#allocation6 + $0xc8] sm:$0xff]
    %v243 = vld [vmem:[#allocation6 + $0xd0] sm:$0xff]
    %v244 = vld [vmem:[#allocation6 + $0xd8] sm:$0xff]
    %v245 = vld [vmem:[#allocation6 + $0xe0] sm:$0xff]
    %v246 = vld [vmem:[#allocation6 + $0xe8] sm:$0xff]
    %v247 = vld [vmem:[#allocation6 + $0xf0] sm:$0xff]
    %v248 = vld [vmem:[#allocation6 + $0xf8] sm:$0xff]
    %v249 = vld [vmem:[#allocation6 + $0x100] sm:$0xff]
    %v250 = vld [vmem:[#allocation6 + $0x108] sm:$0xff]
    %v251 = vld [vmem:[#allocation6 + $0x110] sm:$0xff]
    %v252 = vld [vmem:[#allocation6 + $0x118] sm:$0xff]
    %v253 = vld [vmem:[#allocation6 + $0x120] sm:$0xff]
    %v254 = vld [vmem:[#allocation6 + $0x128] sm:$0xff]
    %v255 = vld [vmem:[#allocation6 + $0x130] sm:$0xff]
    %v256 = vld [vmem:[#allocation6 + $0x138] sm:$0xff]
    %v257 = vld [vmem:[#allocation6 + $0x140] sm:$0xff]
    %v258 = vld [vmem:[#allocation6 + $0x148] sm:$0xff]
    %v259 = vld [vmem:[#allocation6 + $0x150] sm:$0xff]
    %v260 = vld [vmem:[#allocation6 + $0x158] sm:$0xff]
    %v261 = vld [vmem:[#allocation6 + $0x160] sm:$0xff]
    %v262 = vld [vmem:[#allocation6 + $0x168] sm:$0xff]
    %v263 = vld [vmem:[#allocation6 + $0x170] sm:$0xff]
    %v264 = vld [vmem:[#allocation6 + $0x178] sm:$0xff]
    %v265 = vld [vmem:[#allocation7] sm:$0x1]
    %v267 = vlaneseq
    %v268 = vshrl.u32 %v267, 7
    %v269 = vsub.s32 0, %v268
    %v270 = vrot.slane %v265, %v269
    %272 = vmatprep.subr.mxu0 0.0
    %273 = vmatpush1.msra.mxu0 %v217
    %274 = vmatprep.subr.mxu0 0.0
    %275 = vmatpush1.msra.mxu0 %v218
    %276 = vmatprep.subr.mxu0 0.0
    %277 = vmatpush1.msra.mxu0 %v219
    %278 = vmatprep.subr.mxu0 0.0
    %279 = vmatpush1.msra.mxu0 %v220
    %280 = vmatprep.subr.mxu0 0.0
    %281 = vmatpush1.msra.mxu0 %v221
    %282 = vmatprep.subr.mxu0 0.0
    %283 = vmatpush1.msra.mxu0 %v222
    %284 = vmatprep.subr.mxu0 0.0
    %285 = vmatpush1.msra.mxu0 %v223
    %286 = vmatprep.subr.mxu0 0.0
    %287 = vmatpush1.msra.mxu0 %v224
    %288 = vmatprep.subr.mxu0 0.0
    %289 = vmatpush1.msra.mxu0 %v225
    %290 = vmatprep.subr.mxu0 0.0
    %291 = vmatpush1.msra.mxu0 %v226
    %292 = vmatprep.subr.mxu0 0.0
    %293 = vmatpush1.msra.mxu0 %v227
    %294 = vmatprep.subr.mxu0 0.0
    %295 = vmatpush1.msra.mxu0 %v228
    %296 = vmatprep.subr.mxu0 0.0
    %297 = vmatpush1.msra.mxu0 %v229
    %298 = vmatprep.subr.mxu0 0.0
    %299 = vmatpush1.msra.mxu0 %v230
    %300 = vmatprep.subr.mxu0 0.0
    %301 = vmatpush1.msra.mxu0 %v231
    %302 = vmatprep.subr.mxu0 0.0
    %303 = vmatpush1.msra.mxu0 %v232
    %304 = vmatprep.subr.mxu0 0.0
    %305 = vmatpush1.msra.mxu0 %v233
    %306 = vmatprep.subr.mxu0 0.0
    %307 = vmatpush1.msra.mxu0 %v234
    %308 = vmatprep.subr.mxu0 0.0
    %309 = vmatpush1.msra.mxu0 %v235
    %310 = vmatprep.subr.mxu0 0.0
    %311 = vmatpush1.msra.mxu0 %v236
    %312 = vmatprep.subr.mxu0 0.0
    %313 = vmatpush1.msra.mxu0 %v237
    %314 = vmatprep.subr.mxu0 0.0
    %315 = vmatpush1.msra.mxu0 %v238
    %316 = vmatprep.subr.mxu0 0.0
    %317 = vmatpush1.msra.mxu0 %v239
    %318 = vmatprep.subr.mxu0 0.0
    %319 = vmatpush1.msra.mxu0 %v240
    %320 = vmatprep.subr.mxu0 0.0
    %321 = vmatpush1.msra.mxu0 %v241
    %322 = vmatprep.subr.mxu0 0.0
    %323 = vmatpush1.msra.mxu0 %v242
    %324 = vmatprep.subr.mxu0 0.0
    %325 = vmatpush1.msra.mxu0 %v243
    %326 = vmatprep.subr.mxu0 0.0
    %327 = vmatpush1.msra.mxu0 %v244
    %328 = vmatprep.subr.mxu0 0.0
    %329 = vmatpush1.msra.mxu0 %v245
    %330 = vmatprep.subr.mxu0 0.0
    %331 = vmatpush1.msra.mxu0 %v246
    %332 = vmatprep.subr.mxu0 0.0
    %333 = vmatpush1.msra.mxu0 %v247
    %334 = vmatprep.subr.mxu0 0.0
    %335 = vmatpush1.msra.mxu0 %v248
    %336 = vmatprep.mubr.f32.mxu0 %v199
    %337 = vmatmul.mubr.f32.gmra.mrb[0].mxu0 %v209
    %v338 = vpop.f32.mrb[0].mxu0
    %v339 = vadd.f32 %v270, %v338
    %v340 = vpop.f32.mrb[0].mxu0
    %341 = vmatprep.mubr.f32.mxu0 %v200
    %342 = vmatmul.mubr.f32.gmra.mrb[0].mxu0 %v206
    %v343 = vpop.f32.mrb[0].mxu0
    %v344 = vadd.f32 %v270, %v343
    %v345 = vpop.f32.mrb[0].mxu0
    %346 = vdwg.mxu0
    %347 = vmatprep.subr.mxu0 0.0
    %348 = vmatpush1.msra.mxu0 %v249
    %349 = vmatprep.subr.mxu0 0.0
    %350 = vmatpush1.msra.mxu0 %v250
    %351 = vmatprep.subr.mxu0 0.0
    %352 = vmatpush1.msra.mxu0 %v251
    %353 = vmatprep.subr.mxu0 0.0
    %354 = vmatpush1.msra.mxu0 %v252
    %355 = vmatprep.subr.mxu0 0.0
    %356 = vmatpush1.msra.mxu0 %v253
    %357 = vmatprep.subr.mxu0 0.0
    %358 = vmatpush1.msra.mxu0 %v254
    %359 = vmatprep.subr.mxu0 0.0
    %360 = vmatpush1.msra.mxu0 %v255
    %361 = vmatprep.subr.mxu0 0.0
    %362 = vmatpush1.msra.mxu0 %v256
    %363 = vmatprep.subr.mxu0 0.0
    %364 = vmatpush1.msra.mxu0 %v257
    %365 = vmatprep.subr.mxu0 0.0
    %366 = vmatpush1.msra.mxu0 %v258
    %367 = vmatprep.subr.mxu0 0.0
    %368 = vmatpush1.msra.mxu0 %v259
    %369 = vmatprep.subr.mxu0 0.0
    %370 = vmatpush1.msra.mxu0 %v260
    %371 = vmatprep.subr.mxu0 0.0
    %372 = vmatpush1.msra.mxu0 %v261
    %373 = vmatprep.subr.mxu0 0.0
    %374 = vmatpush1.msra.mxu0 %v262
    %375 = vmatprep.subr.mxu0 0.0
    %376 = vmatpush1.msra.mxu0 %v263
    %377 = vmatprep.subr.mxu0 0.0
    %378 = vmatpush1.msra.mxu0 %v264
    %379 = vmatprep.subr.mxu0 0.0
    %380 = vmatpush1.msra.mxu0 0.0
    %381 = vmatprep.subr.mxu0 0.0
    %382 = vmatpush1.msra.mxu0 0.0
    %383 = vmatprep.subr.mxu0 0.0
    %384 = vmatpush1.msra.mxu0 0.0
    %385 = vmatprep.subr.mxu0 0.0
    %386 = vmatpush1.msra.mxu0 0.0
    %387 = vmatprep.subr.mxu0 0.0
    %388 = vmatpush1.msra.mxu0 0.0
    %389 = vmatprep.subr.mxu0 0.0
    %390 = vmatpush1.msra.mxu0 0.0
    %391 = vmatprep.subr.mxu0 0.0
    %392 = vmatpush1.msra.mxu0 0.0
    %393 = vmatprep.subr.mxu0 0.0
    %394 = vmatpush1.msra.mxu0 0.0
    %395 = vmatprep.subr.mxu0 0.0
    %396 = vmatpush1.msra.mxu0 0.0
    %397 = vmatprep.subr.mxu0 0.0
    %398 = vmatpush1.msra.mxu0 0.0
    %399 = vmatprep.subr.mxu0 0.0
    %400 = vmatpush1.msra.mxu0 0.0
    %401 = vmatprep.subr.mxu0 0.0
    %402 = vmatpush1.msra.mxu0 0.0
    %403 = vmatprep.subr.mxu0 0.0
    %404 = vmatpush1.msra.mxu0 0.0
    %405 = vmatprep.subr.mxu0 0.0
    %406 = vmatpush1.msra.mxu0 0.0
    %407 = vmatprep.subr.mxu0 0.0
    %408 = vmatpush1.msra.mxu0 0.0
    %409 = vmatprep.subr.mxu0 0.0
    %410 = vmatpush1.msra.mxu0 0.0
    %411 = vmatprep.mubr.f32.mxu0 0.0
    %412 = vmatmul.mubr.f32.gmra.mrb[0].mxu0 %v213
    %v413 = vpop.f32.mrb[0].mxu0
    %v414 = vadd.f32 %v339, %v413
    %v415 = vpop.f32.mrb[0].mxu0
    %416 = vmatprep.mubr.f32.mxu0 0.0
    %417 = vmatmul.mubr.f32.gmra.mrb[0].mxu0 %v216
    %v418 = vpop.f32.mrb[0].mxu0
    %v419 = vadd.f32 %v344, %v418
    %v420 = vpop.f32.mrb[0].mxu0
    %421 = vdwg.mxu0
    %v422 = vmax.f32 %v414, 0.0
    %v423 = vmax.f32 %v419, 0.0
    %v426 = vrot.slane %v422, 7
    %v427 = vrot.slane %v423, 7
    %v428 = vsel %vm203, %v426, %v427
    %v431 = vsel %vm203, 0.0, %v426
    %v432 = vrot.slane %v422, 1
    %v433 = vrot.slane %v423, 1
    %v434 = vsel %vm210, %v432, %v433
    %v437 = vsel %vm210, %v433, 0.0
    %s438 = scalar_lea.vmem [#allocation6], 384
    %v439 = vld [vmem:[%s438] sm:$0xff]
    %v440 = vld [vmem:[%s438 + $0x8] sm:$0xff]
    %v441 = vld [vmem:[%s438 + $0x10] sm:$0xff]
    %v442 = vld [vmem:[%s438 + $0x18] sm:$0xff]
    %v443 = vld [vmem:[%s438 + $0x20] sm:$0xff]
    %v444 = vld [vmem:[%s438 + $0x28] sm:$0xff]
    %v445 = vld [vmem:[%s438 + $0x30] sm:$0xff]
    %v446 = vld [vmem:[%s438 + $0x38] sm:$0xff]
    %v447 = vld [vmem:[%s438 + $0x40] sm:$0xff]
    %v448 = vld [vmem:[%s438 + $0x48] sm:$0xff]
    %v449 = vld [vmem:[%s438 + $0x50] sm:$0xff]
    %v450 = vld [vmem:[%s438 + $0x58] sm:$0xff]
    %v451 = vld [vmem:[%s438 + $0x60] sm:$0xff]
    %v452 = vld [vmem:[%s438 + $0x68] sm:$0xff]
    %v453 = vld [vmem:[%s438 + $0x70] sm:$0xff]
    %v454 = vld [vmem:[%s438 + $0x78] sm:$0xff]
    %v455 = vld [vmem:[%s438 + $0x80] sm:$0xff]
    %v456 = vld [vmem:[%s438 + $0x88] sm:$0xff]
    %v457 = vld [vmem:[%s438 + $0x90] sm:$0xff]
    %v458 = vld [vmem:[%s438 + $0x98] sm:$0xff]
    %v459 = vld [vmem:[%s438 + $0xa0] sm:$0xff]
    %v460 = vld [vmem:[%s438 + $0xa8] sm:$0xff]
    %v461 = vld [vmem:[%s438 + $0xb0] sm:$0xff]
    %v462 = vld [vmem:[%s438 + $0xb8] sm:$0xff]
    %v463 = vld [vmem:[%s438 + $0xc0] sm:$0xff]
    %v464 = vld [vmem:[%s438 + $0xc8] sm:$0xff]
    %v465 = vld [vmem:[%s438 + $0xd0] sm:$0xff]
    %v466 = vld [vmem:[%s438 + $0xd8] sm:$0xff]
    %v467 = vld [vmem:[%s438 + $0xe0] sm:$0xff]
    %v468 = vld [vmem:[%s438 + $0xe8] sm:$0xff]
    %v469 = vld [vmem:[%s438 + $0xf0] sm:$0xff]
    %v470 = vld [vmem:[%s438 + $0xf8] sm:$0xff]
    %v471 = vld [vmem:[%s438 + $0x100] sm:$0xff]
    %v472 = vld [vmem:[%s438 + $0x108] sm:$0xff]
    %v473 = vld [vmem:[%s438 + $0x110] sm:$0xff]
    %v474 = vld [vmem:[%s438 + $0x118] sm:$0xff]
    %v475 = vld [vmem:[%s438 + $0x120] sm:$0xff]
    %v476 = vld [vmem:[%s438 + $0x128] sm:$0xff]
    %v477 = vld [vmem:[%s438 + $0x130] sm:$0xff]
    %v478 = vld [vmem:[%s438 + $0x138] sm:$0xff]
    %v479 = vld [vmem:[%s438 + $0x140] sm:$0xff]
    %v480 = vld [vmem:[%s438 + $0x148] sm:$0xff]
    %v481 = vld [vmem:[%s438 + $0x150] sm:$0xff]
    %v482 = vld [vmem:[%s438 + $0x158] sm:$0xff]
    %v483 = vld [vmem:[%s438 + $0x160] sm:$0xff]
    %v484 = vld [vmem:[%s438 + $0x168] sm:$0xff]
    %v485 = vld [vmem:[%s438 + $0x170] sm:$0xff]
    %v486 = vld [vmem:[%s438 + $0x178] sm:$0xff]
    %s487 = scalar_lea.vmem [#allocation7], 1
    %v488 = vld [vmem:[%s487] sm:$0x1]
    %v490 = vlaneseq
    %v491 = vshrl.u32 %v490, 7
    %v492 = vsub.s32 0, %v491
    %v493 = vrot.slane %v488, %v492
    %495 = vmatprep.subr.mxu0 0.0
    %496 = vmatpush1.msra.mxu0 %v439
    %497 = vmatprep.subr.mxu0 0.0
    %498 = vmatpush1.msra.mxu0 %v440
    %499 = vmatprep.subr.mxu0 0.0
    %500 = vmatpush1.msra.mxu0 %v441
    %501 = vmatprep.subr.mxu0 0.0
    %502 = vmatpush1.msra.mxu0 %v442
    %503 = vmatprep.subr.mxu0 0.0
    %504 = vmatpush1.msra.mxu0 %v443
    %505 = vmatprep.subr.mxu0 0.0
    %506 = vmatpush1.msra.mxu0 %v444
    %507 = vmatprep.subr.mxu0 0.0
    %508 = vmatpush1.msra.mxu0 %v445
    %509 = vmatprep.subr.mxu0 0.0
    %510 = vmatpush1.msra.mxu0 %v446
    %511 = vmatprep.subr.mxu0 0.0
    %512 = vmatpush1.msra.mxu0 %v447
    %513 = vmatprep.subr.mxu0 0.0
    %514 = vmatpush1.msra.mxu0 %v448
    %515 = vmatprep.subr.mxu0 0.0
    %516 = vmatpush1.msra.mxu0 %v449
    %517 = vmatprep.subr.mxu0 0.0
    %518 = vmatpush1.msra.mxu0 %v450
    %519 = vmatprep.subr.mxu0 0.0
    %520 = vmatpush1.msra.mxu0 %v451
    %521 = vmatprep.subr.mxu0 0.0
    %522 = vmatpush1.msra.mxu0 %v452
    %523 = vmatprep.subr.mxu0 0.0
    %524 = vmatpush1.msra.mxu0 %v453
    %525 = vmatprep.subr.mxu0 0.0
    %526 = vmatpush1.msra.mxu0 %v454
    %527 = vmatprep.subr.mxu0 0.0
    %528 = vmatpush1.msra.mxu0 %v455
    %529 = vmatprep.subr.mxu0 0.0
    %530 = vmatpush1.msra.mxu0 %v456
    %531 = vmatprep.subr.mxu0 0.0
    %532 = vmatpush1.msra.mxu0 %v457
    %533 = vmatprep.subr.mxu0 0.0
    %534 = vmatpush1.msra.mxu0 %v458
    %535 = vmatprep.subr.mxu0 0.0
    %536 = vmatpush1.msra.mxu0 %v459
    %537 = vmatprep.subr.mxu0 0.0
    %538 = vmatpush1.msra.mxu0 %v460
    %539 = vmatprep.subr.mxu0 0.0
    %540 = vmatpush1.msra.mxu0 %v461
    %541 = vmatprep.subr.mxu0 0.0
    %542 = vmatpush1.msra.mxu0 %v462
    %543 = vmatprep.subr.mxu0 0.0
    %544 = vmatpush1.msra.mxu0 %v463
    %545 = vmatprep.subr.mxu0 0.0
    %546 = vmatpush1.msra.mxu0 %v464
    %547 = vmatprep.subr.mxu0 0.0
    %548 = vmatpush1.msra.mxu0 %v465
    %549 = vmatprep.subr.mxu0 0.0
    %550 = vmatpush1.msra.mxu0 %v466
    %551 = vmatprep.subr.mxu0 0.0
    %552 = vmatpush1.msra.mxu0 %v467
    %553 = vmatprep.subr.mxu0 0.0
    %554 = vmatpush1.msra.mxu0 %v468
    %555 = vmatprep.subr.mxu0 0.0
    %556 = vmatpush1.msra.mxu0 %v469
    %557 = vmatprep.subr.mxu0 0.0
    %558 = vmatpush1.msra.mxu0 %v470
    %559 = vmatprep.mubr.f32.mxu0 %v422
    %560 = vmatmul.mubr.f32.gmra.mrb[0].mxu0 %v431
    %v561 = vpop.f32.mrb[0].mxu0
    %v562 = vadd.f32 %v493, %v561
    %v563 = vpop.f32.mrb[0].mxu0
    %564 = vmatprep.mubr.f32.mxu0 %v423
    %565 = vmatmul.mubr.f32.gmra.mrb[0].mxu0 %v428
    %v566 = vpop.f32.mrb[0].mxu0
    %v567 = vadd.f32 %v493, %v566
    %v568 = vpop.f32.mrb[0].mxu0
    %569 = vdwg.mxu0
    %570 = vmatprep.subr.mxu0 0.0
    %571 = vmatpush1.msra.mxu0 %v471
    %572 = vmatprep.subr.mxu0 0.0
    %573 = vmatpush1.msra.mxu0 %v472
    %574 = vmatprep.subr.mxu0 0.0
    %575 = vmatpush1.msra.mxu0 %v473
    %576 = vmatprep.subr.mxu0 0.0
    %577 = vmatpush1.msra.mxu0 %v474
    %578 = vmatprep.subr.mxu0 0.0
    %579 = vmatpush1.msra.mxu0 %v475
    %580 = vmatprep.subr.mxu0 0.0
    %581 = vmatpush1.msra.mxu0 %v476
    %582 = vmatprep.subr.mxu0 0.0
    %583 = vmatpush1.msra.mxu0 %v477
    %584 = vmatprep.subr.mxu0 0.0
    %585 = vmatpush1.msra.mxu0 %v478
    %586 = vmatprep.subr.mxu0 0.0
    %587 = vmatpush1.msra.mxu0 %v479
    %588 = vmatprep.subr.mxu0 0.0
    %589 = vmatpush1.msra.mxu0 %v480
    %590 = vmatprep.subr.mxu0 0.0
    %591 = vmatpush1.msra.mxu0 %v481
    %592 = vmatprep.subr.mxu0 0.0
    %593 = vmatpush1.msra.mxu0 %v482
    %594 = vmatprep.subr.mxu0 0.0
    %595 = vmatpush1.msra.mxu0 %v483
    %596 = vmatprep.subr.mxu0 0.0
    %597 = vmatpush1.msra.mxu0 %v484
    %598 = vmatprep.subr.mxu0 0.0
    %599 = vmatpush1.msra.mxu0 %v485
    %600 = vmatprep.subr.mxu0 0.0
    %601 = vmatpush1.msra.mxu0 %v486
    %602 = vmatprep.subr.mxu0 0.0
    %603 = vmatpush1.msra.mxu0 0.0
    %604 = vmatprep.subr.mxu0 0.0
    %605 = vmatpush1.msra.mxu0 0.0
    %606 = vmatprep.subr.mxu0 0.0
    %607 = vmatpush1.msra.mxu0 0.0
    %608 = vmatprep.subr.mxu0 0.0
    %609 = vmatpush1.msra.mxu0 0.0
    %610 = vmatprep.subr.mxu0 0.0
    %611 = vmatpush1.msra.mxu0 0.0
    %612 = vmatprep.subr.mxu0 0.0
    %613 = vmatpush1.msra.mxu0 0.0
    %614 = vmatprep.subr.mxu0 0.0
    %615 = vmatpush1.msra.mxu0 0.0
    %616 = vmatprep.subr.mxu0 0.0
    %617 = vmatpush1.msra.mxu0 0.0
    %618 = vmatprep.subr.mxu0 0.0
    %619 = vmatpush1.msra.mxu0 0.0
    %620 = vmatprep.subr.mxu0 0.0
    %621 = vmatpush1.msra.mxu0 0.0
    %622 = vmatprep.subr.mxu0 0.0
    %623 = vmatpush1.msra.mxu0 0.0
    %624 = vmatprep.subr.mxu0 0.0
    %625 = vmatpush1.msra.mxu0 0.0
    %626 = vmatprep.subr.mxu0 0.0
    %627 = vmatpush1.msra.mxu0 0.0
    %628 = vmatprep.subr.mxu0 0.0
    %629 = vmatpush1.msra.mxu0 0.0
    %630 = vmatprep.subr.mxu0 0.0
    %631 = vmatpush1.msra.mxu0 0.0
    %632 = vmatprep.subr.mxu0 0.0
    %633 = vmatpush1.msra.mxu0 0.0
    %634 = vmatprep.mubr.f32.mxu0 0.0
    %635 = vmatmul.mubr.f32.gmra.mrb[0].mxu0 %v434
    %v636 = vpop.f32.mrb[0].mxu0
    %v637 = vadd.f32 %v562, %v636
    %v638 = vpop.f32.mrb[0].mxu0
    %639 = vmatprep.mubr.f32.mxu0 0.0
    %640 = vmatmul.mubr.f32.gmra.mrb[0].mxu0 %v437
    %v641 = vpop.f32.mrb[0].mxu0
    %v642 = vadd.f32 %v567, %v641
    %v643 = vpop.f32.mrb[0].mxu0
    %644 = vdwg.mxu0
    %v645 = vadd.f32 %v637, %v199
    %v646 = vadd.f32 %v642, %v200
    %v649 = vrot.slane %v645, 7
    %v650 = vrot.slane %v646, 7
    %v651 = vsel %vm203, %v649, %v650
    %v654 = vsel %vm203, 0.0, %v649
    %v655 = vrot.slane %v645, 1
    %v656 = vrot.slane %v646, 1
    %v657 = vsel %vm210, %v655, %v656
    %v660 = vsel %vm210, %v656, 0.0
    %s661 = scalar_lea.vmem [#allocation6], 768
    %v662 = vld [vmem:[%s661] sm:$0xff]
    %v663 = vld [vmem:[%s661 + $0x8] sm:$0xff]
    %v664 = vld [vmem:[%s661 + $0x10] sm:$0xff]
    %v665 = vld [vmem:[%s661 + $0x18] sm:$0xff]
    %v666 = vld [vmem:[%s661 + $0x20] sm:$0xff]
    %v667 = vld [vmem:[%s661 + $0x28] sm:$0xff]
    %v668 = vld [vmem:[%s661 + $0x30] sm:$0xff]
    %v669 = vld [vmem:[%s661 + $0x38] sm:$0xff]
    %v670 = vld [vmem:[%s661 + $0x40] sm:$0xff]
    %v671 = vld [vmem:[%s661 + $0x48] sm:$0xff]
    %v672 = vld [vmem:[%s661 + $0x50] sm:$0xff]
    %v673 = vld [vmem:[%s661 + $0x58] sm:$0xff]
    %v674 = vld [vmem:[%s661 + $0x60] sm:$0xff]
    %v675 = vld [vmem:[%s661 + $0x68] sm:$0xff]
    %v676 = vld [vmem:[%s661 + $0x70] sm:$0xff]
    %v677 = vld [vmem:[%s661 + $0x78] sm:$0xff]
    %v678 = vld [vmem:[%s661 + $0x80] sm:$0xff]
    %v679 = vld [vmem:[%s661 + $0x88] sm:$0xff]
    %v680 = vld [vmem:[%s661 + $0x90] sm:$0xff]
    %v681 = vld [vmem:[%s661 + $0x98] sm:$0xff]
    %v682 = vld [vmem:[%s661 + $0xa0] sm:$0xff]
    %v683 = vld [vmem:[%s661 + $0xa8] sm:$0xff]
    %v684 = vld [vmem:[%s661 + $0xb0] sm:$0xff]
    %v685 = vld [vmem:[%s661 + $0xb8] sm:$0xff]
    %v686 = vld [vmem:[%s661 + $0xc0] sm:$0xff]
    %v687 = vld [vmem:[%s661 + $0xc8] sm:$0xff]
    %v688 = vld [vmem:[%s661 + $0xd0] sm:$0xff]
    %v689 = vld [vmem:[%s661 + $0xd8] sm:$0xff]
    %v690 = vld [vmem:[%s661 + $0xe0] sm:$0xff]
    %v691 = vld [vmem:[%s661 + $0xe8] sm:$0xff]
    %v692 = vld [vmem:[%s661 + $0xf0] sm:$0xff]
    %v693 = vld [vmem:[%s661 + $0xf8] sm:$0xff]
    %v694 = vld [vmem:[%s661 + $0x100] sm:$0xff]
    %v695 = vld [vmem:[%s661 + $0x108] sm:$0xff]
    %v696 = vld [vmem:[%s661 + $0x110] sm:$0xff]
    %v697 = vld [vmem:[%s661 + $0x118] sm:$0xff]
    %v698 = vld [vmem:[%s661 + $0x120] sm:$0xff]
    %v699 = vld [vmem:[%s661 + $0x128] sm:$0xff]
    %v700 = vld [vmem:[%s661 + $0x130] sm:$0xff]
    %v701 = vld [vmem:[%s661 + $0x138] sm:$0xff]
    %v702 = vld [vmem:[%s661 + $0x140] sm:$0xff]
    %v703 = vld [vmem:[%s661 + $0x148] sm:$0xff]
    %v704 = vld [vmem:[%s661 + $0x150] sm:$0xff]
    %v705 = vld [vmem:[%s661 + $0x158] sm:$0xff]
    %v706 = vld [vmem:[%s661 + $0x160] sm:$0xff]
    %v707 = vld [vmem:[%s661 + $0x168] sm:$0xff]
    %v708 = vld [vmem:[%s661 + $0x170] sm:$0xff]
    %v709 = vld [vmem:[%s661 + $0x178] sm:$0xff]
    %s710 = scalar_lea.vmem [#allocation7], 2
    %v711 = vld [vmem:[%s710] sm:$0x1]
    %v713 = vlaneseq
    %v714 = vshrl.u32 %v713, 7
    %v715 = vsub.s32 0, %v714
    %v716 = vrot.slane %v711, %v715
    %718 = vmatprep.subr.mxu0 0.0
    %719 = vmatpush1.msra.mxu0 %v662
    %720 = vmatprep.subr.mxu0 0.0
    %721 = vmatpush1.msra.mxu0 %v663
    %722 = vmatprep.subr.mxu0 0.0
    %723 = vmatpush1.msra.mxu0 %v664
    %724 = vmatprep.subr.mxu0 0.0
    %725 = vmatpush1.msra.mxu0 %v665
    %726 = vmatprep.subr.mxu0 0.0
    %727 = vmatpush1.msra.mxu0 %v666
    %728 = vmatprep.subr.mxu0 0.0
    %729 = vmatpush1.msra.mxu0 %v667
    %730 = vmatprep.subr.mxu0 0.0
    %731 = vmatpush1.msra.mxu0 %v668
    %732 = vmatprep.subr.mxu0 0.0
    %733 = vmatpush1.msra.mxu0 %v669
    %734 = vmatprep.subr.mxu0 0.0
    %735 = vmatpush1.msra.mxu0 %v670
    %736 = vmatprep.subr.mxu0 0.0
    %737 = vmatpush1.msra.mxu0 %v671
    %738 = vmatprep.subr.mxu0 0.0
    %739 = vmatpush1.msra.mxu0 %v672
    %740 = vmatprep.subr.mxu0 0.0
    %741 = vmatpush1.msra.mxu0 %v673
    %742 = vmatprep.subr.mxu0 0.0
    %743 = vmatpush1.msra.mxu0 %v674
    %744 = vmatprep.subr.mxu0 0.0
    %745 = vmatpush1.msra.mxu0 %v675
    %746 = vmatprep.subr.mxu0 0.0
    %747 = vmatpush1.msra.mxu0 %v676
    %748 = vmatprep.subr.mxu0 0.0
    %749 = vmatpush1.msra.mxu0 %v677
    %750 = vmatprep.subr.mxu0 0.0
    %751 = vmatpush1.msra.mxu0 %v678
    %752 = vmatprep.subr.mxu0 0.0
    %753 = vmatpush1.msra.mxu0 %v679
    %754 = vmatprep.subr.mxu0 0.0
    %755 = vmatpush1.msra.mxu0 %v680
    %756 = vmatprep.subr.mxu0 0.0
    %757 = vmatpush1.msra.mxu0 %v681
    %758 = vmatprep.subr.mxu0 0.0
    %759 = vmatpush1.msra.mxu0 %v682
    %760 = vmatprep.subr.mxu0 0.0
    %761 = vmatpush1.msra.mxu0 %v683
    %762 = vmatprep.subr.mxu0 0.0
    %763 = vmatpush1.msra.mxu0 %v684
    %764 = vmatprep.subr.mxu0 0.0
    %765 = vmatpush1.msra.mxu0 %v685
    %766 = vmatprep.subr.mxu0 0.0
    %767 = vmatpush1.msra.mxu0 %v686
    %768 = vmatprep.subr.mxu0 0.0
    %769 = vmatpush1.msra.mxu0 %v687
    %770 = vmatprep.subr.mxu0 0.0
    %771 = vmatpush1.msra.mxu0 %v688
    %772 = vmatprep.subr.mxu0 0.0
    %773 = vmatpush1.msra.mxu0 %v689
    %774 = vmatprep.subr.mxu0 0.0
    %775 = vmatpush1.msra.mxu0 %v690
    %776 = vmatprep.subr.mxu0 0.0
    %777 = vmatpush1.msra.mxu0 %v691
    %778 = vmatprep.subr.mxu0 0.0
    %779 = vmatpush1.msra.mxu0 %v692
    %780 = vmatprep.subr.mxu0 0.0
    %781 = vmatpush1.msra.mxu0 %v693
    %782 = vmatprep.mubr.f32.mxu0 %v645
    %783 = vmatmul.mubr.f32.gmra.mrb[0].mxu0 %v654
    %v784 = vpop.f32.mrb[0].mxu0
    %v785 = vadd.f32 %v716, %v784
    %v786 = vpop.f32.mrb[0].mxu0
    %787 = vmatprep.mubr.f32.mxu0 %v646
    %788 = vmatmul.mubr.f32.gmra.mrb[0].mxu0 %v651
    %v789 = vpop.f32.mrb[0].mxu0
    %v790 = vadd.f32 %v716, %v789
    %v791 = vpop.f32.mrb[0].mxu0
    %792 = vdwg.mxu0
    %793 = vmatprep.subr.mxu0 0.0
    %794 = vmatpush1.msra.mxu0 %v694
    %795 = vmatprep.subr.mxu0 0.0
    %796 = vmatpush1.msra.mxu0 %v695
    %797 = vmatprep.subr.mxu0 0.0
    %798 = vmatpush1.msra.mxu0 %v696
    %799 = vmatprep.subr.mxu0 0.0
    %800 = vmatpush1.msra.mxu0 %v697
    %801 = vmatprep.subr.mxu0 0.0
    %802 = vmatpush1.msra.mxu0 %v698
    %803 = vmatprep.subr.mxu0 0.0
    %804 = vmatpush1.msra.mxu0 %v699
    %805 = vmatprep.subr.mxu0 0.0
    %806 = vmatpush1.msra.mxu0 %v700
    %807 = vmatprep.subr.mxu0 0.0
    %808 = vmatpush1.msra.mxu0 %v701
    %809 = vmatprep.subr.mxu0 0.0
    %810 = vmatpush1.msra.mxu0 %v702
    %811 = vmatprep.subr.mxu0 0.0
    %812 = vmatpush1.msra.mxu0 %v703
    %813 = vmatprep.subr.mxu0 0.0
    %814 = vmatpush1.msra.mxu0 %v704
    %815 = vmatprep.subr.mxu0 0.0
    %816 = vmatpush1.msra.mxu0 %v705
    %817 = vmatprep.subr.mxu0 0.0
    %818 = vmatpush1.msra.mxu0 %v706
    %819 = vmatprep.subr.mxu0 0.0
    %820 = vmatpush1.msra.mxu0 %v707
    %821 = vmatprep.subr.mxu0 0.0
    %822 = vmatpush1.msra.mxu0 %v708
    %823 = vmatprep.subr.mxu0 0.0
    %824 = vmatpush1.msra.mxu0 %v709
    %825 = vmatprep.subr.mxu0 0.0
    %826 = vmatpush1.msra.mxu0 0.0
    %827 = vmatprep.subr.mxu0 0.0
    %828 = vmatpush1.msra.mxu0 0.0
    %829 = vmatprep.subr.mxu0 0.0
    %830 = vmatpush1.msra.mxu0 0.0
    %831 = vmatprep.subr.mxu0 0.0
    %832 = vmatpush1.msra.mxu0 0.0
    %833 = vmatprep.subr.mxu0 0.0
    %834 = vmatpush1.msra.mxu0 0.0
    %835 = vmatprep.subr.mxu0 0.0
    %836 = vmatpush1.msra.mxu0 0.0
    %837 = vmatprep.subr.mxu0 0.0
    %838 = vmatpush1.msra.mxu0 0.0
    %839 = vmatprep.subr.mxu0 0.0
    %840 = vmatpush1.msra.mxu0 0.0
    %841 = vmatprep.subr.mxu0 0.0
    %842 = vmatpush1.msra.mxu0 0.0
    %843 = vmatprep.subr.mxu0 0.0
    %844 = vmatpush1.msra.mxu0 0.0
    %845 = vmatprep.subr.mxu0 0.0
    %846 = vmatpush1.msra.mxu0 0.0
    %847 = vmatprep.subr.mxu0 0.0
    %848 = vmatpush1.msra.mxu0 0.0
    %849 = vmatprep.subr.mxu0 0.0
    %850 = vmatpush1.msra.mxu0 0.0
    %851 = vmatprep.subr.mxu0 0.0
    %852 = vmatpush1.msra.mxu0 0.0
    %853 = vmatprep.subr.mxu0 0.0
    %854 = vmatpush1.msra.mxu0 0.0
    %855 = vmatprep.subr.mxu0 0.0
    %856 = vmatpush1.msra.mxu0 0.0
    %857 = vmatprep.mubr.f32.mxu0 0.0
    %858 = vmatmul.mubr.f32.gmra.mrb[0].mxu0 %v657
    %v859 = vpop.f32.mrb[0].mxu0
    %v860 = vadd.f32 %v785, %v859
    %v861 = vpop.f32.mrb[0].mxu0
    %862 = vmatprep.mubr.f32.mxu0 0.0
    %863 = vmatmul.mubr.f32.gmra.mrb[0].mxu0 %v660
    %v864 = vpop.f32.mrb[0].mxu0
    %v865 = vadd.f32 %v790, %v864
    %v866 = vpop.f32.mrb[0].mxu0
    %867 = vdwg.mxu0
    %v868 = vmax.f32 %v860, 0.0
    %v869 = vmax.f32 %v865, 0.0
    %v872 = vrot.slane %v868, 7
    %v873 = vrot.slane %v869, 7
    %v874 = vsel %vm203, %v872, %v873
    %v877 = vsel %vm203, 0.0, %v872
    %v878 = vrot.slane %v868, 1
    %v879 = vrot.slane %v869, 1
    %v880 = vsel %vm210, %v878, %v879
    %v883 = vsel %vm210, %v879, 0.0
    %s884 = scalar_lea.vmem [#allocation6], 1152
    %v885 = vld [vmem:[%s884] sm:$0xff]
    %v886 = vld [vmem:[%s884 + $0x8] sm:$0xff]
    %v887 = vld [vmem:[%s884 + $0x10] sm:$0xff]
    %v888 = vld [vmem:[%s884 + $0x18] sm:$0xff]
    %v889 = vld [vmem:[%s884 + $0x20] sm:$0xff]
    %v890 = vld [vmem:[%s884 + $0x28] sm:$0xff]
    %v891 = vld [vmem:[%s884 + $0x30] sm:$0xff]
    %v892 = vld [vmem:[%s884 + $0x38] sm:$0xff]
    %v893 = vld [vmem:[%s884 + $0x40] sm:$0xff]
    %v894 = vld [vmem:[%s884 + $0x48] sm:$0xff]
    %v895 = vld [vmem:[%s884 + $0x50] sm:$0xff]
    %v896 = vld [vmem:[%s884 + $0x58] sm:$0xff]
    %v897 = vld [vmem:[%s884 + $0x60] sm:$0xff]
    %v898 = vld [vmem:[%s884 + $0x68] sm:$0xff]
    %v899 = vld [vmem:[%s884 + $0x70] sm:$0xff]
    %v900 = vld [vmem:[%s884 + $0x78] sm:$0xff]
    %v901 = vld [vmem:[%s884 + $0x80] sm:$0xff]
    %v902 = vld [vmem:[%s884 + $0x88] sm:$0xff]
    %v903 = vld [vmem:[%s884 + $0x90] sm:$0xff]
    %v904 = vld [vmem:[%s884 + $0x98] sm:$0xff]
    %v905 = vld [vmem:[%s884 + $0xa0] sm:$0xff]
    %v906 = vld [vmem:[%s884 + $0xa8] sm:$0xff]
    %v907 = vld [vmem:[%s884 + $0xb0] sm:$0xff]
    %v908 = vld [vmem:[%s884 + $0xb8] sm:$0xff]
    %v909 = vld [vmem:[%s884 + $0xc0] sm:$0xff]
    %v910 = vld [vmem:[%s884 + $0xc8] sm:$0xff]
    %v911 = vld [vmem:[%s884 + $0xd0] sm:$0xff]
    %v912 = vld [vmem:[%s884 + $0xd8] sm:$0xff]
    %v913 = vld [vmem:[%s884 + $0xe0] sm:$0xff]
    %v914 = vld [vmem:[%s884 + $0xe8] sm:$0xff]
    %v915 = vld [vmem:[%s884 + $0xf0] sm:$0xff]
    %v916 = vld [vmem:[%s884 + $0xf8] sm:$0xff]
    %v917 = vld [vmem:[%s884 + $0x100] sm:$0xff]
    %v918 = vld [vmem:[%s884 + $0x108] sm:$0xff]
    %v919 = vld [vmem:[%s884 + $0x110] sm:$0xff]
    %v920 = vld [vmem:[%s884 + $0x118] sm:$0xff]
    %v921 = vld [vmem:[%s884 + $0x120] sm:$0xff]
    %v922 = vld [vmem:[%s884 + $0x128] sm:$0xff]
    %v923 = vld [vmem:[%s884 + $0x130] sm:$0xff]
    %v924 = vld [vmem:[%s884 + $0x138] sm:$0xff]
    %v925 = vld [vmem:[%s884 + $0x140] sm:$0xff]
    %v926 = vld [vmem:[%s884 + $0x148] sm:$0xff]
    %v927 = vld [vmem:[%s884 + $0x150] sm:$0xff]
    %v928 = vld [vmem:[%s884 + $0x158] sm:$0xff]
    %v929 = vld [vmem:[%s884 + $0x160] sm:$0xff]
    %v930 = vld [vmem:[%s884 + $0x168] sm:$0xff]
    %v931 = vld [vmem:[%s884 + $0x170] sm:$0xff]
    %v932 = vld [vmem:[%s884 + $0x178] sm:$0xff]
    %s933 = scalar_lea.vmem [#allocation7], 3
    %v934 = vld [vmem:[%s933] sm:$0x1]
    %v936 = vlaneseq
    %v937 = vshrl.u32 %v936, 7
    %v938 = vsub.s32 0, %v937
    %v939 = vrot.slane %v934, %v938
    %941 = vmatprep.subr.mxu0 0.0
    %942 = vmatpush1.msra.mxu0 %v885
    %943 = vmatprep.subr.mxu0 0.0
    %944 = vmatpush1.msra.mxu0 %v886
    %945 = vmatprep.subr.mxu0 0.0
    %946 = vmatpush1.msra.mxu0 %v887
    %947 = vmatprep.subr.mxu0 0.0
    %948 = vmatpush1.msra.mxu0 %v888
    %949 = vmatprep.subr.mxu0 0.0
    %950 = vmatpush1.msra.mxu0 %v889
    %951 = vmatprep.subr.mxu0 0.0
    %952 = vmatpush1.msra.mxu0 %v890
    %953 = vmatprep.subr.mxu0 0.0
    %954 = vmatpush1.msra.mxu0 %v891
    %955 = vmatprep.subr.mxu0 0.0
    %956 = vmatpush1.msra.mxu0 %v892
    %957 = vmatprep.subr.mxu0 0.0
    %958 = vmatpush1.msra.mxu0 %v893
    %959 = vmatprep.subr.mxu0 0.0
    %960 = vmatpush1.msra.mxu0 %v894
    %961 = vmatprep.subr.mxu0 0.0
    %962 = vmatpush1.msra.mxu0 %v895
    %963 = vmatprep.subr.mxu0 0.0
    %964 = vmatpush1.msra.mxu0 %v896
    %965 = vmatprep.subr.mxu0 0.0
    %966 = vmatpush1.msra.mxu0 %v897
    %967 = vmatprep.subr.mxu0 0.0
    %968 = vmatpush1.msra.mxu0 %v898
    %969 = vmatprep.subr.mxu0 0.0
    %970 = vmatpush1.msra.mxu0 %v899
    %971 = vmatprep.subr.mxu0 0.0
    %972 = vmatpush1.msra.mxu0 %v900
    %973 = vmatprep.subr.mxu0 0.0
    %974 = vmatpush1.msra.mxu0 %v901
    %975 = vmatprep.subr.mxu0 0.0
    %976 = vmatpush1.msra.mxu0 %v902
    %977 = vmatprep.subr.mxu0 0.0
    %978 = vmatpush1.msra.mxu0 %v903
    %979 = vmatprep.subr.mxu0 0.0
    %980 = vmatpush1.msra.mxu0 %v904
    %981 = vmatprep.subr.mxu0 0.0
    %982 = vmatpush1.msra.mxu0 %v905
    %983 = vmatprep.subr.mxu0 0.0
    %984 = vmatpush1.msra.mxu0 %v906
    %985 = vmatprep.subr.mxu0 0.0
    %986 = vmatpush1.msra.mxu0 %v907
    %987 = vmatprep.subr.mxu0 0.0
    %988 = vmatpush1.msra.mxu0 %v908
    %989 = vmatprep.subr.mxu0 0.0
    %990 = vmatpush1.msra.mxu0 %v909
    %991 = vmatprep.subr.mxu0 0.0
    %992 = vmatpush1.msra.mxu0 %v910
    %993 = vmatprep.subr.mxu0 0.0
    %994 = vmatpush1.msra.mxu0 %v911
    %995 = vmatprep.subr.mxu0 0.0
    %996 = vmatpush1.msra.mxu0 %v912
    %997 = vmatprep.subr.mxu0 0.0
    %998 = vmatpush1.msra.mxu0 %v913
    %999 = vmatprep.subr.mxu0 0.0
    %1000 = vmatpush1.msra.mxu0 %v914
    %1001 = vmatprep.subr.mxu0 0.0
    %1002 = vmatpush1.msra.mxu0 %v915
    %1003 = vmatprep.subr.mxu0 0.0
    %1004 = vmatpush1.msra.mxu0 %v916
    %1005 = vmatprep.mubr.f32.mxu0 %v868
    %1006 = vmatmul.mubr.f32.gmra.mrb[0].mxu0 %v877
    %v1007 = vpop.f32.mrb[0].mxu0
    %v1008 = vadd.f32 %v939, %v1007
    %v1009 = vpop.f32.mrb[0].mxu0
    %1010 = vmatprep.mubr.f32.mxu0 %v869
    %1011 = vmatmul.mubr.f32.gmra.mrb[0].mxu0 %v874
    %v1012 = vpop.f32.mrb[0].mxu0
    %v1013 = vadd.f32 %v939, %v1012
    %v1014 = vpop.f32.mrb[0].mxu0
    %1015 = vdwg.mxu0
    %1016 = vmatprep.subr.mxu0 0.0
    %1017 = vmatpush1.msra.mxu0 %v917
    %1018 = vmatprep.subr.mxu0 0.0
    %1019 = vmatpush1.msra.mxu0 %v918
    %1020 = vmatprep.subr.mxu0 0.0
    %1021 = vmatpush1.msra.mxu0 %v919
    %1022 = vmatprep.subr.mxu0 0.0
    %1023 = vmatpush1.msra.mxu0 %v920
    %1024 = vmatprep.subr.mxu0 0.0
    %1025 = vmatpush1.msra.mxu0 %v921
    %1026 = vmatprep.subr.mxu0 0.0
    %1027 = vmatpush1.msra.mxu0 %v922
    %1028 = vmatprep.subr.mxu0 0.0
    %1029 = vmatpush1.msra.mxu0 %v923
    %1030 = vmatprep.subr.mxu0 0.0
    %1031 = vmatpush1.msra.mxu0 %v924
    %1032 = vmatprep.subr.mxu0 0.0
    %1033 = vmatpush1.msra.mxu0 %v925
    %1034 = vmatprep.subr.mxu0 0.0
    %1035 = vmatpush1.msra.mxu0 %v926
    %1036 = vmatprep.subr.mxu0 0.0
    %1037 = vmatpush1.msra.mxu0 %v927
    %1038 = vmatprep.subr.mxu0 0.0
    %1039 = vmatpush1.msra.mxu0 %v928
    %1040 = vmatprep.subr.mxu0 0.0
    %1041 = vmatpush1.msra.mxu0 %v929
    %1042 = vmatprep.subr.mxu0 0.0
    %1043 = vmatpush1.msra.mxu0 %v930
    %1044 = vmatprep.subr.mxu0 0.0
    %1045 = vmatpush1.msra.mxu0 %v931
    %1046 = vmatprep.subr.mxu0 0.0
    %1047 = vmatpush1.msra.mxu0 %v932
    %1048 = vmatprep.subr.mxu0 0.0
    %1049 = vmatpush1.msra.mxu0 0.0
    %1050 = vmatprep.subr.mxu0 0.0
    %1051 = vmatpush1.msra.mxu0 0.0
    %1052 = vmatprep.subr.mxu0 0.0
    %1053 = vmatpush1.msra.mxu0 0.0
    %1054 = vmatprep.subr.mxu0 0.0
    %1055 = vmatpush1.msra.mxu0 0.0
    %1056 = vmatprep.subr.mxu0 0.0
    %1057 = vmatpush1.msra.mxu0 0.0
    %1058 = vmatprep.subr.mxu0 0.0
    %1059 = vmatpush1.msra.mxu0 0.0
    %1060 = vmatprep.subr.mxu0 0.0
    %1061 = vmatpush1.msra.mxu0 0.0
    %1062 = vmatprep.subr.mxu0 0.0
    %1063 = vmatpush1.msra.mxu0 0.0
    %1064 = vmatprep.subr.mxu0 0.0
    %1065 = vmatpush1.msra.mxu0 0.0
    %1066 = vmatprep.subr.mxu0 0.0
    %1067 = vmatpush1.msra.mxu0 0.0
    %1068 = vmatprep.subr.mxu0 0.0
    %1069 = vmatpush1.msra.mxu0 0.0
    %1070 = vmatprep.subr.mxu0 0.0
    %1071 = vmatpush1.msra.mxu0 0.0
    %1072 = vmatprep.subr.mxu0 0.0
    %1073 = vmatpush1.msra.mxu0 0.0
    %1074 = vmatprep.subr.mxu0 0.0
    %1075 = vmatpush1.msra.mxu0 0.0
    %1076 = vmatprep.subr.mxu0 0.0
    %1077 = vmatpush1.msra.mxu0 0.0
    %1078 = vmatprep.subr.mxu0 0.0
    %1079 = vmatpush1.msra.mxu0 0.0
    %1080 = vmatprep.mubr.f32.mxu0 0.0
    %1081 = vmatmul.mubr.f32.gmra.mrb[0].mxu0 %v880
    %v1082 = vpop.f32.mrb[0].mxu0
    %v1083 = vadd.f32 %v1008, %v1082
    %v1084 = vpop.f32.mrb[0].mxu0
    %1085 = vmatprep.mubr.f32.mxu0 0.0
    %1086 = vmatmul.mubr.f32.gmra.mrb[0].mxu0 %v883
    %v1087 = vpop.f32.mrb[0].mxu0
    %v1088 = vadd.f32 %v1013, %v1087
    %v1089 = vpop.f32.mrb[0].mxu0
    %1090 = vdwg.mxu0
    %v1091 = vadd.f32 %v1083, %v645
    %v1092 = vadd.f32 %v1088, %v646
    %v1095 = vrot.slane %v1091, 7
    %v1096 = vrot.slane %v1092, 7
    %v1097 = vsel %vm203, %v1095, %v1096
    %v1100 = vsel %vm203, 0.0, %v1095
    %v1101 = vrot.slane %v1091, 1
    %v1102 = vrot.slane %v1092, 1
    %v1103 = vsel %vm210, %v1101, %v1102
    %v1106 = vsel %vm210, %v1102, 0.0
    %s1107 = scalar_lea.vmem [#allocation6], 1536
    %v1108 = vld [vmem:[%s1107] sm:$0xff]
    %v1109 = vld [vmem:[%s1107 + $0x8] sm:$0xff]
    %v1110 = vld [vmem:[%s1107 + $0x10] sm:$0xff]
    %v1111 = vld [vmem:[%s1107 + $0x18] sm:$0xff]
    %v1112 = vld [vmem:[%s1107 + $0x20] sm:$0xff]
    %v1113 = vld [vmem:[%s1107 + $0x28] sm:$0xff]
    %v1114 = vld [vmem:[%s1107 + $0x30] sm:$0xff]
    %v1115 = vld [vmem:[%s1107 + $0x38] sm:$0xff]
    %v1116 = vld [vmem:[%s1107 + $0x40] sm:$0xff]
    %v1117 = vld [vmem:[%s1107 + $0x48] sm:$0xff]
    %v1118 = vld [vmem:[%s1107 + $0x50] sm:$0xff]
    %v1119 = vld [vmem:[%s1107 + $0x58] sm:$0xff]
    %v1120 = vld [vmem:[%s1107 + $0x60] sm:$0xff]
    %v1121 = vld [vmem:[%s1107 + $0x68] sm:$0xff]
    %v1122 = vld [vmem:[%s1107 + $0x70] sm:$0xff]
    %v1123 = vld [vmem:[%s1107 + $0x78] sm:$0xff]
    %v1124 = vld [vmem:[%s1107 + $0x80] sm:$0xff]
    %v1125 = vld [vmem:[%s1107 + $0x88] sm:$0xff]
    %v1126 = vld [vmem:[%s1107 + $0x90] sm:$0xff]
    %v1127 = vld [vmem:[%s1107 + $0x98] sm:$0xff]
    %v1128 = vld [vmem:[%s1107 + $0xa0] sm:$0xff]
    %v1129 = vld [vmem:[%s1107 + $0xa8] sm:$0xff]
    %v1130 = vld [vmem:[%s1107 + $0xb0] sm:$0xff]
    %v1131 = vld [vmem:[%s1107 + $0xb8] sm:$0xff]
    %v1132 = vld [vmem:[%s1107 + $0xc0] sm:$0xff]
    %v1133 = vld [vmem:[%s1107 + $0xc8] sm:$0xff]
    %v1134 = vld [vmem:[%s1107 + $0xd0] sm:$0xff]
    %v1135 = vld [vmem:[%s1107 + $0xd8] sm:$0xff]
    %v1136 = vld [vmem:[%s1107 + $0xe0] sm:$0xff]
    %v1137 = vld [vmem:[%s1107 + $0xe8] sm:$0xff]
    %v1138 = vld [vmem:[%s1107 + $0xf0] sm:$0xff]
    %v1139 = vld [vmem:[%s1107 + $0xf8] sm:$0xff]
    %v1140 = vld [vmem:[%s1107 + $0x100] sm:$0xff]
    %v1141 = vld [vmem:[%s1107 + $0x108] sm:$0xff]
    %v1142 = vld [vmem:[%s1107 + $0x110] sm:$0xff]
    %v1143 = vld [vmem:[%s1107 + $0x118] sm:$0xff]
    %v1144 = vld [vmem:[%s1107 + $0x120] sm:$0xff]
    %v1145 = vld [vmem:[%s1107 + $0x128] sm:$0xff]
    %v1146 = vld [vmem:[%s1107 + $0x130] sm:$0xff]
    %v1147 = vld [vmem:[%s1107 + $0x138] sm:$0xff]
    %v1148 = vld [vmem:[%s1107 + $0x140] sm:$0xff]
    %v1149 = vld [vmem:[%s1107 + $0x148] sm:$0xff]
    %v1150 = vld [vmem:[%s1107 + $0x150] sm:$0xff]
    %v1151 = vld [vmem:[%s1107 + $0x158] sm:$0xff]
    %v1152 = vld [vmem:[%s1107 + $0x160] sm:$0xff]
    %v1153 = vld [vmem:[%s1107 + $0x168] sm:$0xff]
    %v1154 = vld [vmem:[%s1107 + $0x170] sm:$0xff]
    %v1155 = vld [vmem:[%s1107 + $0x178] sm:$0xff]
    %s1156 = scalar_lea.vmem [#allocation7], 4
    %v1157 = vld [vmem:[%s1156] sm:$0x1]
    %v1159 = vlaneseq
    %v1160 = vshrl.u32 %v1159, 7
    %v1161 = vsub.s32 0, %v1160
    %v1162 = vrot.slane %v1157, %v1161
    %1164 = vmatprep.subr.mxu0 0.0
    %1165 = vmatpush1.msra.mxu0 %v1108
    %1166 = vmatprep.subr.mxu0 0.0
    %1167 = vmatpush1.msra.mxu0 %v1109
    %1168 = vmatprep.subr.mxu0 0.0
    %1169 = vmatpush1.msra.mxu0 %v1110
    %1170 = vmatprep.subr.mxu0 0.0
    %1171 = vmatpush1.msra.mxu0 %v1111
    %1172 = vmatprep.subr.mxu0 0.0
    %1173 = vmatpush1.msra.mxu0 %v1112
    %1174 = vmatprep.subr.mxu0 0.0
    %1175 = vmatpush1.msra.mxu0 %v1113
    %1176 = vmatprep.subr.mxu0 0.0
    %1177 = vmatpush1.msra.mxu0 %v1114
    %1178 = vmatprep.subr.mxu0 0.0
    %1179 = vmatpush1.msra.mxu0 %v1115
    %1180 = vmatprep.subr.mxu0 0.0
    %1181 = vmatpush1.msra.mxu0 %v1116
    %1182 = vmatprep.subr.mxu0 0.0
    %1183 = vmatpush1.msra.mxu0 %v1117
    %1184 = vmatprep.subr.mxu0 0.0
    %1185 = vmatpush1.msra.mxu0 %v1118
    %1186 = vmatprep.subr.mxu0 0.0
    %1187 = vmatpush1.msra.mxu0 %v1119
    %1188 = vmatprep.subr.mxu0 0.0
    %1189 = vmatpush1.msra.mxu0 %v1120
    %1190 = vmatprep.subr.mxu0 0.0
    %1191 = vmatpush1.msra.mxu0 %v1121
    %1192 = vmatprep.subr.mxu0 0.0
    %1193 = vmatpush1.msra.mxu0 %v1122
    %1194 = vmatprep.subr.mxu0 0.0
    %1195 = vmatpush1.msra.mxu0 %v1123
    %1196 = vmatprep.subr.mxu0 0.0
    %1197 = vmatpush1.msra.mxu0 %v1124
    %1198 = vmatprep.subr.mxu0 0.0
    %1199 = vmatpush1.msra.mxu0 %v1125
    %1200 = vmatprep.subr.mxu0 0.0
    %1201 = vmatpush1.msra.mxu0 %v1126
    %1202 = vmatprep.subr.mxu0 0.0
    %1203 = vmatpush1.msra.mxu0 %v1127
    %1204 = vmatprep.subr.mxu0 0.0
    %1205 = vmatpush1.msra.mxu0 %v1128
    %1206 = vmatprep.subr.mxu0 0.0
    %1207 = vmatpush1.msra.mxu0 %v1129
    %1208 = vmatprep.subr.mxu0 0.0
    %1209 = vmatpush1.msra.mxu0 %v1130
    %1210 = vmatprep.subr.mxu0 0.0
    %1211 = vmatpush1.msra.mxu0 %v1131
    %1212 = vmatprep.subr.mxu0 0.0
    %1213 = vmatpush1.msra.mxu0 %v1132
    %1214 = vmatprep.subr.mxu0 0.0
    %1215 = vmatpush1.msra.mxu0 %v1133
    %1216 = vmatprep.subr.mxu0 0.0
    %1217 = vmatpush1.msra.mxu0 %v1134
    %1218 = vmatprep.subr.mxu0 0.0
    %1219 = vmatpush1.msra.mxu0 %v1135
    %1220 = vmatprep.subr.mxu0 0.0
    %1221 = vmatpush1.msra.mxu0 %v1136
    %1222 = vmatprep.subr.mxu0 0.0
    %1223 = vmatpush1.msra.mxu0 %v1137
    %1224 = vmatprep.subr.mxu0 0.0
    %1225 = vmatpush1.msra.mxu0 %v1138
    %1226 = vmatprep.subr.mxu0 0.0
    %1227 = vmatpush1.msra.mxu0 %v1139
    %1228 = vmatprep.mubr.f32.mxu0 %v1091
    %1229 = vmatmul.mubr.f32.gmra.mrb[0].mxu0 %v1100
    %v1230 = vpop.f32.mrb[0].mxu0
    %v1231 = vadd.f32 %v1162, %v1230
    %v1232 = vpop.f32.mrb[0].mxu0
    %1233 = vmatprep.mubr.f32.mxu0 %v1092
    %1234 = vmatmul.mubr.f32.gmra.mrb[0].mxu0 %v1097
    %v1235 = vpop.f32.mrb[0].mxu0
    %v1236 = vadd.f32 %v1162, %v1235
    %v1237 = vpop.f32.mrb[0].mxu0
    %1238 = vdwg.mxu0
    %1239 = vmatprep.subr.mxu0 0.0
    %1240 = vmatpush1.msra.mxu0 %v1140
    %1241 = vmatprep.subr.mxu0 0.0
    %1242 = vmatpush1.msra.mxu0 %v1141
    %1243 = vmatprep.subr.mxu0 0.0
    %1244 = vmatpush1.msra.mxu0 %v1142
    %1245 = vmatprep.subr.mxu0 0.0
    %1246 = vmatpush1.msra.mxu0 %v1143
    %1247 = vmatprep.subr.mxu0 0.0
    %1248 = vmatpush1.msra.mxu0 %v1144
    %1249 = vmatprep.subr.mxu0 0.0
    %1250 = vmatpush1.msra.mxu0 %v1145
    %1251 = vmatprep.subr.mxu0 0.0
    %1252 = vmatpush1.msra.mxu0 %v1146
    %1253 = vmatprep.subr.mxu0 0.0
    %1254 = vmatpush1.msra.mxu0 %v1147
    %1255 = vmatprep.subr.mxu0 0.0
    %1256 = vmatpush1.msra.mxu0 %v1148
    %1257 = vmatprep.subr.mxu0 0.0
    %1258 = vmatpush1.msra.mxu0 %v1149
    %1259 = vmatprep.subr.mxu0 0.0
    %1260 = vmatpush1.msra.mxu0 %v1150
    %1261 = vmatprep.subr.mxu0 0.0
    %1262 = vmatpush1.msra.mxu0 %v1151
    %1263 = vmatprep.subr.mxu0 0.0
    %1264 = vmatpush1.msra.mxu0 %v1152
    %1265 = vmatprep.subr.mxu0 0.0
    %1266 = vmatpush1.msra.mxu0 %v1153
    %1267 = vmatprep.subr.mxu0 0.0
    %1268 = vmatpush1.msra.mxu0 %v1154
    %1269 = vmatprep.subr.mxu0 0.0
    %1270 = vmatpush1.msra.mxu0 %v1155
    %1271 = vmatprep.subr.mxu0 0.0
    %1272 = vmatpush1.msra.mxu0 0.0
    %1273 = vmatprep.subr.mxu0 0.0
    %1274 = vmatpush1.msra.mxu0 0.0
    %1275 = vmatprep.subr.mxu0 0.0
    %1276 = vmatpush1.msra.mxu0 0.0
    %1277 = vmatprep.subr.mxu0 0.0
    %1278 = vmatpush1.msra.mxu0 0.0
    %1279 = vmatprep.subr.mxu0 0.0
    %1280 = vmatpush1.msra.mxu0 0.0
    %1281 = vmatprep.subr.mxu0 0.0
    %1282 = vmatpush1.msra.mxu0 0.0
    %1283 = vmatprep.subr.mxu0 0.0
    %1284 = vmatpush1.msra.mxu0 0.0
    %1285 = vmatprep.subr.mxu0 0.0
    %1286 = vmatpush1.msra.mxu0 0.0
    %1287 = vmatprep.subr.mxu0 0.0
    %1288 = vmatpush1.msra.mxu0 0.0
    %1289 = vmatprep.subr.mxu0 0.0
    %1290 = vmatpush1.msra.mxu0 0.0
    %1291 = vmatprep.subr.mxu0 0.0
    %1292 = vmatpush1.msra.mxu0 0.0
    %1293 = vmatprep.subr.mxu0 0.0
    %1294 = vmatpush1.msra.mxu0 0.0
    %1295 = vmatprep.subr.mxu0 0.0
    %1296 = vmatpush1.msra.mxu0 0.0
    %1297 = vmatprep.subr.mxu0 0.0
    %1298 = vmatpush1.msra.mxu0 0.0
    %1299 = vmatprep.subr.mxu0 0.0
    %1300 = vmatpush1.msra.mxu0 0.0
    %1301 = vmatprep.subr.mxu0 0.0
    %1302 = vmatpush1.msra.mxu0 0.0
    %1303 = vmatprep.mubr.f32.mxu0 0.0
    %1304 = vmatmul.mubr.f32.gmra.mrb[0].mxu0 %v1103
    %v1305 = vpop.f32.mrb[0].mxu0
    %v1306 = vadd.f32 %v1231, %v1305
    %v1307 = vpop.f32.mrb[0].mxu0
    %1308 = vmatprep.mubr.f32.mxu0 0.0
    %1309 = vmatmul.mubr.f32.gmra.mrb[0].mxu0 %v1106
    %v1310 = vpop.f32.mrb[0].mxu0
    %v1311 = vadd.f32 %v1236, %v1310
    %v1312 = vpop.f32.mrb[0].mxu0
    %1313 = vdwg.mxu0
    %v1314 = vmax.f32 %v1306, 0.0
    %v1315 = vmax.f32 %v1311, 0.0
    %v1318 = vrot.slane %v1314, 7
    %v1319 = vrot.slane %v1315, 7
    %v1320 = vsel %vm203, %v1318, %v1319
    %v1323 = vsel %vm203, 0.0, %v1318
    %v1324 = vrot.slane %v1314, 1
    %v1325 = vrot.slane %v1315, 1
    %v1326 = vsel %vm210, %v1324, %v1325
    %v1329 = vsel %vm210, %v1325, 0.0
    %s1330 = scalar_lea.vmem [#allocation6], 1920
    %v1331 = vld [vmem:[%s1330] sm:$0xff]
    %v1332 = vld [vmem:[%s1330 + $0x8] sm:$0xff]
    %v1333 = vld [vmem:[%s1330 + $0x10] sm:$0xff]
    %v1334 = vld [vmem:[%s1330 + $0x18] sm:$0xff]
    %v1335 = vld [vmem:[%s1330 + $0x20] sm:$0xff]
    %v1336 = vld [vmem:[%s1330 + $0x28] sm:$0xff]
    %v1337 = vld [vmem:[%s1330 + $0x30] sm:$0xff]
    %v1338 = vld [vmem:[%s1330 + $0x38] sm:$0xff]
    %v1339 = vld [vmem:[%s1330 + $0x40] sm:$0xff]
    %v1340 = vld [vmem:[%s1330 + $0x48] sm:$0xff]
    %v1341 = vld [vmem:[%s1330 + $0x50] sm:$0xff]
    %v1342 = vld [vmem:[%s1330 + $0x58] sm:$0xff]
    %v1343 = vld [vmem:[%s1330 + $0x60] sm:$0xff]
    %v1344 = vld [vmem:[%s1330 + $0x68] sm:$0xff]
    %v1345 = vld [vmem:[%s1330 + $0x70] sm:$0xff]
    %v1346 = vld [vmem:[%s1330 + $0x78] sm:$0xff]
    %v1347 = vld [vmem:[%s1330 + $0x80] sm:$0xff]
    %v1348 = vld [vmem:[%s1330 + $0x88] sm:$0xff]
    %v1349 = vld [vmem:[%s1330 + $0x90] sm:$0xff]
    %v1350 = vld [vmem:[%s1330 + $0x98] sm:$0xff]
    %v1351 = vld [vmem:[%s1330 + $0xa0] sm:$0xff]
    %v1352 = vld [vmem:[%s1330 + $0xa8] sm:$0xff]
    %v1353 = vld [vmem:[%s1330 + $0xb0] sm:$0xff]
    %v1354 = vld [vmem:[%s1330 + $0xb8] sm:$0xff]
    %v1355 = vld [vmem:[%s1330 + $0xc0] sm:$0xff]
    %v1356 = vld [vmem:[%s1330 + $0xc8] sm:$0xff]
    %v1357 = vld [vmem:[%s1330 + $0xd0] sm:$0xff]
    %v1358 = vld [vmem:[%s1330 + $0xd8] sm:$0xff]
    %v1359 = vld [vmem:[%s1330 + $0xe0] sm:$0xff]
    %v1360 = vld [vmem:[%s1330 + $0xe8] sm:$0xff]
    %v1361 = vld [vmem:[%s1330 + $0xf0] sm:$0xff]
    %v1362 = vld [vmem:[%s1330 + $0xf8] sm:$0xff]
    %v1363 = vld [vmem:[%s1330 + $0x100] sm:$0xff]
    %v1364 = vld [vmem:[%s1330 + $0x108] sm:$0xff]
    %v1365 = vld [vmem:[%s1330 + $0x110] sm:$0xff]
    %v1366 = vld [vmem:[%s1330 + $0x118] sm:$0xff]
    %v1367 = vld [vmem:[%s1330 + $0x120] sm:$0xff]
    %v1368 = vld [vmem:[%s1330 + $0x128] sm:$0xff]
    %v1369 = vld [vmem:[%s1330 + $0x130] sm:$0xff]
    %v1370 = vld [vmem:[%s1330 + $0x138] sm:$0xff]
    %v1371 = vld [vmem:[%s1330 + $0x140] sm:$0xff]
    %v1372 = vld [vmem:[%s1330 + $0x148] sm:$0xff]
    %v1373 = vld [vmem:[%s1330 + $0x150] sm:$0xff]
    %v1374 = vld [vmem:[%s1330 + $0x158] sm:$0xff]
    %v1375 = vld [vmem:[%s1330 + $0x160] sm:$0xff]
    %v1376 = vld [vmem:[%s1330 + $0x168] sm:$0xff]
    %v1377 = vld [vmem:[%s1330 + $0x170] sm:$0xff]
    %v1378 = vld [vmem:[%s1330 + $0x178] sm:$0xff]
    %s1379 = scalar_lea.vmem [#allocation7], 5
    %v1380 = vld [vmem:[%s1379] sm:$0x1]
    %v1382 = vlaneseq
    %v1383 = vshrl.u32 %v1382, 7
    %v1384 = vsub.s32 0, %v1383
    %v1385 = vrot.slane %v1380, %v1384
    %1387 = vmatprep.subr.mxu0 0.0
    %1388 = vmatpush1.msra.mxu0 %v1331
    %1389 = vmatprep.subr.mxu0 0.0
    %1390 = vmatpush1.msra.mxu0 %v1332
    %1391 = vmatprep.subr.mxu0 0.0
    %1392 = vmatpush1.msra.mxu0 %v1333
    %1393 = vmatprep.subr.mxu0 0.0
    %1394 = vmatpush1.msra.mxu0 %v1334
    %1395 = vmatprep.subr.mxu0 0.0
    %1396 = vmatpush1.msra.mxu0 %v1335
    %1397 = vmatprep.subr.mxu0 0.0
    %1398 = vmatpush1.msra.mxu0 %v1336
    %1399 = vmatprep.subr.mxu0 0.0
    %1400 = vmatpush1.msra.mxu0 %v1337
    %1401 = vmatprep.subr.mxu0 0.0
    %1402 = vmatpush1.msra.mxu0 %v1338
    %1403 = vmatprep.subr.mxu0 0.0
    %1404 = vmatpush1.msra.mxu0 %v1339
    %1405 = vmatprep.subr.mxu0 0.0
    %1406 = vmatpush1.msra.mxu0 %v1340
    %1407 = vmatprep.subr.mxu0 0.0
    %1408 = vmatpush1.msra.mxu0 %v1341
    %1409 = vmatprep.subr.mxu0 0.0
    %1410 = vmatpush1.msra.mxu0 %v1342
    %1411 = vmatprep.subr.mxu0 0.0
    %1412 = vmatpush1.msra.mxu0 %v1343
    %1413 = vmatprep.subr.mxu0 0.0
    %1414 = vmatpush1.msra.mxu0 %v1344
    %1415 = vmatprep.subr.mxu0 0.0
    %1416 = vmatpush1.msra.mxu0 %v1345
    %1417 = vmatprep.subr.mxu0 0.0
    %1418 = vmatpush1.msra.mxu0 %v1346
    %1419 = vmatprep.subr.mxu0 0.0
    %1420 = vmatpush1.msra.mxu0 %v1347
    %1421 = vmatprep.subr.mxu0 0.0
    %1422 = vmatpush1.msra.mxu0 %v1348
    %1423 = vmatprep.subr.mxu0 0.0
    %1424 = vmatpush1.msra.mxu0 %v1349
    %1425 = vmatprep.subr.mxu0 0.0
    %1426 = vmatpush1.msra.mxu0 %v1350
    %1427 = vmatprep.subr.mxu0 0.0
    %1428 = vmatpush1.msra.mxu0 %v1351
    %1429 = vmatprep.subr.mxu0 0.0
    %1430 = vmatpush1.msra.mxu0 %v1352
    %1431 = vmatprep.subr.mxu0 0.0
    %1432 = vmatpush1.msra.mxu0 %v1353
    %1433 = vmatprep.subr.mxu0 0.0
    %1434 = vmatpush1.msra.mxu0 %v1354
    %1435 = vmatprep.subr.mxu0 0.0
    %1436 = vmatpush1.msra.mxu0 %v1355
    %1437 = vmatprep.subr.mxu0 0.0
    %1438 = vmatpush1.msra.mxu0 %v1356
    %1439 = vmatprep.subr.mxu0 0.0
    %1440 = vmatpush1.msra.mxu0 %v1357
    %1441 = vmatprep.subr.mxu0 0.0
    %1442 = vmatpush1.msra.mxu0 %v1358
    %1443 = vmatprep.subr.mxu0 0.0
    %1444 = vmatpush1.msra.mxu0 %v1359
    %1445 = vmatprep.subr.mxu0 0.0
    %1446 = vmatpush1.msra.mxu0 %v1360
    %1447 = vmatprep.subr.mxu0 0.0
    %1448 = vmatpush1.msra.mxu0 %v1361
    %1449 = vmatprep.subr.mxu0 0.0
    %1450 = vmatpush1.msra.mxu0 %v1362
    %1451 = vmatprep.mubr.f32.mxu0 %v1314
    %1452 = vmatmul.mubr.f32.gmra.mrb[0].mxu0 %v1323
    %v1453 = vpop.f32.mrb[0].mxu0
    %v1454 = vadd.f32 %v1385, %v1453
    %v1455 = vpop.f32.mrb[0].mxu0
    %1456 = vmatprep.mubr.f32.mxu0 %v1315
    %1457 = vmatmul.mubr.f32.gmra.mrb[0].mxu0 %v1320
    %v1458 = vpop.f32.mrb[0].mxu0
    %v1459 = vadd.f32 %v1385, %v1458
    %v1460 = vpop.f32.mrb[0].mxu0
    %1461 = vdwg.mxu0
    %1462 = vmatprep.subr.mxu0 0.0
    %1463 = vmatpush1.msra.mxu0 %v1363
    %1464 = vmatprep.subr.mxu0 0.0
    %1465 = vmatpush1.msra.mxu0 %v1364
    %1466 = vmatprep.subr.mxu0 0.0
    %1467 = vmatpush1.msra.mxu0 %v1365
    %1468 = vmatprep.subr.mxu0 0.0
    %1469 = vmatpush1.msra.mxu0 %v1366
    %1470 = vmatprep.subr.mxu0 0.0
    %1471 = vmatpush1.msra.mxu0 %v1367
    %1472 = vmatprep.subr.mxu0 0.0
    %1473 = vmatpush1.msra.mxu0 %v1368
    %1474 = vmatprep.subr.mxu0 0.0
    %1475 = vmatpush1.msra.mxu0 %v1369
    %1476 = vmatprep.subr.mxu0 0.0
    %1477 = vmatpush1.msra.mxu0 %v1370
    %1478 = vmatprep.subr.mxu0 0.0
    %1479 = vmatpush1.msra.mxu0 %v1371
    %1480 = vmatprep.subr.mxu0 0.0
    %1481 = vmatpush1.msra.mxu0 %v1372
    %1482 = vmatprep.subr.mxu0 0.0
    %1483 = vmatpush1.msra.mxu0 %v1373
    %1484 = vmatprep.subr.mxu0 0.0
    %1485 = vmatpush1.msra.mxu0 %v1374
    %1486 = vmatprep.subr.mxu0 0.0
    %1487 = vmatpush1.msra.mxu0 %v1375
    %1488 = vmatprep.subr.mxu0 0.0
    %1489 = vmatpush1.msra.mxu0 %v1376
    %1490 = vmatprep.subr.mxu0 0.0
    %1491 = vmatpush1.msra.mxu0 %v1377
    %1492 = vmatprep.subr.mxu0 0.0
    %1493 = vmatpush1.msra.mxu0 %v1378
    %1494 = vmatprep.subr.mxu0 0.0
    %1495 = vmatpush1.msra.mxu0 0.0
    %1496 = vmatprep.subr.mxu0 0.0
    %1497 = vmatpush1.msra.mxu0 0.0
    %1498 = vmatprep.subr.mxu0 0.0
    %1499 = vmatpush1.msra.mxu0 0.0
    %1500 = vmatprep.subr.mxu0 0.0
    %1501 = vmatpush1.msra.mxu0 0.0
    %1502 = vmatprep.subr.mxu0 0.0
    %1503 = vmatpush1.msra.mxu0 0.0
    %1504 = vmatprep.subr.mxu0 0.0
    %1505 = vmatpush1.msra.mxu0 0.0
    %1506 = vmatprep.subr.mxu0 0.0
    %1507 = vmatpush1.msra.mxu0 0.0
    %1508 = vmatprep.subr.mxu0 0.0
    %1509 = vmatpush1.msra.mxu0 0.0
    %1510 = vmatprep.subr.mxu0 0.0
    %1511 = vmatpush1.msra.mxu0 0.0
    %1512 = vmatprep.subr.mxu0 0.0
    %1513 = vmatpush1.msra.mxu0 0.0
    %1514 = vmatprep.subr.mxu0 0.0
    %1515 = vmatpush1.msra.mxu0 0.0
    %1516 = vmatprep.subr.mxu0 0.0
    %1517 = vmatpush1.msra.mxu0 0.0
    %1518 = vmatprep.subr.mxu0 0.0
    %1519 = vmatpush1.msra.mxu0 0.0
    %1520 = vmatprep.subr.mxu0 0.0
    %1521 = vmatpush1.msra.mxu0 0.0
    %1522 = vmatprep.subr.mxu0 0.0
    %1523 = vmatpush1.msra.mxu0 0.0
    %1524 = vmatprep.subr.mxu0 0.0
    %1525 = vmatpush1.msra.mxu0 0.0
    %1526 = vmatprep.mubr.f32.mxu0 0.0
    %1527 = vmatmul.mubr.f32.gmra.mrb[0].mxu0 %v1326
    %v1528 = vpop.f32.mrb[0].mxu0
    %v1529 = vadd.f32 %v1454, %v1528
    %v1530 = vpop.f32.mrb[0].mxu0
    %1531 = vmatprep.mubr.f32.mxu0 0.0
    %1532 = vmatmul.mubr.f32.gmra.mrb[0].mxu0 %v1329
    %v1533 = vpop.f32.mrb[0].mxu0
    %v1534 = vadd.f32 %v1459, %v1533
    %v1535 = vpop.f32.mrb[0].mxu0
    %1536 = vdwg.mxu0
    %v1537 = vadd.f32 %v1529, %v1091
    %v1538 = vadd.f32 %v1534, %v1092
    %s1539 = scalar_lea.vmem [#allocation6], 2304
    %v1540 = vld [vmem:[%s1539] sm:$0xff]
    %v1541 = vld [vmem:[%s1539 + $0x8] sm:$0xff]
    %v1542 = vld [vmem:[%s1539 + $0x10] sm:$0xff]
    %v1543 = vld [vmem:[%s1539 + $0x18] sm:$0xff]
    %v1544 = vld [vmem:[%s1539 + $0x20] sm:$0xff]
    %v1545 = vld [vmem:[%s1539 + $0x28] sm:$0xff]
    %v1546 = vld [vmem:[%s1539 + $0x30] sm:$0xff]
    %v1547 = vld [vmem:[%s1539 + $0x38] sm:$0xff]
    %v1548 = vld [vmem:[%s1539 + $0x40] sm:$0xff]
    %v1549 = vld [vmem:[%s1539 + $0x48] sm:$0xff]
    %v1550 = vld [vmem:[%s1539 + $0x50] sm:$0xff]
    %v1551 = vld [vmem:[%s1539 + $0x58] sm:$0xff]
    %v1552 = vld [vmem:[%s1539 + $0x60] sm:$0xff]
    %v1553 = vld [vmem:[%s1539 + $0x68] sm:$0xff]
    %v1554 = vld [vmem:[%s1539 + $0x70] sm:$0xff]
    %v1555 = vld [vmem:[%s1539 + $0x78] sm:$0xff]
    %v1556 = vld [vmem:[%s1539 + $0x80] sm:$0xff]
    %v1557 = vld [vmem:[%s1539 + $0x88] sm:$0xff]
    %v1558 = vld [vmem:[%s1539 + $0x90] sm:$0xff]
    %v1559 = vld [vmem:[%s1539 + $0x98] sm:$0xff]
    %v1560 = vld [vmem:[%s1539 + $0xa0] sm:$0xff]
    %v1561 = vld [vmem:[%s1539 + $0xa8] sm:$0xff]
    %v1562 = vld [vmem:[%s1539 + $0xb0] sm:$0xff]
    %v1563 = vld [vmem:[%s1539 + $0xb8] sm:$0xff]
    %v1564 = vld [vmem:[%s1539 + $0xc0] sm:$0xff]
    %v1565 = vld [vmem:[%s1539 + $0xc8] sm:$0xff]
    %v1566 = vld [vmem:[%s1539 + $0xd0] sm:$0xff]
    %v1567 = vld [vmem:[%s1539 + $0xd8] sm:$0xff]
    %v1568 = vld [vmem:[%s1539 + $0xe0] sm:$0xff]
    %v1569 = vld [vmem:[%s1539 + $0xe8] sm:$0xff]
    %v1570 = vld [vmem:[%s1539 + $0xf0] sm:$0xff]
    %v1571 = vld [vmem:[%s1539 + $0xf8] sm:$0xff]
    %v1572 = vld [vmem:[%s1539 + $0x100] sm:$0xff]
    %v1573 = vld [vmem:[%s1539 + $0x108] sm:$0xff]
    %v1574 = vld [vmem:[%s1539 + $0x110] sm:$0xff]
    %v1575 = vld [vmem:[%s1539 + $0x118] sm:$0xff]
    %v1576 = vld [vmem:[%s1539 + $0x120] sm:$0xff]
    %v1577 = vld [vmem:[%s1539 + $0x128] sm:$0xff]
    %v1578 = vld [vmem:[%s1539 + $0x130] sm:$0xff]
    %v1579 = vld [vmem:[%s1539 + $0x138] sm:$0xff]
    %v1580 = vld [vmem:[%s1539 + $0x140] sm:$0xff]
    %v1581 = vld [vmem:[%s1539 + $0x148] sm:$0xff]
    %v1582 = vld [vmem:[%s1539 + $0x150] sm:$0xff]
    %v1583 = vld [vmem:[%s1539 + $0x158] sm:$0xff]
    %v1584 = vld [vmem:[%s1539 + $0x160] sm:$0xff]
    %v1585 = vld [vmem:[%s1539 + $0x168] sm:$0xff]
    %v1586 = vld [vmem:[%s1539 + $0x170] sm:$0xff]
    %v1587 = vld [vmem:[%s1539 + $0x178] sm:$0xff]
    %s1588 = scalar_lea.vmem [#allocation7], 6
    %v1589 = vld [vmem:[%s1588] sm:$0x1]
    %v1591 = vlaneseq
    %v1592 = vshrl.u32 %v1591, 7
    %v1593 = vsub.s32 0, %v1592
    %v1594 = vrot.slane %v1589, %v1593
    %1596 = vmatprep.subr.mxu0 0.0
    %1597 = vmatpush1.msra.mxu0 %v1540
    %1598 = vmatprep.subr.mxu0 0.0
    %1599 = vmatpush1.msra.mxu0 %v1541
    %1600 = vmatprep.subr.mxu0 0.0
    %1601 = vmatpush1.msra.mxu0 %v1542
    %1602 = vmatprep.subr.mxu0 0.0
    %1603 = vmatpush1.msra.mxu0 %v1543
    %1604 = vmatprep.subr.mxu0 0.0
    %1605 = vmatpush1.msra.mxu0 %v1544
    %1606 = vmatprep.subr.mxu0 0.0
    %1607 = vmatpush1.msra.mxu0 %v1545
    %1608 = vmatprep.subr.mxu0 0.0
    %1609 = vmatpush1.msra.mxu0 %v1546
    %1610 = vmatprep.subr.mxu0 0.0
    %1611 = vmatpush1.msra.mxu0 %v1547
    %1612 = vmatprep.subr.mxu0 0.0
    %1613 = vmatpush1.msra.mxu0 %v1548
    %1614 = vmatprep.subr.mxu0 0.0
    %1615 = vmatpush1.msra.mxu0 %v1549
    %1616 = vmatprep.subr.mxu0 0.0
    %1617 = vmatpush1.msra.mxu0 %v1550
    %1618 = vmatprep.subr.mxu0 0.0
    %1619 = vmatpush1.msra.mxu0 %v1551
    %1620 = vmatprep.subr.mxu0 0.0
    %1621 = vmatpush1.msra.mxu0 %v1552
    %1622 = vmatprep.subr.mxu0 0.0
    %1623 = vmatpush1.msra.mxu0 %v1553
    %1624 = vmatprep.subr.mxu0 0.0
    %1625 = vmatpush1.msra.mxu0 %v1554
    %1626 = vmatprep.subr.mxu0 0.0
    %1627 = vmatpush1.msra.mxu0 %v1555
    %1628 = vmatprep.subr.mxu0 0.0
    %1629 = vmatpush1.msra.mxu0 %v1556
    %1630 = vmatprep.subr.mxu0 0.0
    %1631 = vmatpush1.msra.mxu0 %v1557
    %1632 = vmatprep.subr.mxu0 0.0
    %1633 = vmatpush1.msra.mxu0 %v1558
    %1634 = vmatprep.subr.mxu0 0.0
    %1635 = vmatpush1.msra.mxu0 %v1559
    %1636 = vmatprep.subr.mxu0 0.0
    %1637 = vmatpush1.msra.mxu0 %v1560
    %1638 = vmatprep.subr.mxu0 0.0
    %1639 = vmatpush1.msra.mxu0 %v1561
    %1640 = vmatprep.subr.mxu0 0.0
    %1641 = vmatpush1.msra.mxu0 %v1562
    %1642 = vmatprep.subr.mxu0 0.0
    %1643 = vmatpush1.msra.mxu0 %v1563
    %1644 = vmatprep.subr.mxu0 0.0
    %1645 = vmatpush1.msra.mxu0 %v1564
    %1646 = vmatprep.subr.mxu0 0.0
    %1647 = vmatpush1.msra.mxu0 %v1565
    %1648 = vmatprep.subr.mxu0 0.0
    %1649 = vmatpush1.msra.mxu0 %v1566
    %1650 = vmatprep.subr.mxu0 0.0
    %1651 = vmatpush1.msra.mxu0 %v1567
    %1652 = vmatprep.subr.mxu0 0.0
    %1653 = vmatpush1.msra.mxu0 %v1568
    %1654 = vmatprep.subr.mxu0 0.0
    %1655 = vmatpush1.msra.mxu0 %v1569
    %1656 = vmatprep.subr.mxu0 0.0
    %1657 = vmatpush1.msra.mxu0 %v1570
    %1658 = vmatprep.subr.mxu0 0.0
    %1659 = vmatpush1.msra.mxu0 %v1571
    %1660 = vmatprep.mubr.f32.mxu0 %v645
    %1661 = vmatmul.mubr.f32.gmra.mrb[0].mxu0 %v654
    %v1662 = vpop.f32.mrb[0].mxu0
    %v1663 = vadd.f32 %v1594, %v1662
    %v1664 = vpop.f32.mrb[0].mxu0
    %1665 = vmatprep.mubr.f32.mxu0 %v646
    %1666 = vmatmul.mubr.f32.gmra.mrb[0].mxu0 %v651
    %v1667 = vpop.f32.mrb[0].mxu0
    %v1668 = vadd.f32 %v1594, %v1667
    %v1669 = vpop.f32.mrb[0].mxu0
    %1670 = vdwg.mxu0
    %1671 = vmatprep.subr.mxu0 0.0
    %1672 = vmatpush1.msra.mxu0 %v1572
    %1673 = vmatprep.subr.mxu0 0.0
    %1674 = vmatpush1.msra.mxu0 %v1573
    %1675 = vmatprep.subr.mxu0 0.0
    %1676 = vmatpush1.msra.mxu0 %v1574
    %1677 = vmatprep.subr.mxu0 0.0
    %1678 = vmatpush1.msra.mxu0 %v1575
    %1679 = vmatprep.subr.mxu0 0.0
    %1680 = vmatpush1.msra.mxu0 %v1576
    %1681 = vmatprep.subr.mxu0 0.0
    %1682 = vmatpush1.msra.mxu0 %v1577
    %1683 = vmatprep.subr.mxu0 0.0
    %1684 = vmatpush1.msra.mxu0 %v1578
    %1685 = vmatprep.subr.mxu0 0.0
    %1686 = vmatpush1.msra.mxu0 %v1579
    %1687 = vmatprep.subr.mxu0 0.0
    %1688 = vmatpush1.msra.mxu0 %v1580
    %1689 = vmatprep.subr.mxu0 0.0
    %1690 = vmatpush1.msra.mxu0 %v1581
    %1691 = vmatprep.subr.mxu0 0.0
    %1692 = vmatpush1.msra.mxu0 %v1582
    %1693 = vmatprep.subr.mxu0 0.0
    %1694 = vmatpush1.msra.mxu0 %v1583
    %1695 = vmatprep.subr.mxu0 0.0
    %1696 = vmatpush1.msra.mxu0 %v1584
    %1697 = vmatprep.subr.mxu0 0.0
    %1698 = vmatpush1.msra.mxu0 %v1585
    %1699 = vmatprep.subr.mxu0 0.0
    %1700 = vmatpush1.msra.mxu0 %v1586
    %1701 = vmatprep.subr.mxu0 0.0
    %1702 = vmatpush1.msra.mxu0 %v1587
    %1703 = vmatprep.subr.mxu0 0.0
    %1704 = vmatpush1.msra.mxu0 0.0
    %1705 = vmatprep.subr.mxu0 0.0
    %1706 = vmatpush1.msra.mxu0 0.0
    %1707 = vmatprep.subr.mxu0 0.0
    %1708 = vmatpush1.msra.mxu0 0.0
    %1709 = vmatprep.subr.mxu0 0.0
    %1710 = vmatpush1.msra.mxu0 0.0
    %1711 = vmatprep.subr.mxu0 0.0
    %1712 = vmatpush1.msra.mxu0 0.0
    %1713 = vmatprep.subr.mxu0 0.0
    %1714 = vmatpush1.msra.mxu0 0.0
    %1715 = vmatprep.subr.mxu0 0.0
    %1716 = vmatpush1.msra.mxu0 0.0
    %1717 = vmatprep.subr.mxu0 0.0
    %1718 = vmatpush1.msra.mxu0 0.0
    %1719 = vmatprep.subr.mxu0 0.0
    %1720 = vmatpush1.msra.mxu0 0.0
    %1721 = vmatprep.subr.mxu0 0.0
    %1722 = vmatpush1.msra.mxu0 0.0
    %1723 = vmatprep.subr.mxu0 0.0
    %1724 = vmatpush1.msra.mxu0 0.0
    %1725 = vmatprep.subr.mxu0 0.0
    %1726 = vmatpush1.msra.mxu0 0.0
    %1727 = vmatprep.subr.mxu0 0.0
    %1728 = vmatpush1.msra.mxu0 0.0
    %1729 = vmatprep.subr.mxu0 0.0
    %1730 = vmatpush1.msra.mxu0 0.0
    %1731 = vmatprep.subr.mxu0 0.0
    %1732 = vmatpush1.msra.mxu0 0.0
    %1733 = vmatprep.subr.mxu0 0.0
    %1734 = vmatpush1.msra.mxu0 0.0
    %1735 = vmatprep.mubr.f32.mxu0 0.0
    %1736 = vmatmul.mubr.f32.gmra.mrb[0].mxu0 %v657
    %v1737 = vpop.f32.mrb[0].mxu0
    %v1738 = vadd.f32 %v1663, %v1737
    %v1739 = vpop.f32.mrb[0].mxu0
    %1740 = vmatprep.mubr.f32.mxu0 0.0
    %1741 = vmatmul.mubr.f32.gmra.mrb[0].mxu0 %v660
    %v1742 = vpop.f32.mrb[0].mxu0
    %v1743 = vadd.f32 %v1668, %v1742
    %v1744 = vpop.f32.mrb[0].mxu0
    %1745 = vdwg.mxu0
    %v1746 = vmax.f32 %v1738, 0.0
    %v1747 = vmax.f32 %v1743, 0.0
    %v1750 = vrot.slane %v1746, 7
    %v1751 = vrot.slane %v1747, 7
    %v1752 = vsel %vm203, %v1750, %v1751
    %v1755 = vsel %vm203, 0.0, %v1750
    %v1756 = vrot.slane %v1746, 1
    %v1757 = vrot.slane %v1747, 1
    %v1758 = vsel %vm210, %v1756, %v1757
    %v1761 = vsel %vm210, %v1757, 0.0
    %s1762 = scalar_lea.vmem [#allocation6], 2688
    %v1763 = vld [vmem:[%s1762] sm:$0xff]
    %v1764 = vld [vmem:[%s1762 + $0x8] sm:$0xff]
    %v1765 = vld [vmem:[%s1762 + $0x10] sm:$0xff]
    %v1766 = vld [vmem:[%s1762 + $0x18] sm:$0xff]
    %v1767 = vld [vmem:[%s1762 + $0x20] sm:$0xff]
    %v1768 = vld [vmem:[%s1762 + $0x28] sm:$0xff]
    %v1769 = vld [vmem:[%s1762 + $0x30] sm:$0xff]
    %v1770 = vld [vmem:[%s1762 + $0x38] sm:$0xff]
    %v1771 = vld [vmem:[%s1762 + $0x40] sm:$0xff]
    %v1772 = vld [vmem:[%s1762 + $0x48] sm:$0xff]
    %v1773 = vld [vmem:[%s1762 + $0x50] sm:$0xff]
    %v1774 = vld [vmem:[%s1762 + $0x58] sm:$0xff]
    %v1775 = vld [vmem:[%s1762 + $0x60] sm:$0xff]
    %v1776 = vld [vmem:[%s1762 + $0x68] sm:$0xff]
    %v1777 = vld [vmem:[%s1762 + $0x70] sm:$0xff]
    %v1778 = vld [vmem:[%s1762 + $0x78] sm:$0xff]
    %v1779 = vld [vmem:[%s1762 + $0x80] sm:$0xff]
    %v1780 = vld [vmem:[%s1762 + $0x88] sm:$0xff]
    %v1781 = vld [vmem:[%s1762 + $0x90] sm:$0xff]
    %v1782 = vld [vmem:[%s1762 + $0x98] sm:$0xff]
    %v1783 = vld [vmem:[%s1762 + $0xa0] sm:$0xff]
    %v1784 = vld [vmem:[%s1762 + $0xa8] sm:$0xff]
    %v1785 = vld [vmem:[%s1762 + $0xb0] sm:$0xff]
    %v1786 = vld [vmem:[%s1762 + $0xb8] sm:$0xff]
    %v1787 = vld [vmem:[%s1762 + $0xc0] sm:$0xff]
    %v1788 = vld [vmem:[%s1762 + $0xc8] sm:$0xff]
    %v1789 = vld [vmem:[%s1762 + $0xd0] sm:$0xff]
    %v1790 = vld [vmem:[%s1762 + $0xd8] sm:$0xff]
    %v1791 = vld [vmem:[%s1762 + $0xe0] sm:$0xff]
    %v1792 = vld [vmem:[%s1762 + $0xe8] sm:$0xff]
    %v1793 = vld [vmem:[%s1762 + $0xf0] sm:$0xff]
    %v1794 = vld [vmem:[%s1762 + $0xf8] sm:$0xff]
    %v1795 = vld [vmem:[%s1762 + $0x100] sm:$0xff]
    %v1796 = vld [vmem:[%s1762 + $0x108] sm:$0xff]
    %v1797 = vld [vmem:[%s1762 + $0x110] sm:$0xff]
    %v1798 = vld [vmem:[%s1762 + $0x118] sm:$0xff]
    %v1799 = vld [vmem:[%s1762 + $0x120] sm:$0xff]
    %v1800 = vld [vmem:[%s1762 + $0x128] sm:$0xff]
    %v1801 = vld [vmem:[%s1762 + $0x130] sm:$0xff]
    %v1802 = vld [vmem:[%s1762 + $0x138] sm:$0xff]
    %v1803 = vld [vmem:[%s1762 + $0x140] sm:$0xff]
    %v1804 = vld [vmem:[%s1762 + $0x148] sm:$0xff]
    %v1805 = vld [vmem:[%s1762 + $0x150] sm:$0xff]
    %v1806 = vld [vmem:[%s1762 + $0x158] sm:$0xff]
    %v1807 = vld [vmem:[%s1762 + $0x160] sm:$0xff]
    %v1808 = vld [vmem:[%s1762 + $0x168] sm:$0xff]
    %v1809 = vld [vmem:[%s1762 + $0x170] sm:$0xff]
    %v1810 = vld [vmem:[%s1762 + $0x178] sm:$0xff]
    %s1811 = scalar_lea.vmem [#allocation7], 7
    %v1812 = vld [vmem:[%s1811] sm:$0x1]
    %v1814 = vlaneseq
    %v1815 = vshrl.u32 %v1814, 7
    %v1816 = vsub.s32 0, %v1815
    %v1817 = vrot.slane %v1812, %v1816
    %1819 = vmatprep.subr.mxu0 0.0
    %1820 = vmatpush1.msra.mxu0 %v1763
    %1821 = vmatprep.subr.mxu0 0.0
    %1822 = vmatpush1.msra.mxu0 %v1764
    %1823 = vmatprep.subr.mxu0 0.0
    %1824 = vmatpush1.msra.mxu0 %v1765
    %1825 = vmatprep.subr.mxu0 0.0
    %1826 = vmatpush1.msra.mxu0 %v1766
    %1827 = vmatprep.subr.mxu0 0.0
    %1828 = vmatpush1.msra.mxu0 %v1767
    %1829 = vmatprep.subr.mxu0 0.0
    %1830 = vmatpush1.msra.mxu0 %v1768
    %1831 = vmatprep.subr.mxu0 0.0
    %1832 = vmatpush1.msra.mxu0 %v1769
    %1833 = vmatprep.subr.mxu0 0.0
    %1834 = vmatpush1.msra.mxu0 %v1770
    %1835 = vmatprep.subr.mxu0 0.0
    %1836 = vmatpush1.msra.mxu0 %v1771
    %1837 = vmatprep.subr.mxu0 0.0
    %1838 = vmatpush1.msra.mxu0 %v1772
    %1839 = vmatprep.subr.mxu0 0.0
    %1840 = vmatpush1.msra.mxu0 %v1773
    %1841 = vmatprep.subr.mxu0 0.0
    %1842 = vmatpush1.msra.mxu0 %v1774
    %1843 = vmatprep.subr.mxu0 0.0
    %1844 = vmatpush1.msra.mxu0 %v1775
    %1845 = vmatprep.subr.mxu0 0.0
    %1846 = vmatpush1.msra.mxu0 %v1776
    %1847 = vmatprep.subr.mxu0 0.0
    %1848 = vmatpush1.msra.mxu0 %v1777
    %1849 = vmatprep.subr.mxu0 0.0
    %1850 = vmatpush1.msra.mxu0 %v1778
    %1851 = vmatprep.subr.mxu0 0.0
    %1852 = vmatpush1.msra.mxu0 %v1779
    %1853 = vmatprep.subr.mxu0 0.0
    %1854 = vmatpush1.msra.mxu0 %v1780
    %1855 = vmatprep.subr.mxu0 0.0
    %1856 = vmatpush1.msra.mxu0 %v1781
    %1857 = vmatprep.subr.mxu0 0.0
    %1858 = vmatpush1.msra.mxu0 %v1782
    %1859 = vmatprep.subr.mxu0 0.0
    %1860 = vmatpush1.msra.mxu0 %v1783
    %1861 = vmatprep.subr.mxu0 0.0
    %1862 = vmatpush1.msra.mxu0 %v1784
    %1863 = vmatprep.subr.mxu0 0.0
    %1864 = vmatpush1.msra.mxu0 %v1785
    %1865 = vmatprep.subr.mxu0 0.0
    %1866 = vmatpush1.msra.mxu0 %v1786
    %1867 = vmatprep.subr.mxu0 0.0
    %1868 = vmatpush1.msra.mxu0 %v1787
    %1869 = vmatprep.subr.mxu0 0.0
    %1870 = vmatpush1.msra.mxu0 %v1788
    %1871 = vmatprep.subr.mxu0 0.0
    %1872 = vmatpush1.msra.mxu0 %v1789
    %1873 = vmatprep.subr.mxu0 0.0
    %1874 = vmatpush1.msra.mxu0 %v1790
    %1875 = vmatprep.subr.mxu0 0.0
    %1876 = vmatpush1.msra.mxu0 %v1791
    %1877 = vmatprep.subr.mxu0 0.0
    %1878 = vmatpush1.msra.mxu0 %v1792
    %1879 = vmatprep.subr.mxu0 0.0
    %1880 = vmatpush1.msra.mxu0 %v1793
    %1881 = vmatprep.subr.mxu0 0.0
    %1882 = vmatpush1.msra.mxu0 %v1794
    %1883 = vmatprep.mubr.f32.mxu0 %v1746
    %1884 = vmatmul.mubr.f32.gmra.mrb[0].mxu0 %v1755
    %v1885 = vpop.f32.mrb[0].mxu0
    %v1886 = vadd.f32 %v1817, %v1885
    %v1887 = vpop.f32.mrb[0].mxu0
    %1888 = vmatprep.mubr.f32.mxu0 %v1747
    %1889 = vmatmul.mubr.f32.gmra.mrb[0].mxu0 %v1752
    %v1890 = vpop.f32.mrb[0].mxu0
    %v1891 = vadd.f32 %v1817, %v1890
    %v1892 = vpop.f32.mrb[0].mxu0
    %1893 = vdwg.mxu0
    %1894 = vmatprep.subr.mxu0 0.0
    %1895 = vmatpush1.msra.mxu0 %v1795
    %1896 = vmatprep.subr.mxu0 0.0
    %1897 = vmatpush1.msra.mxu0 %v1796
    %1898 = vmatprep.subr.mxu0 0.0
    %1899 = vmatpush1.msra.mxu0 %v1797
    %1900 = vmatprep.subr.mxu0 0.0
    %1901 = vmatpush1.msra.mxu0 %v1798
    %1902 = vmatprep.subr.mxu0 0.0
    %1903 = vmatpush1.msra.mxu0 %v1799
    %1904 = vmatprep.subr.mxu0 0.0
    %1905 = vmatpush1.msra.mxu0 %v1800
    %1906 = vmatprep.subr.mxu0 0.0
    %1907 = vmatpush1.msra.mxu0 %v1801
    %1908 = vmatprep.subr.mxu0 0.0
    %1909 = vmatpush1.msra.mxu0 %v1802
    %1910 = vmatprep.subr.mxu0 0.0
    %1911 = vmatpush1.msra.mxu0 %v1803
    %1912 = vmatprep.subr.mxu0 0.0
    %1913 = vmatpush1.msra.mxu0 %v1804
    %1914 = vmatprep.subr.mxu0 0.0
    %1915 = vmatpush1.msra.mxu0 %v1805
    %1916 = vmatprep.subr.mxu0 0.0
    %1917 = vmatpush1.msra.mxu0 %v1806
    %1918 = vmatprep.subr.mxu0 0.0
    %1919 = vmatpush1.msra.mxu0 %v1807
    %1920 = vmatprep.subr.mxu0 0.0
    %1921 = vmatpush1.msra.mxu0 %v1808
    %1922 = vmatprep.subr.mxu0 0.0
    %1923 = vmatpush1.msra.mxu0 %v1809
    %1924 = vmatprep.subr.mxu0 0.0
    %1925 = vmatpush1.msra.mxu0 %v1810
    %1926 = vmatprep.subr.mxu0 0.0
    %1927 = vmatpush1.msra.mxu0 0.0
    %1928 = vmatprep.subr.mxu0 0.0
    %1929 = vmatpush1.msra.mxu0 0.0
    %1930 = vmatprep.subr.mxu0 0.0
    %1931 = vmatpush1.msra.mxu0 0.0
    %1932 = vmatprep.subr.mxu0 0.0
    %1933 = vmatpush1.msra.mxu0 0.0
    %1934 = vmatprep.subr.mxu0 0.0
    %1935 = vmatpush1.msra.mxu0 0.0
    %1936 = vmatprep.subr.mxu0 0.0
    %1937 = vmatpush1.msra.mxu0 0.0
    %1938 = vmatprep.subr.mxu0 0.0
    %1939 = vmatpush1.msra.mxu0 0.0
    %1940 = vmatprep.subr.mxu0 0.0
    %1941 = vmatpush1.msra.mxu0 0.0
    %1942 = vmatprep.subr.mxu0 0.0
    %1943 = vmatpush1.msra.mxu0 0.0
    %1944 = vmatprep.subr.mxu0 0.0
    %1945 = vmatpush1.msra.mxu0 0.0
    %1946 = vmatprep.subr.mxu0 0.0
    %1947 = vmatpush1.msra.mxu0 0.0
    %1948 = vmatprep.subr.mxu0 0.0
    %1949 = vmatpush1.msra.mxu0 0.0
    %1950 = vmatprep.subr.mxu0 0.0
    %1951 = vmatpush1.msra.mxu0 0.0
    %1952 = vmatprep.subr.mxu0 0.0
    %1953 = vmatpush1.msra.mxu0 0.0
    %1954 = vmatprep.subr.mxu0 0.0
    %1955 = vmatpush1.msra.mxu0 0.0
    %1956 = vmatprep.subr.mxu0 0.0
    %1957 = vmatpush1.msra.mxu0 0.0
    %1958 = vmatprep.mubr.f32.mxu0 0.0
    %1959 = vmatmul.mubr.f32.gmra.mrb[0].mxu0 %v1758
    %v1960 = vpop.f32.mrb[0].mxu0
    %v1961 = vadd.f32 %v1886, %v1960
    %v1962 = vpop.f32.mrb[0].mxu0
    %1963 = vmatprep.mubr.f32.mxu0 0.0
    %1964 = vmatmul.mubr.f32.gmra.mrb[0].mxu0 %v1761
    %v1965 = vpop.f32.mrb[0].mxu0
    %v1966 = vadd.f32 %v1891, %v1965
    %v1967 = vpop.f32.mrb[0].mxu0
    %1968 = vdwg.mxu0
    %v1969 = vadd.f32 %v1961, %v645
    %v1970 = vadd.f32 %v1966, %v646
    %v1971 = vld [vmem:[#allocation2] sm:$0xff]
    %v1974 = vrot.slane %v1969, 7
    %v1975 = vrot.slane %v1970, 7
    %v1976 = vsel %vm203, %v1974, %v1975
    %v1979 = vsel %vm203, 0.0, %v1974
    %v1980 = vrot.slane %v1969, 1
    %v1981 = vrot.slane %v1970, 1
    %v1982 = vsel %vm210, %v1980, %v1981
    %v1985 = vsel %vm210, %v1981, 0.0
    %vm1986 = vcmask 130048
    %v1988 = vsel %vm1986, %v1971, 0
    %1990 = vmatprep.subr.mxu0 %v1969
    %1991 = vmatpush1.msra.mxu0 %v1979
    %1992 = vmatprep.subr.mxu0 %v1970
    %1993 = vmatpush1.msra.mxu0 %v1976
    %1994 = vmatprep.subr.mxu0 0.0
    %1995 = vmatpush1.msra.mxu0 0.0
    %1996 = vmatprep.subr.mxu0 0.0
    %1997 = vmatpush1.msra.mxu0 0.0
    %1998 = vmatprep.subr.mxu0 0.0
    %1999 = vmatpush1.msra.mxu0 0.0
    %2000 = vmatprep.subr.mxu0 0.0
    %2001 = vmatpush1.msra.mxu0 0.0
    %2002 = vmatprep.subr.mxu0 0.0
    %2003 = vmatpush1.msra.mxu0 0.0
    %2004 = vmatprep.subr.mxu0 0.0
    %2005 = vmatpush1.msra.mxu0 0.0
    %2006 = vmatprep.subr.mxu0 0.0
    %2007 = vmatpush1.msra.mxu0 0.0
    %2008 = vmatprep.subr.mxu0 0.0
    %2009 = vmatpush1.msra.mxu0 0.0
    %2010 = vmatprep.subr.mxu0 0.0
    %2011 = vmatpush1.msra.mxu0 0.0
    %2012 = vmatprep.subr.mxu0 0.0
    %2013 = vmatpush1.msra.mxu0 0.0
    %2014 = vmatprep.subr.mxu0 0.0
    %2015 = vmatpush1.msra.mxu0 0.0
    %2016 = vmatprep.subr.mxu0 0.0
    %2017 = vmatpush1.msra.mxu0 0.0
    %2018 = vmatprep.subr.mxu0 0.0
    %2019 = vmatpush1.msra.mxu0 0.0
    %2020 = vmatprep.subr.mxu0 0.0
    %2021 = vmatpush1.msra.mxu0 0.0
    %2022 = vmatprep.subr.mxu0 0.0
    %2023 = vmatpush1.msra.mxu0 0.0
    %2024 = vmatprep.subr.mxu0 0.0
    %2025 = vmatpush1.msra.mxu0 0.0
    %2026 = vmatprep.subr.mxu0 0.0
    %2027 = vmatpush1.msra.mxu0 0.0
    %2028 = vmatprep.subr.mxu0 0.0
    %2029 = vmatpush1.msra.mxu0 0.0
    %2030 = vmatprep.subr.mxu0 0.0
    %2031 = vmatpush1.msra.mxu0 0.0
    %2032 = vmatprep.subr.mxu0 0.0
    %2033 = vmatpush1.msra.mxu0 0.0
    %2034 = vmatprep.subr.mxu0 0.0
    %2035 = vmatpush1.msra.mxu0 0.0
    %2036 = vmatprep.subr.mxu0 0.0
    %2037 = vmatpush1.msra.mxu0 0.0
    %2038 = vmatprep.subr.mxu0 0.0
    %2039 = vmatpush1.msra.mxu0 0.0
    %2040 = vmatprep.subr.mxu0 0.0
    %2041 = vmatpush1.msra.mxu0 0.0
    %2042 = vmatprep.subr.mxu0 0.0
    %2043 = vmatpush1.msra.mxu0 0.0
    %2044 = vmatprep.subr.mxu0 0.0
    %2045 = vmatpush1.msra.mxu0 0.0
    %2046 = vmatprep.subr.mxu0 0.0
    %2047 = vmatpush1.msra.mxu0 0.0
    %2048 = vmatprep.subr.mxu0 0.0
    %2049 = vmatpush1.msra.mxu0 0.0
    %2050 = vmatprep.subr.mxu0 0.0
    %2051 = vmatpush1.msra.mxu0 0.0
    %2052 = vmatprep.subr.mxu0 0.0
    %2053 = vmatpush1.msra.mxu0 0.0
    %2054 = vmatprep.mubr.f32.mxu0 0.0
    %2055 = vmatmul.mubr.f32.gmra.mrb[0].mxu0 %v1988
    %v2056 = vpop.f32.mrb[0].mxu0
    %v2057 = vadd.f32 0.0, %v2056
    %v2058 = vpop.f32.mrb[0].mxu0
    %v2059 = vadd.f32 0.0, %v2058
    %2060 = vdwg.mxu0
    %2061 = vmatprep.subr.mxu0 0.0
    %2062 = vmatpush1.msra.mxu0 %v1982
    %2063 = vmatprep.subr.mxu0 0.0
    %2064 = vmatpush1.msra.mxu0 %v1985
    %2065 = vmatprep.subr.mxu0 0.0
    %2066 = vmatpush1.msra.mxu0 0.0
    %2067 = vmatprep.subr.mxu0 0.0
    %2068 = vmatpush1.msra.mxu0 0.0
    %2069 = vmatprep.subr.mxu0 0.0
    %2070 = vmatpush1.msra.mxu0 0.0
    %2071 = vmatprep.subr.mxu0 0.0
    %2072 = vmatpush1.msra.mxu0 0.0
    %2073 = vmatprep.subr.mxu0 0.0
    %2074 = vmatpush1.msra.mxu0 0.0
    %2075 = vmatprep.subr.mxu0 0.0
    %2076 = vmatpush1.msra.mxu0 0.0
    %2077 = vmatprep.subr.mxu0 0.0
    %2078 = vmatpush1.msra.mxu0 0.0
    %2079 = vmatprep.subr.mxu0 0.0
    %2080 = vmatpush1.msra.mxu0 0.0
    %2081 = vmatprep.subr.mxu0 0.0
    %2082 = vmatpush1.msra.mxu0 0.0
    %2083 = vmatprep.subr.mxu0 0.0
    %2084 = vmatpush1.msra.mxu0 0.0
    %2085 = vmatprep.subr.mxu0 0.0
    %2086 = vmatpush1.msra.mxu0 0.0
    %2087 = vmatprep.subr.mxu0 0.0
    %2088 = vmatpush1.msra.mxu0 0.0
    %2089 = vmatprep.subr.mxu0 0.0
    %2090 = vmatpush1.msra.mxu0 0.0
    %2091 = vmatprep.subr.mxu0 0.0
    %2092 = vmatpush1.msra.mxu0 0.0
    %2093 = vmatprep.subr.mxu0 0.0
    %2094 = vmatpush1.msra.mxu0 0.0
    %2095 = vmatprep.subr.mxu0 0.0
    %2096 = vmatpush1.msra.mxu0 0.0
    %2097 = vmatprep.subr.mxu0 0.0
    %2098 = vmatpush1.msra.mxu0 0.0
    %2099 = vmatprep.subr.mxu0 0.0
    %2100 = vmatpush1.msra.mxu0 0.0
    %2101 = vmatprep.subr.mxu0 0.0
    %2102 = vmatpush1.msra.mxu0 0.0
    %2103 = vmatprep.subr.mxu0 0.0
    %2104 = vmatpush1.msra.mxu0 0.0
    %2105 = vmatprep.subr.mxu0 0.0
    %2106 = vmatpush1.msra.mxu0 0.0
    %2107 = vmatprep.subr.mxu0 0.0
    %2108 = vmatpush1.msra.mxu0 0.0
    %2109 = vmatprep.subr.mxu0 0.0
    %2110 = vmatpush1.msra.mxu0 0.0
    %2111 = vmatprep.subr.mxu0 0.0
    %2112 = vmatpush1.msra.mxu0 0.0
    %2113 = vmatprep.subr.mxu0 0.0
    %2114 = vmatpush1.msra.mxu0 0.0
    %2115 = vmatprep.subr.mxu0 0.0
    %2116 = vmatpush1.msra.mxu0 0.0
    %2117 = vmatprep.subr.mxu0 0.0
    %2118 = vmatpush1.msra.mxu0 0.0
    %2119 = vmatprep.subr.mxu0 0.0
    %2120 = vmatpush1.msra.mxu0 0.0
    %2121 = vmatprep.subr.mxu0 0.0
    %2122 = vmatpush1.msra.mxu0 0.0
    %2123 = vmatprep.subr.mxu0 0.0
    %2124 = vmatpush1.msra.mxu0 0.0
    %2125 = vmatprep.mubr.f32.mxu0 0.0
    %2126 = vmatmul.mubr.f32.gmra.mrb[0].mxu0 %v1988
    %v2127 = vpop.f32.mrb[0].mxu0
    %v2128 = vadd.f32 0.0, %v2127
    %v2129 = vpop.f32.mrb[0].mxu0
    %2130 = vdwg.mxu0
    %v2131 = vld [vmem:[#allocation12] sm:$0xff]
    %v2132 = vld [vmem:[#allocation12 + $0x8] sm:$0xff]
    %v2133 = vld [vmem:[#allocation12 + $0x10] sm:$0xff]
    %v2134 = vld [vmem:[#allocation12 + $0x18] sm:$0xff]
    %v2135 = vld [vmem:[#allocation12 + $0x20] sm:$0xff]
    %v2136 = vld [vmem:[#allocation12 + $0x28] sm:$0xff]
    %v2137 = vld [vmem:[#allocation12 + $0x30] sm:$0xff]
    %v2138 = vld [vmem:[#allocation12 + $0x38] sm:$0xff]
    %v2139 = vld [vmem:[#allocation12 + $0x40] sm:$0xff]
    %v2140 = vld [vmem:[#allocation12 + $0x48] sm:$0xff]
    %v2141 = vld [vmem:[#allocation12 + $0x50] sm:$0xff]
    %v2142 = vld [vmem:[#allocation12 + $0x58] sm:$0xff]
    %v2143 = vld [vmem:[#allocation12 + $0x60] sm:$0xff]
    %v2144 = vld [vmem:[#allocation12 + $0x68] sm:$0xff]
    %v2145 = vld [vmem:[#allocation12 + $0x70] sm:$0xff]
    %v2146 = vld [vmem:[#allocation12 + $0x78] sm:$0xff]
    %v2147 = vld [vmem:[#allocation12 + $0x80] sm:$0xff]
    %v2148 = vld [vmem:[#allocation12 + $0x88] sm:$0xff]
    %v2149 = vld [vmem:[#allocation12 + $0x90] sm:$0xff]
    %v2150 = vld [vmem:[#allocation12 + $0x98] sm:$0xff]
    %v2151 = vld [vmem:[#allocation12 + $0xa0] sm:$0xff]
    %v2152 = vld [vmem:[#allocation12 + $0xa8] sm:$0xff]
    %v2153 = vld [vmem:[#allocation12 + $0xb0] sm:$0xff]
    %v2154 = vld [vmem:[#allocation12 + $0xb8] sm:$0xff]
    %v2155 = vld [vmem:[#allocation12 + $0xc0] sm:$0xff]
    %v2156 = vld [vmem:[#allocation12 + $0xc8] sm:$0xff]
    %v2157 = vld [vmem:[#allocation12 + $0xd0] sm:$0xff]
    %v2158 = vld [vmem:[#allocation12 + $0xd8] sm:$0xff]
    %v2159 = vld [vmem:[#allocation12 + $0xe0] sm:$0xff]
    %v2160 = vld [vmem:[#allocation12 + $0xe8] sm:$0xff]
    %v2161 = vld [vmem:[#allocation12 + $0xf0] sm:$0xff]
    %v2162 = vld [vmem:[#allocation12 + $0xf8] sm:$0xff]
    %v2163 = vld [vmem:[#allocation12 + $0x100] sm:$0xff]
    %v2164 = vld [vmem:[#allocation12 + $0x108] sm:$0xff]
    %v2165 = vld [vmem:[#allocation12 + $0x110] sm:$0xff]
    %v2166 = vld [vmem:[#allocation12 + $0x118] sm:$0xff]
    %v2167 = vld [vmem:[#allocation12 + $0x120] sm:$0xff]
    %v2168 = vld [vmem:[#allocation12 + $0x128] sm:$0xff]
    %v2169 = vld [vmem:[#allocation12 + $0x130] sm:$0xff]
    %v2170 = vld [vmem:[#allocation12 + $0x138] sm:$0xff]
    %v2171 = vld [vmem:[#allocation12 + $0x140] sm:$0xff]
    %v2172 = vld [vmem:[#allocation12 + $0x148] sm:$0xff]
    %v2173 = vld [vmem:[#allocation12 + $0x150] sm:$0xff]
    %v2174 = vld [vmem:[#allocation12 + $0x158] sm:$0xff]
    %v2175 = vld [vmem:[#allocation12 + $0x160] sm:$0xff]
    %v2176 = vld [vmem:[#allocation12 + $0x168] sm:$0xff]
    %v2177 = vld [vmem:[#allocation12 + $0x170] sm:$0xff]
    %v2178 = vld [vmem:[#allocation12 + $0x178] sm:$0xff]
    %v2179 = vld [vmem:[#allocation13] sm:$0x1]
    %v2181 = vlaneseq
    %v2182 = vshrl.u32 %v2181, 7
    %v2183 = vsub.s32 0, %v2182
    %v2184 = vrot.slane %v2179, %v2183
    %2186 = vmatprep.subr.mxu0 0.0
    %2187 = vmatpush1.msra.mxu0 %v2131
    %2188 = vmatprep.subr.mxu0 0.0
    %2189 = vmatpush1.msra.mxu0 %v2132
    %2190 = vmatprep.subr.mxu0 0.0
    %2191 = vmatpush1.msra.mxu0 %v2133
    %2192 = vmatprep.subr.mxu0 0.0
    %2193 = vmatpush1.msra.mxu0 %v2134
    %2194 = vmatprep.subr.mxu0 0.0
    %2195 = vmatpush1.msra.mxu0 %v2135
    %2196 = vmatprep.subr.mxu0 0.0
    %2197 = vmatpush1.msra.mxu0 %v2136
    %2198 = vmatprep.subr.mxu0 0.0
    %2199 = vmatpush1.msra.mxu0 %v2137
    %2200 = vmatprep.subr.mxu0 0.0
    %2201 = vmatpush1.msra.mxu0 %v2138
    %2202 = vmatprep.subr.mxu0 0.0
    %2203 = vmatpush1.msra.mxu0 %v2139
    %2204 = vmatprep.subr.mxu0 0.0
    %2205 = vmatpush1.msra.mxu0 %v2140
    %2206 = vmatprep.subr.mxu0 0.0
    %2207 = vmatpush1.msra.mxu0 %v2141
    %2208 = vmatprep.subr.mxu0 0.0
    %2209 = vmatpush1.msra.mxu0 %v2142
    %2210 = vmatprep.subr.mxu0 0.0
    %2211 = vmatpush1.msra.mxu0 %v2143
    %2212 = vmatprep.subr.mxu0 0.0
    %2213 = vmatpush1.msra.mxu0 %v2144
    %2214 = vmatprep.subr.mxu0 0.0
    %2215 = vmatpush1.msra.mxu0 %v2145
    %2216 = vmatprep.subr.mxu0 0.0
    %2217 = vmatpush1.msra.mxu0 %v2146
    %2218 = vmatprep.subr.mxu0 0.0
    %2219 = vmatpush1.msra.mxu0 %v2147
    %2220 = vmatprep.subr.mxu0 0.0
    %2221 = vmatpush1.msra.mxu0 %v2148
    %2222 = vmatprep.subr.mxu0 0.0
    %2223 = vmatpush1.msra.mxu0 %v2149
    %2224 = vmatprep.subr.mxu0 0.0
    %2225 = vmatpush1.msra.mxu0 %v2150
    %2226 = vmatprep.subr.mxu0 0.0
    %2227 = vmatpush1.msra.mxu0 %v2151
    %2228 = vmatprep.subr.mxu0 0.0
    %2229 = vmatpush1.msra.mxu0 %v2152
    %2230 = vmatprep.subr.mxu0 0.0
    %2231 = vmatpush1.msra.mxu0 %v2153
    %2232 = vmatprep.subr.mxu0 0.0
    %2233 = vmatpush1.msra.mxu0 %v2154
    %2234 = vmatprep.subr.mxu0 0.0
    %2235 = vmatpush1.msra.mxu0 %v2155
    %2236 = vmatprep.subr.mxu0 0.0
    %2237 = vmatpush1.msra.mxu0 %v2156
    %2238 = vmatprep.subr.mxu0 0.0
    %2239 = vmatpush1.msra.mxu0 %v2157
    %2240 = vmatprep.subr.mxu0 0.0
    %2241 = vmatpush1.msra.mxu0 %v2158
    %2242 = vmatprep.subr.mxu0 0.0
    %2243 = vmatpush1.msra.mxu0 %v2159
    %2244 = vmatprep.subr.mxu0 0.0
    %2245 = vmatpush1.msra.mxu0 %v2160
    %2246 = vmatprep.subr.mxu0 0.0
    %2247 = vmatpush1.msra.mxu0 %v2161
    %2248 = vmatprep.subr.mxu0 0.0
    %2249 = vmatpush1.msra.mxu0 %v2162
    %2250 = vmatprep.mubr.f32.mxu0 %v2059
    %2251 = vmatmul.mubr.f32.gmra.mrb[0].mxu0 %v2057
    %v2252 = vpop.f32.mrb[0].mxu0
    %v2253 = vadd.f32 %v2184, %v2252
    %v2254 = vpop.f32.mrb[0].mxu0
    %2255 = vdwg.mxu0
    %2256 = vmatprep.subr.mxu0 0.0
    %2257 = vmatpush1.msra.mxu0 %v2163
    %2258 = vmatprep.subr.mxu0 0.0
    %2259 = vmatpush1.msra.mxu0 %v2164
    %2260 = vmatprep.subr.mxu0 0.0
    %2261 = vmatpush1.msra.mxu0 %v2165
    %2262 = vmatprep.subr.mxu0 0.0
    %2263 = vmatpush1.msra.mxu0 %v2166
    %2264 = vmatprep.subr.mxu0 0.0
    %2265 = vmatpush1.msra.mxu0 %v2167
    %2266 = vmatprep.subr.mxu0 0.0
    %2267 = vmatpush1.msra.mxu0 %v2168
    %2268 = vmatprep.subr.mxu0 0.0
    %2269 = vmatpush1.msra.mxu0 %v2169
    %2270 = vmatprep.subr.mxu0 0.0
    %2271 = vmatpush1.msra.mxu0 %v2170
    %2272 = vmatprep.subr.mxu0 0.0
    %2273 = vmatpush1.msra.mxu0 %v2171
    %2274 = vmatprep.subr.mxu0 0.0
    %2275 = vmatpush1.msra.mxu0 %v2172
    %2276 = vmatprep.subr.mxu0 0.0
    %2277 = vmatpush1.msra.mxu0 %v2173
    %2278 = vmatprep.subr.mxu0 0.0
    %2279 = vmatpush1.msra.mxu0 %v2174
    %2280 = vmatprep.subr.mxu0 0.0
    %2281 = vmatpush1.msra.mxu0 %v2175
    %2282 = vmatprep.subr.mxu0 0.0
    %2283 = vmatpush1.msra.mxu0 %v2176
    %2284 = vmatprep.subr.mxu0 0.0
    %2285 = vmatpush1.msra.mxu0 %v2177
    %2286 = vmatprep.subr.mxu0 0.0
    %2287 = vmatpush1.msra.mxu0 %v2178
    %2288 = vmatprep.subr.mxu0 0.0
    %2289 = vmatpush1.msra.mxu0 0.0
    %2290 = vmatprep.subr.mxu0 0.0
    %2291 = vmatpush1.msra.mxu0 0.0
    %2292 = vmatprep.subr.mxu0 0.0
    %2293 = vmatpush1.msra.mxu0 0.0
    %2294 = vmatprep.subr.mxu0 0.0
    %2295 = vmatpush1.msra.mxu0 0.0
    %2296 = vmatprep.subr.mxu0 0.0
    %2297 = vmatpush1.msra.mxu0 0.0
    %2298 = vmatprep.subr.mxu0 0.0
    %2299 = vmatpush1.msra.mxu0 0.0
    %2300 = vmatprep.subr.mxu0 0.0
    %2301 = vmatpush1.msra.mxu0 0.0
    %2302 = vmatprep.subr.mxu0 0.0
    %2303 = vmatpush1.msra.mxu0 0.0
    %2304 = vmatprep.subr.mxu0 0.0
    %2305 = vmatpush1.msra.mxu0 0.0
    %2306 = vmatprep.subr.mxu0 0.0
    %2307 = vmatpush1.msra.mxu0 0.0
    %2308 = vmatprep.subr.mxu0 0.0
    %2309 = vmatpush1.msra.mxu0 0.0
    %2310 = vmatprep.subr.mxu0 0.0
    %2311 = vmatpush1.msra.mxu0 0.0
    %2312 = vmatprep.subr.mxu0 0.0
    %2313 = vmatpush1.msra.mxu0 0.0
    %2314 = vmatprep.subr.mxu0 0.0
    %2315 = vmatpush1.msra.mxu0 0.0
    %2316 = vmatprep.subr.mxu0 0.0
    %2317 = vmatpush1.msra.mxu0 0.0
    %2318 = vmatprep.subr.mxu0 0.0
    %2319 = vmatpush1.msra.mxu0 0.0
    %2320 = vmatprep.mubr.f32.mxu0 0.0
    %2321 = vmatmul.mubr.f32.gmra.mrb[0].mxu0 %v2128
    %v2322 = vpop.f32.mrb[0].mxu0
    %v2323 = vadd.f32 %v2253, %v2322
    %v2324 = vpop.f32.mrb[0].mxu0
    %2325 = vdwg.mxu0
    %v2327 = vrot.slane %v2323, 7
    %v2329 = vsel %vm203, 0.0, %v2327
    %v2330 = vrot.slane %v2323, 1
    %v2332 = vsel %vm210, %v2330, 0.0
    %2333 = vrot.lane.b32.xlu0 %v2323, 64
    %v2334 = vpop.permute.xlu0 %2333
    %vm2336 = vcmask 523264
    %v2337 = vsel %vm2336, %v2329, %v2334
    %v2338 = vld [vmem:[#allocation9] sm:$0xff]
    %v2339 = vld [vmem:[#allocation9 + $0x8] sm:$0xff]
    %v2340 = vld [vmem:[#allocation9 + $0x10] sm:$0xff]
    %v2341 = vld [vmem:[#allocation9 + $0x18] sm:$0xff]
    %v2342 = vld [vmem:[#allocation9 + $0x20] sm:$0xff]
    %v2343 = vld [vmem:[#allocation9 + $0x28] sm:$0xff]
    %v2344 = vld [vmem:[#allocation9 + $0x30] sm:$0xff]
    %v2345 = vld [vmem:[#allocation9 + $0x38] sm:$0xff]
    %v2346 = vld [vmem:[#allocation9 + $0x40] sm:$0xff]
    %v2347 = vld [vmem:[#allocation9 + $0x48] sm:$0xff]
    %v2348 = vld [vmem:[#allocation9 + $0x50] sm:$0xff]
    %v2349 = vld [vmem:[#allocation9 + $0x58] sm:$0xff]
    %v2350 = vld [vmem:[#allocation9 + $0x60] sm:$0xff]
    %v2351 = vld [vmem:[#allocation9 + $0x68] sm:$0xff]
    %v2352 = vld [vmem:[#allocation9 + $0x70] sm:$0xff]
    %v2353 = vld [vmem:[#allocation9 + $0x78] sm:$0xff]
    %v2354 = vld [vmem:[#allocation9 + $0x80] sm:$0xff]
    %v2355 = vld [vmem:[#allocation9 + $0x88] sm:$0xff]
    %v2356 = vld [vmem:[#allocation9 + $0x90] sm:$0xff]
    %v2357 = vld [vmem:[#allocation9 + $0x98] sm:$0xff]
    %v2358 = vld [vmem:[#allocation9 + $0xa0] sm:$0xff]
    %v2359 = vld [vmem:[#allocation9 + $0xa8] sm:$0xff]
    %v2360 = vld [vmem:[#allocation9 + $0xb0] sm:$0xff]
    %v2361 = vld [vmem:[#allocation9 + $0xb8] sm:$0xff]
    %v2362 = vld [vmem:[#allocation10] sm:$0x1]
    %v2364 = vlaneseq
    %v2365 = vshrl.u32 %v2364, 7
    %v2366 = vsub.s32 0, %v2365
    %v2367 = vrot.slane %v2362, %v2366
    %v2370 = vsel %vm2336, %v2332, 0
    %2372 = vmatprep.subr.mxu0 0.0
    %2373 = vmatpush1.msra.mxu0 %v2338
    %2374 = vmatprep.subr.mxu0 0.0
    %2375 = vmatpush1.msra.mxu0 %v2339
    %2376 = vmatprep.subr.mxu0 0.0
    %2377 = vmatpush1.msra.mxu0 %v2340
    %2378 = vmatprep.subr.mxu0 0.0
    %2379 = vmatpush1.msra.mxu0 %v2341
    %2380 = vmatprep.subr.mxu0 0.0
    %2381 = vmatpush1.msra.mxu0 %v2342
    %2382 = vmatprep.subr.mxu0 0.0
    %2383 = vmatpush1.msra.mxu0 %v2343
    %2384 = vmatprep.subr.mxu0 0.0
    %2385 = vmatpush1.msra.mxu0 %v2344
    %2386 = vmatprep.subr.mxu0 0.0
    %2387 = vmatpush1.msra.mxu0 %v2345
    %2388 = vmatprep.subr.mxu0 0.0
    %2389 = vmatpush1.msra.mxu0 %v2346
    %2390 = vmatprep.subr.mxu0 0.0
    %2391 = vmatpush1.msra.mxu0 %v2347
    %2392 = vmatprep.subr.mxu0 0.0
    %2393 = vmatpush1.msra.mxu0 %v2348
    %2394 = vmatprep.subr.mxu0 0.0
    %2395 = vmatpush1.msra.mxu0 %v2349
    %2396 = vmatprep.subr.mxu0 0.0
    %2397 = vmatpush1.msra.mxu0 %v2350
    %2398 = vmatprep.subr.mxu0 0.0
    %2399 = vmatpush1.msra.mxu0 %v2351
    %2400 = vmatprep.subr.mxu0 0.0
    %2401 = vmatpush1.msra.mxu0 %v2352
    %2402 = vmatprep.subr.mxu0 0.0
    %2403 = vmatpush1.msra.mxu0 %v2353
    %2404 = vmatprep.subr.mxu0 0.0
    %2405 = vmatpush1.msra.mxu0 %v2354
    %2406 = vmatprep.subr.mxu0 0.0
    %2407 = vmatpush1.msra.mxu0 %v2355
    %2408 = vmatprep.subr.mxu0 0.0
    %2409 = vmatpush1.msra.mxu0 %v2356
    %2410 = vmatprep.subr.mxu0 0.0
    %2411 = vmatpush1.msra.mxu0 %v2357
    %2412 = vmatprep.subr.mxu0 0.0
    %2413 = vmatpush1.msra.mxu0 %v2358
    %2414 = vmatprep.subr.mxu0 0.0
    %2415 = vmatpush1.msra.mxu0 %v2359
    %2416 = vmatprep.subr.mxu0 0.0
    %2417 = vmatpush1.msra.mxu0 %v2360
    %2418 = vmatprep.subr.mxu0 0.0
    %2419 = vmatpush1.msra.mxu0 %v2361
    %2420 = vmatprep.subr.mxu0 0.0
    %2421 = vmatpush1.msra.mxu0 0.0
    %2422 = vmatprep.subr.mxu0 0.0
    %2423 = vmatpush1.msra.mxu0 0.0
    %2424 = vmatprep.subr.mxu0 0.0
    %2425 = vmatpush1.msra.mxu0 0.0
    %2426 = vmatprep.subr.mxu0 0.0
    %2427 = vmatpush1.msra.mxu0 0.0
    %2428 = vmatprep.subr.mxu0 0.0
    %2429 = vmatpush1.msra.mxu0 0.0
    %2430 = vmatprep.subr.mxu0 0.0
    %2431 = vmatpush1.msra.mxu0 0.0
    %2432 = vmatprep.subr.mxu0 0.0
    %2433 = vmatpush1.msra.mxu0 0.0
    %2434 = vmatprep.subr.mxu0 0.0
    %2435 = vmatpush1.msra.mxu0 0.0
    %2436 = vmatprep.mubr.f32.mxu0 %v2370
    %2437 = vmatmul.mubr.f32.gmra.mrb[0].mxu0 %v2337
    %v2438 = vpop.f32.mrb[0].mxu0
    %v2439 = vadd.f32 %v2367, %v2438
    %v2440 = vpop.f32.mrb[0].mxu0
    %2441 = vdwg.mxu0
    %v2442 = vmax.f32 %v2439, 0.0
    %v2444 = vrot.slane %v2442, 7
    %v2446 = vsel %vm203, 0.0, %v2444
    %v2447 = vrot.slane %v2442, 1
    %v2449 = vsel %vm210, %v2447, 0.0
    %2450 = vrot.lane.b32.xlu0 %v2442, 64
    %v2451 = vpop.permute.xlu0 %2450
    %v2453 = vsel %vm2336, %v2446, %v2451
    %s2454 = scalar_lea.vmem [#allocation9], 192
    %v2455 = vld [vmem:[%s2454] sm:$0xff]
    %v2456 = vld [vmem:[%s2454 + $0x8] sm:$0xff]
    %v2457 = vld [vmem:[%s2454 + $0x10] sm:$0xff]
    %v2458 = vld [vmem:[%s2454 + $0x18] sm:$0xff]
    %v2459 = vld [vmem:[%s2454 + $0x20] sm:$0xff]
    %v2460 = vld [vmem:[%s2454 + $0x28] sm:$0xff]
    %v2461 = vld [vmem:[%s2454 + $0x30] sm:$0xff]
    %v2462 = vld [vmem:[%s2454 + $0x38] sm:$0xff]
    %v2463 = vld [vmem:[%s2454 + $0x40] sm:$0xff]
    %v2464 = vld [vmem:[%s2454 + $0x48] sm:$0xff]
    %v2465 = vld [vmem:[%s2454 + $0x50] sm:$0xff]
    %v2466 = vld [vmem:[%s2454 + $0x58] sm:$0xff]
    %v2467 = vld [vmem:[%s2454 + $0x60] sm:$0xff]
    %v2468 = vld [vmem:[%s2454 + $0x68] sm:$0xff]
    %v2469 = vld [vmem:[%s2454 + $0x70] sm:$0xff]
    %v2470 = vld [vmem:[%s2454 + $0x78] sm:$0xff]
    %v2471 = vld [vmem:[%s2454 + $0x80] sm:$0xff]
    %v2472 = vld [vmem:[%s2454 + $0x88] sm:$0xff]
    %v2473 = vld [vmem:[%s2454 + $0x90] sm:$0xff]
    %v2474 = vld [vmem:[%s2454 + $0x98] sm:$0xff]
    %v2475 = vld [vmem:[%s2454 + $0xa0] sm:$0xff]
    %v2476 = vld [vmem:[%s2454 + $0xa8] sm:$0xff]
    %v2477 = vld [vmem:[%s2454 + $0xb0] sm:$0xff]
    %v2478 = vld [vmem:[%s2454 + $0xb8] sm:$0xff]
    %s2479 = scalar_lea.vmem [#allocation10], 1
    %v2480 = vld [vmem:[%s2479] sm:$0x1]
    %v2482 = vlaneseq
    %v2483 = vshrl.u32 %v2482, 7
    %v2484 = vsub.s32 0, %v2483
    %v2485 = vrot.slane %v2480, %v2484
    %v2488 = vsel %vm2336, %v2449, 0
    %2490 = vmatprep.subr.mxu0 0.0
    %2491 = vmatpush1.msra.mxu0 %v2455
    %2492 = vmatprep.subr.mxu0 0.0
    %2493 = vmatpush1.msra.mxu0 %v2456
    %2494 = vmatprep.subr.mxu0 0.0
    %2495 = vmatpush1.msra.mxu0 %v2457
    %2496 = vmatprep.subr.mxu0 0.0
    %2497 = vmatpush1.msra.mxu0 %v2458
    %2498 = vmatprep.subr.mxu0 0.0
    %2499 = vmatpush1.msra.mxu0 %v2459
    %2500 = vmatprep.subr.mxu0 0.0
    %2501 = vmatpush1.msra.mxu0 %v2460
    %2502 = vmatprep.subr.mxu0 0.0
    %2503 = vmatpush1.msra.mxu0 %v2461
    %2504 = vmatprep.subr.mxu0 0.0
    %2505 = vmatpush1.msra.mxu0 %v2462
    %2506 = vmatprep.subr.mxu0 0.0
    %2507 = vmatpush1.msra.mxu0 %v2463
    %2508 = vmatprep.subr.mxu0 0.0
    %2509 = vmatpush1.msra.mxu0 %v2464
    %2510 = vmatprep.subr.mxu0 0.0
    %2511 = vmatpush1.msra.mxu0 %v2465
    %2512 = vmatprep.subr.mxu0 0.0
    %2513 = vmatpush1.msra.mxu0 %v2466
    %2514 = vmatprep.subr.mxu0 0.0
    %2515 = vmatpush1.msra.mxu0 %v2467
    %2516 = vmatprep.subr.mxu0 0.0
    %2517 = vmatpush1.msra.mxu0 %v2468
    %2518 = vmatprep.subr.mxu0 0.0
    %2519 = vmatpush1.msra.mxu0 %v2469
    %2520 = vmatprep.subr.mxu0 0.0
    %2521 = vmatpush1.msra.mxu0 %v2470
    %2522 = vmatprep.subr.mxu0 0.0
    %2523 = vmatpush1.msra.mxu0 %v2471
    %2524 = vmatprep.subr.mxu0 0.0
    %2525 = vmatpush1.msra.mxu0 %v2472
    %2526 = vmatprep.subr.mxu0 0.0
    %2527 = vmatpush1.msra.mxu0 %v2473
    %2528 = vmatprep.subr.mxu0 0.0
    %2529 = vmatpush1.msra.mxu0 %v2474
    %2530 = vmatprep.subr.mxu0 0.0
    %2531 = vmatpush1.msra.mxu0 %v2475
    %2532 = vmatprep.subr.mxu0 0.0
    %2533 = vmatpush1.msra.mxu0 %v2476
    %2534 = vmatprep.subr.mxu0 0.0
    %2535 = vmatpush1.msra.mxu0 %v2477
    %2536 = vmatprep.subr.mxu0 0.0
    %2537 = vmatpush1.msra.mxu0 %v2478
    %2538 = vmatprep.subr.mxu0 0.0
    %2539 = vmatpush1.msra.mxu0 0.0
    %2540 = vmatprep.subr.mxu0 0.0
    %2541 = vmatpush1.msra.mxu0 0.0
    %2542 = vmatprep.subr.mxu0 0.0
    %2543 = vmatpush1.msra.mxu0 0.0
    %2544 = vmatprep.subr.mxu0 0.0
    %2545 = vmatpush1.msra.mxu0 0.0
    %2546 = vmatprep.subr.mxu0 0.0
    %2547 = vmatpush1.msra.mxu0 0.0
    %2548 = vmatprep.subr.mxu0 0.0
    %2549 = vmatpush1.msra.mxu0 0.0
    %2550 = vmatprep.subr.mxu0 0.0
    %2551 = vmatpush1.msra.mxu0 0.0
    %2552 = vmatprep.subr.mxu0 0.0
    %2553 = vmatpush1.msra.mxu0 0.0
    %2554 = vmatprep.mubr.f32.mxu0 %v2488
    %2555 = vmatmul.mubr.f32.gmra.mrb[0].mxu0 %v2453
    %v2556 = vpop.f32.mrb[0].mxu0
    %v2557 = vadd.f32 %v2485, %v2556
    %v2558 = vpop.f32.mrb[0].mxu0
    %2559 = vdwg.mxu0
    %v2560 = vadd.f32 %v2557, %v2323
    %v2562 = vrot.slane %v2560, 7
    %v2564 = vsel %vm203, 0.0, %v2562
    %v2565 = vrot.slane %v2560, 1
    %v2567 = vsel %vm210, %v2565, 0.0
    %2568 = vrot.lane.b32.xlu0 %v2560, 64
    %v2569 = vpop.permute.xlu0 %2568
    %v2571 = vsel %vm2336, %v2564, %v2569
    %s2572 = scalar_lea.vmem [#allocation9], 384
    %v2573 = vld [vmem:[%s2572] sm:$0xff]
    %v2574 = vld [vmem:[%s2572 + $0x8] sm:$0xff]
    %v2575 = vld [vmem:[%s2572 + $0x10] sm:$0xff]
    %v2576 = vld [vmem:[%s2572 + $0x18] sm:$0xff]
    %v2577 = vld [vmem:[%s2572 + $0x20] sm:$0xff]
    %v2578 = vld [vmem:[%s2572 + $0x28] sm:$0xff]
    %v2579 = vld [vmem:[%s2572 + $0x30] sm:$0xff]
    %v2580 = vld [vmem:[%s2572 + $0x38] sm:$0xff]
    %v2581 = vld [vmem:[%s2572 + $0x40] sm:$0xff]
    %v2582 = vld [vmem:[%s2572 + $0x48] sm:$0xff]
    %v2583 = vld [vmem:[%s2572 + $0x50] sm:$0xff]
    %v2584 = vld [vmem:[%s2572 + $0x58] sm:$0xff]
    %v2585 = vld [vmem:[%s2572 + $0x60] sm:$0xff]
    %v2586 = vld [vmem:[%s2572 + $0x68] sm:$0xff]
    %v2587 = vld [vmem:[%s2572 + $0x70] sm:$0xff]
    %v2588 = vld [vmem:[%s2572 + $0x78] sm:$0xff]
    %v2589 = vld [vmem:[%s2572 + $0x80] sm:$0xff]
    %v2590 = vld [vmem:[%s2572 + $0x88] sm:$0xff]
    %v2591 = vld [vmem:[%s2572 + $0x90] sm:$0xff]
    %v2592 = vld [vmem:[%s2572 + $0x98] sm:$0xff]
    %v2593 = vld [vmem:[%s2572 + $0xa0] sm:$0xff]
    %v2594 = vld [vmem:[%s2572 + $0xa8] sm:$0xff]
    %v2595 = vld [vmem:[%s2572 + $0xb0] sm:$0xff]
    %v2596 = vld [vmem:[%s2572 + $0xb8] sm:$0xff]
    %s2597 = scalar_lea.vmem [#allocation10], 2
    %v2598 = vld [vmem:[%s2597] sm:$0x1]
    %v2600 = vlaneseq
    %v2601 = vshrl.u32 %v2600, 7
    %v2602 = vsub.s32 0, %v2601
    %v2603 = vrot.slane %v2598, %v2602
    %v2606 = vsel %vm2336, %v2567, 0
    %2608 = vmatprep.subr.mxu0 0.0
    %2609 = vmatpush1.msra.mxu0 %v2573
    %2610 = vmatprep.subr.mxu0 0.0
    %2611 = vmatpush1.msra.mxu0 %v2574
    %2612 = vmatprep.subr.mxu0 0.0
    %2613 = vmatpush1.msra.mxu0 %v2575
    %2614 = vmatprep.subr.mxu0 0.0
    %2615 = vmatpush1.msra.mxu0 %v2576
    %2616 = vmatprep.subr.mxu0 0.0
    %2617 = vmatpush1.msra.mxu0 %v2577
    %2618 = vmatprep.subr.mxu0 0.0
    %2619 = vmatpush1.msra.mxu0 %v2578
    %2620 = vmatprep.subr.mxu0 0.0
    %2621 = vmatpush1.msra.mxu0 %v2579
    %2622 = vmatprep.subr.mxu0 0.0
    %2623 = vmatpush1.msra.mxu0 %v2580
    %2624 = vmatprep.subr.mxu0 0.0
    %2625 = vmatpush1.msra.mxu0 %v2581
    %2626 = vmatprep.subr.mxu0 0.0
    %2627 = vmatpush1.msra.mxu0 %v2582
    %2628 = vmatprep.subr.mxu0 0.0
    %2629 = vmatpush1.msra.mxu0 %v2583
    %2630 = vmatprep.subr.mxu0 0.0
    %2631 = vmatpush1.msra.mxu0 %v2584
    %2632 = vmatprep.subr.mxu0 0.0
    %2633 = vmatpush1.msra.mxu0 %v2585
    %2634 = vmatprep.subr.mxu0 0.0
    %2635 = vmatpush1.msra.mxu0 %v2586
    %2636 = vmatprep.subr.mxu0 0.0
    %2637 = vmatpush1.msra.mxu0 %v2587
    %2638 = vmatprep.subr.mxu0 0.0
    %2639 = vmatpush1.msra.mxu0 %v2588
    %2640 = vmatprep.subr.mxu0 0.0
    %2641 = vmatpush1.msra.mxu0 %v2589
    %2642 = vmatprep.subr.mxu0 0.0
    %2643 = vmatpush1.msra.mxu0 %v2590
    %2644 = vmatprep.subr.mxu0 0.0
    %2645 = vmatpush1.msra.mxu0 %v2591
    %2646 = vmatprep.subr.mxu0 0.0
    %2647 = vmatpush1.msra.mxu0 %v2592
    %2648 = vmatprep.subr.mxu0 0.0
    %2649 = vmatpush1.msra.mxu0 %v2593
    %2650 = vmatprep.subr.mxu0 0.0
    %2651 = vmatpush1.msra.mxu0 %v2594
    %2652 = vmatprep.subr.mxu0 0.0
    %2653 = vmatpush1.msra.mxu0 %v2595
    %2654 = vmatprep.subr.mxu0 0.0
    %2655 = vmatpush1.msra.mxu0 %v2596
    %2656 = vmatprep.subr.mxu0 0.0
    %2657 = vmatpush1.msra.mxu0 0.0
    %2658 = vmatprep.subr.mxu0 0.0
    %2659 = vmatpush1.msra.mxu0 0.0
    %2660 = vmatprep.subr.mxu0 0.0
    %2661 = vmatpush1.msra.mxu0 0.0
    %2662 = vmatprep.subr.mxu0 0.0
    %2663 = vmatpush1.msra.mxu0 0.0
    %2664 = vmatprep.subr.mxu0 0.0
    %2665 = vmatpush1.msra.mxu0 0.0
    %2666 = vmatprep.subr.mxu0 0.0
    %2667 = vmatpush1.msra.mxu0 0.0
    %2668 = vmatprep.subr.mxu0 0.0
    %2669 = vmatpush1.msra.mxu0 0.0
    %2670 = vmatprep.subr.mxu0 0.0
    %2671 = vmatpush1.msra.mxu0 0.0
    %2672 = vmatprep.mubr.f32.mxu0 %v2606
    %2673 = vmatmul.mubr.f32.gmra.mrb[0].mxu0 %v2571
    %v2674 = vpop.f32.mrb[0].mxu0
    %v2675 = vadd.f32 %v2603, %v2674
    %v2676 = vpop.f32.mrb[0].mxu0
    %2677 = vdwg.mxu0
    %v2678 = vmax.f32 %v2675, 0.0
    %v2680 = vrot.slane %v2678, 7
    %v2682 = vsel %vm203, 0.0, %v2680
    %v2683 = vrot.slane %v2678, 1
    %v2685 = vsel %vm210, %v2683, 0.0
    %2686 = vrot.lane.b32.xlu0 %v2678, 64
    %v2687 = vpop.permute.xlu0 %2686
    %v2689 = vsel %vm2336, %v2682, %v2687
    %s2690 = scalar_lea.vmem [#allocation9], 576
    %v2691 = vld [vmem:[%s2690] sm:$0xff]
    %v2692 = vld [vmem:[%s2690 + $0x8] sm:$0xff]
    %v2693 = vld [vmem:[%s2690 + $0x10] sm:$0xff]
    %v2694 = vld [vmem:[%s2690 + $0x18] sm:$0xff]
    %v2695 = vld [vmem:[%s2690 + $0x20] sm:$0xff]
    %v2696 = vld [vmem:[%s2690 + $0x28] sm:$0xff]
    %v2697 = vld [vmem:[%s2690 + $0x30] sm:$0xff]
    %v2698 = vld [vmem:[%s2690 + $0x38] sm:$0xff]
    %v2699 = vld [vmem:[%s2690 + $0x40] sm:$0xff]
    %v2700 = vld [vmem:[%s2690 + $0x48] sm:$0xff]
    %v2701 = vld [vmem:[%s2690 + $0x50] sm:$0xff]
    %v2702 = vld [vmem:[%s2690 + $0x58] sm:$0xff]
    %v2703 = vld [vmem:[%s2690 + $0x60] sm:$0xff]
    %v2704 = vld [vmem:[%s2690 + $0x68] sm:$0xff]
    %v2705 = vld [vmem:[%s2690 + $0x70] sm:$0xff]
    %v2706 = vld [vmem:[%s2690 + $0x78] sm:$0xff]
    %v2707 = vld [vmem:[%s2690 + $0x80] sm:$0xff]
    %v2708 = vld [vmem:[%s2690 + $0x88] sm:$0xff]
    %v2709 = vld [vmem:[%s2690 + $0x90] sm:$0xff]
    %v2710 = vld [vmem:[%s2690 + $0x98] sm:$0xff]
    %v2711 = vld [vmem:[%s2690 + $0xa0] sm:$0xff]
    %v2712 = vld [vmem:[%s2690 + $0xa8] sm:$0xff]
    %v2713 = vld [vmem:[%s2690 + $0xb0] sm:$0xff]
    %v2714 = vld [vmem:[%s2690 + $0xb8] sm:$0xff]
    %s2715 = scalar_lea.vmem [#allocation10], 3
    %v2716 = vld [vmem:[%s2715] sm:$0x1]
    %v2718 = vlaneseq
    %v2719 = vshrl.u32 %v2718, 7
    %v2720 = vsub.s32 0, %v2719
    %v2721 = vrot.slane %v2716, %v2720
    %v2724 = vsel %vm2336, %v2685, 0
    %2726 = vmatprep.subr.mxu0 0.0
    %2727 = vmatpush1.msra.mxu0 %v2691
    %2728 = vmatprep.subr.mxu0 0.0
    %2729 = vmatpush1.msra.mxu0 %v2692
    %2730 = vmatprep.subr.mxu0 0.0
    %2731 = vmatpush1.msra.mxu0 %v2693
    %2732 = vmatprep.subr.mxu0 0.0
    %2733 = vmatpush1.msra.mxu0 %v2694
    %2734 = vmatprep.subr.mxu0 0.0
    %2735 = vmatpush1.msra.mxu0 %v2695
    %2736 = vmatprep.subr.mxu0 0.0
    %2737 = vmatpush1.msra.mxu0 %v2696
    %2738 = vmatprep.subr.mxu0 0.0
    %2739 = vmatpush1.msra.mxu0 %v2697
    %2740 = vmatprep.subr.mxu0 0.0
    %2741 = vmatpush1.msra.mxu0 %v2698
    %2742 = vmatprep.subr.mxu0 0.0
    %2743 = vmatpush1.msra.mxu0 %v2699
    %2744 = vmatprep.subr.mxu0 0.0
    %2745 = vmatpush1.msra.mxu0 %v2700
    %2746 = vmatprep.subr.mxu0 0.0
    %2747 = vmatpush1.msra.mxu0 %v2701
    %2748 = vmatprep.subr.mxu0 0.0
    %2749 = vmatpush1.msra.mxu0 %v2702
    %2750 = vmatprep.subr.mxu0 0.0
    %2751 = vmatpush1.msra.mxu0 %v2703
    %2752 = vmatprep.subr.mxu0 0.0
    %2753 = vmatpush1.msra.mxu0 %v2704
    %2754 = vmatprep.subr.mxu0 0.0
    %2755 = vmatpush1.msra.mxu0 %v2705
    %2756 = vmatprep.subr.mxu0 0.0
    %2757 = vmatpush1.msra.mxu0 %v2706
    %2758 = vmatprep.subr.mxu0 0.0
    %2759 = vmatpush1.msra.mxu0 %v2707
    %2760 = vmatprep.subr.mxu0 0.0
    %2761 = vmatpush1.msra.mxu0 %v2708
    %2762 = vmatprep.subr.mxu0 0.0
    %2763 = vmatpush1.msra.mxu0 %v2709
    %2764 = vmatprep.subr.mxu0 0.0
    %2765 = vmatpush1.msra.mxu0 %v2710
    %2766 = vmatprep.subr.mxu0 0.0
    %2767 = vmatpush1.msra.mxu0 %v2711
    %2768 = vmatprep.subr.mxu0 0.0
    %2769 = vmatpush1.msra.mxu0 %v2712
    %2770 = vmatprep.subr.mxu0 0.0
    %2771 = vmatpush1.msra.mxu0 %v2713
    %2772 = vmatprep.subr.mxu0 0.0
    %2773 = vmatpush1.msra.mxu0 %v2714
    %2774 = vmatprep.subr.mxu0 0.0
    %2775 = vmatpush1.msra.mxu0 0.0
    %2776 = vmatprep.subr.mxu0 0.0
    %2777 = vmatpush1.msra.mxu0 0.0
    %2778 = vmatprep.subr.mxu0 0.0
    %2779 = vmatpush1.msra.mxu0 0.0
    %2780 = vmatprep.subr.mxu0 0.0
    %2781 = vmatpush1.msra.mxu0 0.0
    %2782 = vmatprep.subr.mxu0 0.0
    %2783 = vmatpush1.msra.mxu0 0.0
    %2784 = vmatprep.subr.mxu0 0.0
    %2785 = vmatpush1.msra.mxu0 0.0
    %2786 = vmatprep.subr.mxu0 0.0
    %2787 = vmatpush1.msra.mxu0 0.0
    %2788 = vmatprep.subr.mxu0 0.0
    %2789 = vmatpush1.msra.mxu0 0.0
    %2790 = vmatprep.mubr.f32.mxu0 %v2724
    %2791 = vmatmul.mubr.f32.gmra.mrb[0].mxu0 %v2689
    %v2792 = vpop.f32.mrb[0].mxu0
    %v2793 = vadd.f32 %v2721, %v2792
    %v2794 = vpop.f32.mrb[0].mxu0
    %2795 = vdwg.mxu0
    %v2796 = vadd.f32 %v2793, %v2560
    %v2798 = vrot.slane %v2796, 7
    %v2800 = vsel %vm203, 0.0, %v2798
    %v2801 = vrot.slane %v2796, 1
    %v2803 = vsel %vm210, %v2801, 0.0
    %2804 = vrot.lane.b32.xlu0 %v2796, 64
    %v2805 = vpop.permute.xlu0 %2804
    %v2807 = vsel %vm2336, %v2800, %v2805
    %v2808 = vld [vmem:[#allocation15] sm:$0xff]
    %v2809 = vld [vmem:[#allocation15 + $0x8] sm:$0xff]
    %v2810 = vld [vmem:[#allocation15 + $0x10] sm:$0xff]
    %v2811 = vld [vmem:[#allocation15 + $0x18] sm:$0xff]
    %v2812 = vld [vmem:[#allocation15 + $0x20] sm:$0xff]
    %v2813 = vld [vmem:[#allocation15 + $0x28] sm:$0xff]
    %v2814 = vld [vmem:[#allocation15 + $0x30] sm:$0xff]
    %v2815 = vld [vmem:[#allocation15 + $0x38] sm:$0xff]
    %v2816 = vld [vmem:[#allocation15 + $0x40] sm:$0xff]
    %v2817 = vld [vmem:[#allocation15 + $0x48] sm:$0xff]
    %v2818 = vld [vmem:[#allocation15 + $0x50] sm:$0xff]
    %v2819 = vld [vmem:[#allocation15 + $0x58] sm:$0xff]
    %v2820 = vld [vmem:[#allocation15 + $0x60] sm:$0xff]
    %v2821 = vld [vmem:[#allocation15 + $0x68] sm:$0xff]
    %v2822 = vld [vmem:[#allocation15 + $0x70] sm:$0xff]
    %v2823 = vld [vmem:[#allocation15 + $0x78] sm:$0xff]
    %v2824 = vld [vmem:[#allocation15 + $0x80] sm:$0xff]
    %v2825 = vld [vmem:[#allocation15 + $0x88] sm:$0xff]
    %v2826 = vld [vmem:[#allocation15 + $0x90] sm:$0xff]
    %v2827 = vld [vmem:[#allocation15 + $0x98] sm:$0xff]
    %v2828 = vld [vmem:[#allocation15 + $0xa0] sm:$0xff]
    %v2829 = vld [vmem:[#allocation15 + $0xa8] sm:$0xff]
    %v2830 = vld [vmem:[#allocation15 + $0xb0] sm:$0xff]
    %v2831 = vld [vmem:[#allocation15 + $0xb8] sm:$0xff]
    %v2832 = vld [vmem:[#allocation16] sm:$0x1]
    %v2834 = vlaneseq
    %v2835 = vshrl.u32 %v2834, 7
    %v2836 = vsub.s32 0, %v2835
    %v2837 = vrot.slane %v2832, %v2836
    %v2840 = vsel %vm2336, %v2803, 0
    %2842 = vmatprep.subr.mxu0 0.0
    %2843 = vmatpush1.msra.mxu0 %v2808
    %2844 = vmatprep.subr.mxu0 0.0
    %2845 = vmatpush1.msra.mxu0 %v2809
    %2846 = vmatprep.subr.mxu0 0.0
    %2847 = vmatpush1.msra.mxu0 %v2810
    %2848 = vmatprep.subr.mxu0 0.0
    %2849 = vmatpush1.msra.mxu0 %v2811
    %2850 = vmatprep.subr.mxu0 0.0
    %2851 = vmatpush1.msra.mxu0 %v2812
    %2852 = vmatprep.subr.mxu0 0.0
    %2853 = vmatpush1.msra.mxu0 %v2813
    %2854 = vmatprep.subr.mxu0 0.0
    %2855 = vmatpush1.msra.mxu0 %v2814
    %2856 = vmatprep.subr.mxu0 0.0
    %2857 = vmatpush1.msra.mxu0 %v2815
    %2858 = vmatprep.subr.mxu0 0.0
    %2859 = vmatpush1.msra.mxu0 %v2816
    %2860 = vmatprep.subr.mxu0 0.0
    %2861 = vmatpush1.msra.mxu0 %v2817
    %2862 = vmatprep.subr.mxu0 0.0
    %2863 = vmatpush1.msra.mxu0 %v2818
    %2864 = vmatprep.subr.mxu0 0.0
    %2865 = vmatpush1.msra.mxu0 %v2819
    %2866 = vmatprep.subr.mxu0 0.0
    %2867 = vmatpush1.msra.mxu0 %v2820
    %2868 = vmatprep.subr.mxu0 0.0
    %2869 = vmatpush1.msra.mxu0 %v2821
    %2870 = vmatprep.subr.mxu0 0.0
    %2871 = vmatpush1.msra.mxu0 %v2822
    %2872 = vmatprep.subr.mxu0 0.0
    %2873 = vmatpush1.msra.mxu0 %v2823
    %2874 = vmatprep.subr.mxu0 0.0
    %2875 = vmatpush1.msra.mxu0 %v2824
    %2876 = vmatprep.subr.mxu0 0.0
    %2877 = vmatpush1.msra.mxu0 %v2825
    %2878 = vmatprep.subr.mxu0 0.0
    %2879 = vmatpush1.msra.mxu0 %v2826
    %2880 = vmatprep.subr.mxu0 0.0
    %2881 = vmatpush1.msra.mxu0 %v2827
    %2882 = vmatprep.subr.mxu0 0.0
    %2883 = vmatpush1.msra.mxu0 %v2828
    %2884 = vmatprep.subr.mxu0 0.0
    %2885 = vmatpush1.msra.mxu0 %v2829
    %2886 = vmatprep.subr.mxu0 0.0
    %2887 = vmatpush1.msra.mxu0 %v2830
    %2888 = vmatprep.subr.mxu0 0.0
    %2889 = vmatpush1.msra.mxu0 %v2831
    %2890 = vmatprep.subr.mxu0 0.0
    %2891 = vmatpush1.msra.mxu0 0.0
    %2892 = vmatprep.subr.mxu0 0.0
    %2893 = vmatpush1.msra.mxu0 0.0
    %2894 = vmatprep.subr.mxu0 0.0
    %2895 = vmatpush1.msra.mxu0 0.0
    %2896 = vmatprep.subr.mxu0 0.0
    %2897 = vmatpush1.msra.mxu0 0.0
    %2898 = vmatprep.subr.mxu0 0.0
    %2899 = vmatpush1.msra.mxu0 0.0
    %2900 = vmatprep.subr.mxu0 0.0
    %2901 = vmatpush1.msra.mxu0 0.0
    %2902 = vmatprep.subr.mxu0 0.0
    %2903 = vmatpush1.msra.mxu0 0.0
    %2904 = vmatprep.subr.mxu0 0.0
    %2905 = vmatpush1.msra.mxu0 0.0
    %2906 = vmatprep.mubr.f32.mxu0 %v2840
    %2907 = vmatmul.mubr.f32.gmra.mrb[0].mxu0 %v2807
    %v2908 = vpop.f32.mrb[0].mxu0
    %v2909 = vadd.f32 %v2837, %v2908
    %v2910 = vpop.f32.mrb[0].mxu0
    %2911 = vdwg.mxu0
    %s2912 = scalar_lea.vmem [#allocation15], 192
    %v2913 = vld [vmem:[%s2912] sm:$0xff]
    %v2914 = vld [vmem:[%s2912 + $0x8] sm:$0xff]
    %v2915 = vld [vmem:[%s2912 + $0x10] sm:$0xff]
    %v2916 = vld [vmem:[%s2912 + $0x18] sm:$0xff]
    %v2917 = vld [vmem:[%s2912 + $0x20] sm:$0xff]
    %v2918 = vld [vmem:[%s2912 + $0x28] sm:$0xff]
    %v2919 = vld [vmem:[%s2912 + $0x30] sm:$0xff]
    %v2920 = vld [vmem:[%s2912 + $0x38] sm:$0xff]
    %v2921 = vld [vmem:[%s2912 + $0x40] sm:$0xff]
    %v2922 = vld [vmem:[%s2912 + $0x48] sm:$0xff]
    %v2923 = vld [vmem:[%s2912 + $0x50] sm:$0xff]
    %v2924 = vld [vmem:[%s2912 + $0x58] sm:$0xff]
    %v2925 = vld [vmem:[%s2912 + $0x60] sm:$0xff]
    %v2926 = vld [vmem:[%s2912 + $0x68] sm:$0xff]
    %v2927 = vld [vmem:[%s2912 + $0x70] sm:$0xff]
    %v2928 = vld [vmem:[%s2912 + $0x78] sm:$0xff]
    %v2929 = vld [vmem:[%s2912 + $0x80] sm:$0xff]
    %v2930 = vld [vmem:[%s2912 + $0x88] sm:$0xff]
    %v2931 = vld [vmem:[%s2912 + $0x90] sm:$0xff]
    %v2932 = vld [vmem:[%s2912 + $0x98] sm:$0xff]
    %v2933 = vld [vmem:[%s2912 + $0xa0] sm:$0xff]
    %v2934 = vld [vmem:[%s2912 + $0xa8] sm:$0xff]
    %v2935 = vld [vmem:[%s2912 + $0xb0] sm:$0xff]
    %v2936 = vld [vmem:[%s2912 + $0xb8] sm:$0xff]
    %2937 = vmatprep.subr.mxu0 0.0
    %2938 = vmatpush1.msra.mxu0 %v2913
    %2939 = vmatprep.subr.mxu0 0.0
    %2940 = vmatpush1.msra.mxu0 %v2914
    %2941 = vmatprep.subr.mxu0 0.0
    %2942 = vmatpush1.msra.mxu0 %v2915
    %2943 = vmatprep.subr.mxu0 0.0
    %2944 = vmatpush1.msra.mxu0 %v2916
    %2945 = vmatprep.subr.mxu0 0.0
    %2946 = vmatpush1.msra.mxu0 %v2917
    %2947 = vmatprep.subr.mxu0 0.0
    %2948 = vmatpush1.msra.mxu0 %v2918
    %2949 = vmatprep.subr.mxu0 0.0
    %2950 = vmatpush1.msra.mxu0 %v2919
    %2951 = vmatprep.subr.mxu0 0.0
    %2952 = vmatpush1.msra.mxu0 %v2920
    %2953 = vmatprep.subr.mxu0 0.0
    %2954 = vmatpush1.msra.mxu0 %v2921
    %2955 = vmatprep.subr.mxu0 0.0
    %2956 = vmatpush1.msra.mxu0 %v2922
    %2957 = vmatprep.subr.mxu0 0.0
    %2958 = vmatpush1.msra.mxu0 %v2923
    %2959 = vmatprep.subr.mxu0 0.0
    %2960 = vmatpush1.msra.mxu0 %v2924
    %2961 = vmatprep.subr.mxu0 0.0
    %2962 = vmatpush1.msra.mxu0 %v2925
    %2963 = vmatprep.subr.mxu0 0.0
    %2964 = vmatpush1.msra.mxu0 %v2926
    %2965 = vmatprep.subr.mxu0 0.0
    %2966 = vmatpush1.msra.mxu0 %v2927
    %2967 = vmatprep.subr.mxu0 0.0
    %2968 = vmatpush1.msra.mxu0 %v2928
    %2969 = vmatprep.subr.mxu0 0.0
    %2970 = vmatpush1.msra.mxu0 %v2929
    %2971 = vmatprep.subr.mxu0 0.0
    %2972 = vmatpush1.msra.mxu0 %v2930
    %2973 = vmatprep.subr.mxu0 0.0
    %2974 = vmatpush1.msra.mxu0 %v2931
    %2975 = vmatprep.subr.mxu0 0.0
    %2976 = vmatpush1.msra.mxu0 %v2932
    %2977 = vmatprep.subr.mxu0 0.0
    %2978 = vmatpush1.msra.mxu0 %v2933
    %2979 = vmatprep.subr.mxu0 0.0
    %2980 = vmatpush1.msra.mxu0 %v2934
    %2981 = vmatprep.subr.mxu0 0.0
    %2982 = vmatpush1.msra.mxu0 %v2935
    %2983 = vmatprep.subr.mxu0 0.0
    %2984 = vmatpush1.msra.mxu0 %v2936
    %2985 = vmatprep.subr.mxu0 0.0
    %2986 = vmatpush1.msra.mxu0 0.0
    %2987 = vmatprep.subr.mxu0 0.0
    %2988 = vmatpush1.msra.mxu0 0.0
    %2989 = vmatprep.subr.mxu0 0.0
    %2990 = vmatpush1.msra.mxu0 0.0
    %2991 = vmatprep.subr.mxu0 0.0
    %2992 = vmatpush1.msra.mxu0 0.0
    %2993 = vmatprep.subr.mxu0 0.0
    %2994 = vmatpush1.msra.mxu0 0.0
    %2995 = vmatprep.subr.mxu0 0.0
    %2996 = vmatpush1.msra.mxu0 0.0
    %2997 = vmatprep.subr.mxu0 0.0
    %2998 = vmatpush1.msra.mxu0 0.0
    %2999 = vmatprep.subr.mxu0 0.0
    %3000 = vmatpush1.msra.mxu0 0.0
    %3001 = vmatprep.mubr.f32.mxu0 %v2840
    %3002 = vmatmul.mubr.f32.gmra.mrb[0].mxu0 %v2807
    %v3003 = vpop.f32.mrb[0].mxu0
    %v3004 = vadd.f32 %v2837, %v3003
    %v3005 = vpop.f32.mrb[0].mxu0
    %3006 = vdwg.mxu0
    %v3007 = vld [vmem:[#allocation4] sm:$0xff]
    %v3008 = vld [vmem:[#allocation4 + $0x8] sm:$0xff]
    %s3009 = scalar_lea.vmem [#allocation4], 16
    %v3010 = vld [vmem:[%s3009] sm:$0xff]
    %v3011 = vld [vmem:[%s3009 + $0x8] sm:$0xff]
    %vm3012 = vcmask 64512
    %v3014 = vsel %vm3012, %v3010, 0
    %v3017 = vsel %vm3012, %v3011, 0
    %3019 = vmatprep.subr.mxu0 0.0
    %3020 = vmatpush1.msra.mxu0 %v3004
    %3021 = vmatprep.subr.mxu0 0.0
    %3022 = vmatpush1.msra.mxu0 0.0
    %3023 = vmatprep.subr.mxu0 0.0
    %3024 = vmatpush1.msra.mxu0 0.0
    %3025 = vmatprep.subr.mxu0 0.0
    %3026 = vmatpush1.msra.mxu0 0.0
    %3027 = vmatprep.subr.mxu0 0.0
    %3028 = vmatpush1.msra.mxu0 0.0
    %3029 = vmatprep.subr.mxu0 0.0
    %3030 = vmatpush1.msra.mxu0 0.0
    %3031 = vmatprep.subr.mxu0 0.0
    %3032 = vmatpush1.msra.mxu0 0.0
    %3033 = vmatprep.subr.mxu0 0.0
    %3034 = vmatpush1.msra.mxu0 0.0
    %3035 = vmatprep.subr.mxu0 0.0
    %3036 = vmatpush1.msra.mxu0 0.0
    %3037 = vmatprep.subr.mxu0 0.0
    %3038 = vmatpush1.msra.mxu0 0.0
    %3039 = vmatprep.subr.mxu0 0.0
    %3040 = vmatpush1.msra.mxu0 0.0
    %3041 = vmatprep.subr.mxu0 0.0
    %3042 = vmatpush1.msra.mxu0 0.0
    %3043 = vmatprep.subr.mxu0 0.0
    %3044 = vmatpush1.msra.mxu0 0.0
    %3045 = vmatprep.subr.mxu0 0.0
    %3046 = vmatpush1.msra.mxu0 0.0
    %3047 = vmatprep.subr.mxu0 0.0
    %3048 = vmatpush1.msra.mxu0 0.0
    %3049 = vmatprep.subr.mxu0 0.0
    %3050 = vmatpush1.msra.mxu0 0.0
    %3051 = vmatprep.subr.mxu0 0.0
    %3052 = vmatpush1.msra.mxu0 0.0
    %3053 = vmatprep.subr.mxu0 0.0
    %3054 = vmatpush1.msra.mxu0 0.0
    %3055 = vmatprep.subr.mxu0 0.0
    %3056 = vmatpush1.msra.mxu0 0.0
    %3057 = vmatprep.subr.mxu0 0.0
    %3058 = vmatpush1.msra.mxu0 0.0
    %3059 = vmatprep.subr.mxu0 0.0
    %3060 = vmatpush1.msra.mxu0 0.0
    %3061 = vmatprep.subr.mxu0 0.0
    %3062 = vmatpush1.msra.mxu0 0.0
    %3063 = vmatprep.subr.mxu0 0.0
    %3064 = vmatpush1.msra.mxu0 0.0
    %3065 = vmatprep.subr.mxu0 0.0
    %3066 = vmatpush1.msra.mxu0 0.0
    %3067 = vmatprep.subr.mxu0 0.0
    %3068 = vmatpush1.msra.mxu0 0.0
    %3069 = vmatprep.subr.mxu0 0.0
    %3070 = vmatpush1.msra.mxu0 0.0
    %3071 = vmatprep.subr.mxu0 0.0
    %3072 = vmatpush1.msra.mxu0 0.0
    %3073 = vmatprep.subr.mxu0 0.0
    %3074 = vmatpush1.msra.mxu0 0.0
    %3075 = vmatprep.subr.mxu0 0.0
    %3076 = vmatpush1.msra.mxu0 0.0
    %3077 = vmatprep.subr.mxu0 0.0
    %3078 = vmatpush1.msra.mxu0 0.0
    %3079 = vmatprep.subr.mxu0 0.0
    %3080 = vmatpush1.msra.mxu0 0.0
    %3081 = vmatprep.subr.mxu0 0.0
    %3082 = vmatpush1.msra.mxu0 0.0
    %3083 = vmatprep.mubr.f32.mxu0 0.0
    %3084 = vmatmul.mubr.f32.gmra.mrb[0].mxu0 %v3014
    %v3085 = vpop.f32.mrb[0].mxu0
    %v3086 = vadd.f32 0.0, %v3085
    %v3087 = vpop.f32.mrb[0].mxu0
    %3088 = vmatprep.mubr.f32.mxu0 0.0
    %3089 = vmatmul.mubr.f32.gmra.mrb[0].mxu0 %v3017
    %v3090 = vpop.f32.mrb[0].mxu0
    %v3091 = vadd.f32 0.0, %v3090
    %v3092 = vpop.f32.mrb[0].mxu0
    %3093 = vdwg.mxu0
    %v3095 = vsel %vm3012, %v3007, 0
    %v3098 = vsel %vm3012, %v3008, 0
    %3100 = vmatprep.subr.mxu0 0.0
    %3101 = vmatpush1.msra.mxu0 %v2909
    %3102 = vmatprep.subr.mxu0 0.0
    %3103 = vmatpush1.msra.mxu0 0.0
    %3104 = vmatprep.subr.mxu0 0.0
    %3105 = vmatpush1.msra.mxu0 0.0
    %3106 = vmatprep.subr.mxu0 0.0
    %3107 = vmatpush1.msra.mxu0 0.0
    %3108 = vmatprep.subr.mxu0 0.0
    %3109 = vmatpush1.msra.mxu0 0.0
    %3110 = vmatprep.subr.mxu0 0.0
    %3111 = vmatpush1.msra.mxu0 0.0
    %3112 = vmatprep.subr.mxu0 0.0
    %3113 = vmatpush1.msra.mxu0 0.0
    %3114 = vmatprep.subr.mxu0 0.0
    %3115 = vmatpush1.msra.mxu0 0.0
    %3116 = vmatprep.subr.mxu0 0.0
    %3117 = vmatpush1.msra.mxu0 0.0
    %3118 = vmatprep.subr.mxu0 0.0
    %3119 = vmatpush1.msra.mxu0 0.0
    %3120 = vmatprep.subr.mxu0 0.0
    %3121 = vmatpush1.msra.mxu0 0.0
    %3122 = vmatprep.subr.mxu0 0.0
    %3123 = vmatpush1.msra.mxu0 0.0
    %3124 = vmatprep.subr.mxu0 0.0
    %3125 = vmatpush1.msra.mxu0 0.0
    %3126 = vmatprep.subr.mxu0 0.0
    %3127 = vmatpush1.msra.mxu0 0.0
    %3128 = vmatprep.subr.mxu0 0.0
    %3129 = vmatpush1.msra.mxu0 0.0
    %3130 = vmatprep.subr.mxu0 0.0
    %3131 = vmatpush1.msra.mxu0 0.0
    %3132 = vmatprep.subr.mxu0 0.0
    %3133 = vmatpush1.msra.mxu0 0.0
    %3134 = vmatprep.subr.mxu0 0.0
    %3135 = vmatpush1.msra.mxu0 0.0
    %3136 = vmatprep.subr.mxu0 0.0
    %3137 = vmatpush1.msra.mxu0 0.0
    %3138 = vmatprep.subr.mxu0 0.0
    %3139 = vmatpush1.msra.mxu0 0.0
    %3140 = vmatprep.subr.mxu0 0.0
    %3141 = vmatpush1.msra.mxu0 0.0
    %3142 = vmatprep.subr.mxu0 0.0
    %3143 = vmatpush1.msra.mxu0 0.0
    %3144 = vmatprep.subr.mxu0 0.0
    %3145 = vmatpush1.msra.mxu0 0.0
    %3146 = vmatprep.subr.mxu0 0.0
    %3147 = vmatpush1.msra.mxu0 0.0
    %3148 = vmatprep.subr.mxu0 0.0
    %3149 = vmatpush1.msra.mxu0 0.0
    %3150 = vmatprep.subr.mxu0 0.0
    %3151 = vmatpush1.msra.mxu0 0.0
    %3152 = vmatprep.subr.mxu0 0.0
    %3153 = vmatpush1.msra.mxu0 0.0
    %3154 = vmatprep.subr.mxu0 0.0
    %3155 = vmatpush1.msra.mxu0 0.0
    %3156 = vmatprep.subr.mxu0 0.0
    %3157 = vmatpush1.msra.mxu0 0.0
    %3158 = vmatprep.subr.mxu0 0.0
    %3159 = vmatpush1.msra.mxu0 0.0
    %3160 = vmatprep.subr.mxu0 0.0
    %3161 = vmatpush1.msra.mxu0 0.0
    %3162 = vmatprep.subr.mxu0 0.0
    %3163 = vmatpush1.msra.mxu0 0.0
    %3164 = vmatprep.mubr.f32.mxu0 0.0
    %3165 = vmatmul.mubr.f32.gmra.mrb[0].mxu0 %v3095
    %v3166 = vpop.f32.mrb[0].mxu0
    %v3167 = vadd.f32 %v3086, %v3166
    %v3168 = vpop.f32.mrb[0].mxu0
    %3169 = vmatprep.mubr.f32.mxu0 0.0
    %3170 = vmatmul.mubr.f32.gmra.mrb[0].mxu0 %v3098
    %v3171 = vpop.f32.mrb[0].mxu0
    %v3172 = vadd.f32 %v3091, %v3171
    %v3173 = vpop.f32.mrb[0].mxu0
    %3174 = vdwg.mxu0
    %v3175 = vadd.f32 %v3167, %v1969
    %v3176 = vadd.f32 %v3172, %v1970
    %v3179 = vrot.slane %v3175, 7
    %v3180 = vrot.slane %v3176, 7
    %v3181 = vsel %vm203, %v3179, %v3180
    %v3184 = vsel %vm203, 0.0, %v3179
    %v3185 = vrot.slane %v3175, 1
    %v3186 = vrot.slane %v3176, 1
    %v3187 = vsel %vm210, %v3185, %v3186
    %v3190 = vsel %vm210, %v3186, 0.0
    %s3191 = scalar_lea.vmem [#allocation6], 3072
    %v3192 = vld [vmem:[%s3191] sm:$0xff]
    %v3193 = vld [vmem:[%s3191 + $0x8] sm:$0xff]
    %v3194 = vld [vmem:[%s3191 + $0x10] sm:$0xff]
    %v3195 = vld [vmem:[%s3191 + $0x18] sm:$0xff]
    %v3196 = vld [vmem:[%s3191 + $0x20] sm:$0xff]
    %v3197 = vld [vmem:[%s3191 + $0x28] sm:$0xff]
    %v3198 = vld [vmem:[%s3191 + $0x30] sm:$0xff]
    %v3199 = vld [vmem:[%s3191 + $0x38] sm:$0xff]
    %v3200 = vld [vmem:[%s3191 + $0x40] sm:$0xff]
    %v3201 = vld [vmem:[%s3191 + $0x48] sm:$0xff]
    %v3202 = vld [vmem:[%s3191 + $0x50] sm:$0xff]
    %v3203 = vld [vmem:[%s3191 + $0x58] sm:$0xff]
    %v3204 = vld [vmem:[%s3191 + $0x60] sm:$0xff]
    %v3205 = vld [vmem:[%s3191 + $0x68] sm:$0xff]
    %v3206 = vld [vmem:[%s3191 + $0x70] sm:$0xff]
    %v3207 = vld [vmem:[%s3191 + $0x78] sm:$0xff]
    %v3208 = vld [vmem:[%s3191 + $0x80] sm:$0xff]
    %v3209 = vld [vmem:[%s3191 + $0x88] sm:$0xff]
    %v3210 = vld [vmem:[%s3191 + $0x90] sm:$0xff]
    %v3211 = vld [vmem:[%s3191 + $0x98] sm:$0xff]
    %v3212 = vld [vmem:[%s3191 + $0xa0] sm:$0xff]
    %v3213 = vld [vmem:[%s3191 + $0xa8] sm:$0xff]
    %v3214 = vld [vmem:[%s3191 + $0xb0] sm:$0xff]
    %v3215 = vld [vmem:[%s3191 + $0xb8] sm:$0xff]
    %v3216 = vld [vmem:[%s3191 + $0xc0] sm:$0xff]
    %v3217 = vld [vmem:[%s3191 + $0xc8] sm:$0xff]
    %v3218 = vld [vmem:[%s3191 + $0xd0] sm:$0xff]
    %v3219 = vld [vmem:[%s3191 + $0xd8] sm:$0xff]
    %v3220 = vld [vmem:[%s3191 + $0xe0] sm:$0xff]
    %v3221 = vld [vmem:[%s3191 + $0xe8] sm:$0xff]
    %v3222 = vld [vmem:[%s3191 + $0xf0] sm:$0xff]
    %v3223 = vld [vmem:[%s3191 + $0xf8] sm:$0xff]
    %v3224 = vld [vmem:[%s3191 + $0x100] sm:$0xff]
    %v3225 = vld [vmem:[%s3191 + $0x108] sm:$0xff]
    %v3226 = vld [vmem:[%s3191 + $0x110] sm:$0xff]
    %v3227 = vld [vmem:[%s3191 + $0x118] sm:$0xff]
    %v3228 = vld [vmem:[%s3191 + $0x120] sm:$0xff]
    %v3229 = vld [vmem:[%s3191 + $0x128] sm:$0xff]
    %v3230 = vld [vmem:[%s3191 + $0x130] sm:$0xff]
    %v3231 = vld [vmem:[%s3191 + $0x138] sm:$0xff]
    %v3232 = vld [vmem:[%s3191 + $0x140] sm:$0xff]
    %v3233 = vld [vmem:[%s3191 + $0x148] sm:$0xff]
    %v3234 = vld [vmem:[%s3191 + $0x150] sm:$0xff]
    %v3235 = vld [vmem:[%s3191 + $0x158] sm:$0xff]
    %v3236 = vld [vmem:[%s3191 + $0x160] sm:$0xff]
    %v3237 = vld [vmem:[%s3191 + $0x168] sm:$0xff]
    %v3238 = vld [vmem:[%s3191 + $0x170] sm:$0xff]
    %v3239 = vld [vmem:[%s3191 + $0x178] sm:$0xff]
    %s3240 = scalar_lea.vmem [#allocation7], 8
    %v3241 = vld [vmem:[%s3240] sm:$0x1]
    %v3243 = vlaneseq
    %v3244 = vshrl.u32 %v3243, 7
    %v3245 = vsub.s32 0, %v3244
    %v3246 = vrot.slane %v3241, %v3245
    %3248 = vmatprep.subr.mxu0 0.0
    %3249 = vmatpush1.msra.mxu0 %v3192
    %3250 = vmatprep.subr.mxu0 0.0
    %3251 = vmatpush1.msra.mxu0 %v3193
    %3252 = vmatprep.subr.mxu0 0.0
    %3253 = vmatpush1.msra.mxu0 %v3194
    %3254 = vmatprep.subr.mxu0 0.0
    %3255 = vmatpush1.msra.mxu0 %v3195
    %3256 = vmatprep.subr.mxu0 0.0
    %3257 = vmatpush1.msra.mxu0 %v3196
    %3258 = vmatprep.subr.mxu0 0.0
    %3259 = vmatpush1.msra.mxu0 %v3197
    %3260 = vmatprep.subr.mxu0 0.0
    %3261 = vmatpush1.msra.mxu0 %v3198
    %3262 = vmatprep.subr.mxu0 0.0
    %3263 = vmatpush1.msra.mxu0 %v3199
    %3264 = vmatprep.subr.mxu0 0.0
    %3265 = vmatpush1.msra.mxu0 %v3200
    %3266 = vmatprep.subr.mxu0 0.0
    %3267 = vmatpush1.msra.mxu0 %v3201
    %3268 = vmatprep.subr.mxu0 0.0
    %3269 = vmatpush1.msra.mxu0 %v3202
    %3270 = vmatprep.subr.mxu0 0.0
    %3271 = vmatpush1.msra.mxu0 %v3203
    %3272 = vmatprep.subr.mxu0 0.0
    %3273 = vmatpush1.msra.mxu0 %v3204
    %3274 = vmatprep.subr.mxu0 0.0
    %3275 = vmatpush1.msra.mxu0 %v3205
    %3276 = vmatprep.subr.mxu0 0.0
    %3277 = vmatpush1.msra.mxu0 %v3206
    %3278 = vmatprep.subr.mxu0 0.0
    %3279 = vmatpush1.msra.mxu0 %v3207
    %3280 = vmatprep.subr.mxu0 0.0
    %3281 = vmatpush1.msra.mxu0 %v3208
    %3282 = vmatprep.subr.mxu0 0.0
    %3283 = vmatpush1.msra.mxu0 %v3209
    %3284 = vmatprep.subr.mxu0 0.0
    %3285 = vmatpush1.msra.mxu0 %v3210
    %3286 = vmatprep.subr.mxu0 0.0
    %3287 = vmatpush1.msra.mxu0 %v3211
    %3288 = vmatprep.subr.mxu0 0.0
    %3289 = vmatpush1.msra.mxu0 %v3212
    %3290 = vmatprep.subr.mxu0 0.0
    %3291 = vmatpush1.msra.mxu0 %v3213
    %3292 = vmatprep.subr.mxu0 0.0
    %3293 = vmatpush1.msra.mxu0 %v3214
    %3294 = vmatprep.subr.mxu0 0.0
    %3295 = vmatpush1.msra.mxu0 %v3215
    %3296 = vmatprep.subr.mxu0 0.0
    %3297 = vmatpush1.msra.mxu0 %v3216
    %3298 = vmatprep.subr.mxu0 0.0
    %3299 = vmatpush1.msra.mxu0 %v3217
    %3300 = vmatprep.subr.mxu0 0.0
    %3301 = vmatpush1.msra.mxu0 %v3218
    %3302 = vmatprep.subr.mxu0 0.0
    %3303 = vmatpush1.msra.mxu0 %v3219
    %3304 = vmatprep.subr.mxu0 0.0
    %3305 = vmatpush1.msra.mxu0 %v3220
    %3306 = vmatprep.subr.mxu0 0.0
    %3307 = vmatpush1.msra.mxu0 %v3221
    %3308 = vmatprep.subr.mxu0 0.0
    %3309 = vmatpush1.msra.mxu0 %v3222
    %3310 = vmatprep.subr.mxu0 0.0
    %3311 = vmatpush1.msra.mxu0 %v3223
    %3312 = vmatprep.mubr.f32.mxu0 %v3175
    %3313 = vmatmul.mubr.f32.gmra.mrb[0].mxu0 %v3184
    %v3314 = vpop.f32.mrb[0].mxu0
    %v3315 = vadd.f32 %v3246, %v3314
    %v3316 = vpop.f32.mrb[0].mxu0
    %3317 = vmatprep.mubr.f32.mxu0 %v3176
    %3318 = vmatmul.mubr.f32.gmra.mrb[0].mxu0 %v3181
    %v3319 = vpop.f32.mrb[0].mxu0
    %v3320 = vadd.f32 %v3246, %v3319
    %v3321 = vpop.f32.mrb[0].mxu0
    %3322 = vdwg.mxu0
    %3323 = vmatprep.subr.mxu0 0.0
    %3324 = vmatpush1.msra.mxu0 %v3224
    %3325 = vmatprep.subr.mxu0 0.0
    %3326 = vmatpush1.msra.mxu0 %v3225
    %3327 = vmatprep.subr.mxu0 0.0
    %3328 = vmatpush1.msra.mxu0 %v3226
    %3329 = vmatprep.subr.mxu0 0.0
    %3330 = vmatpush1.msra.mxu0 %v3227
    %3331 = vmatprep.subr.mxu0 0.0
    %3332 = vmatpush1.msra.mxu0 %v3228
    %3333 = vmatprep.subr.mxu0 0.0
    %3334 = vmatpush1.msra.mxu0 %v3229
    %3335 = vmatprep.subr.mxu0 0.0
    %3336 = vmatpush1.msra.mxu0 %v3230
    %3337 = vmatprep.subr.mxu0 0.0
    %3338 = vmatpush1.msra.mxu0 %v3231
    %3339 = vmatprep.subr.mxu0 0.0
    %3340 = vmatpush1.msra.mxu0 %v3232
    %3341 = vmatprep.subr.mxu0 0.0
    %3342 = vmatpush1.msra.mxu0 %v3233
    %3343 = vmatprep.subr.mxu0 0.0
    %3344 = vmatpush1.msra.mxu0 %v3234
    %3345 = vmatprep.subr.mxu0 0.0
    %3346 = vmatpush1.msra.mxu0 %v3235
    %3347 = vmatprep.subr.mxu0 0.0
    %3348 = vmatpush1.msra.mxu0 %v3236
    %3349 = vmatprep.subr.mxu0 0.0
    %3350 = vmatpush1.msra.mxu0 %v3237
    %3351 = vmatprep.subr.mxu0 0.0
    %3352 = vmatpush1.msra.mxu0 %v3238
    %3353 = vmatprep.subr.mxu0 0.0
    %3354 = vmatpush1.msra.mxu0 %v3239
    %3355 = vmatprep.subr.mxu0 0.0
    %3356 = vmatpush1.msra.mxu0 0.0
    %3357 = vmatprep.subr.mxu0 0.0
    %3358 = vmatpush1.msra.mxu0 0.0
    %3359 = vmatprep.subr.mxu0 0.0
    %3360 = vmatpush1.msra.mxu0 0.0
    %3361 = vmatprep.subr.mxu0 0.0
    %3362 = vmatpush1.msra.mxu0 0.0
    %3363 = vmatprep.subr.mxu0 0.0
    %3364 = vmatpush1.msra.mxu0 0.0
    %3365 = vmatprep.subr.mxu0 0.0
    %3366 = vmatpush1.msra.mxu0 0.0
    %3367 = vmatprep.subr.mxu0 0.0
    %3368 = vmatpush1.msra.mxu0 0.0
    %3369 = vmatprep.subr.mxu0 0.0
    %3370 = vmatpush1.msra.mxu0 0.0
    %3371 = vmatprep.subr.mxu0 0.0
    %3372 = vmatpush1.msra.mxu0 0.0
    %3373 = vmatprep.subr.mxu0 0.0
    %3374 = vmatpush1.msra.mxu0 0.0
    %3375 = vmatprep.subr.mxu0 0.0
    %3376 = vmatpush1.msra.mxu0 0.0
    %3377 = vmatprep.subr.mxu0 0.0
    %3378 = vmatpush1.msra.mxu0 0.0
    %3379 = vmatprep.subr.mxu0 0.0
    %3380 = vmatpush1.msra.mxu0 0.0
    %3381 = vmatprep.subr.mxu0 0.0
    %3382 = vmatpush1.msra.mxu0 0.0
    %3383 = vmatprep.subr.mxu0 0.0
    %3384 = vmatpush1.msra.mxu0 0.0
    %3385 = vmatprep.subr.mxu0 0.0
    %3386 = vmatpush1.msra.mxu0 0.0
    %3387 = vmatprep.mubr.f32.mxu0 0.0
    %3388 = vmatmul.mubr.f32.gmra.mrb[0].mxu0 %v3187
    %v3389 = vpop.f32.mrb[0].mxu0
    %v3390 = vadd.f32 %v3315, %v3389
    %v3391 = vpop.f32.mrb[0].mxu0
    %3392 = vmatprep.mubr.f32.mxu0 0.0
    %3393 = vmatmul.mubr.f32.gmra.mrb[0].mxu0 %v3190
    %v3394 = vpop.f32.mrb[0].mxu0
    %v3395 = vadd.f32 %v3320, %v3394
    %v3396 = vpop.f32.mrb[0].mxu0
    %3397 = vdwg.mxu0
    %v3398 = vmax.f32 %v3390, 0.0
    %v3399 = vmax.f32 %v3395, 0.0
    %v3402 = vrot.slane %v3398, 7
    %v3403 = vrot.slane %v3399, 7
    %v3404 = vsel %vm203, %v3402, %v3403
    %v3407 = vsel %vm203, 0.0, %v3402
    %v3408 = vrot.slane %v3398, 1
    %v3409 = vrot.slane %v3399, 1
    %v3410 = vsel %vm210, %v3408, %v3409
    %v3413 = vsel %vm210, %v3409, 0.0
    %s3414 = scalar_lea.vmem [#allocation6], 3456
    %v3415 = vld [vmem:[%s3414] sm:$0xff]
    %v3416 = vld [vmem:[%s3414 + $0x8] sm:$0xff]
    %v3417 = vld [vmem:[%s3414 + $0x10] sm:$0xff]
    %v3418 = vld [vmem:[%s3414 + $0x18] sm:$0xff]
    %v3419 = vld [vmem:[%s3414 + $0x20] sm:$0xff]
    %v3420 = vld [vmem:[%s3414 + $0x28] sm:$0xff]
    %v3421 = vld [vmem:[%s3414 + $0x30] sm:$0xff]
    %v3422 = vld [vmem:[%s3414 + $0x38] sm:$0xff]
    %v3423 = vld [vmem:[%s3414 + $0x40] sm:$0xff]
    %v3424 = vld [vmem:[%s3414 + $0x48] sm:$0xff]
    %v3425 = vld [vmem:[%s3414 + $0x50] sm:$0xff]
    %v3426 = vld [vmem:[%s3414 + $0x58] sm:$0xff]
    %v3427 = vld [vmem:[%s3414 + $0x60] sm:$0xff]
    %v3428 = vld [vmem:[%s3414 + $0x68] sm:$0xff]
    %v3429 = vld [vmem:[%s3414 + $0x70] sm:$0xff]
    %v3430 = vld [vmem:[%s3414 + $0x78] sm:$0xff]
    %v3431 = vld [vmem:[%s3414 + $0x80] sm:$0xff]
    %v3432 = vld [vmem:[%s3414 + $0x88] sm:$0xff]
    %v3433 = vld [vmem:[%s3414 + $0x90] sm:$0xff]
    %v3434 = vld [vmem:[%s3414 + $0x98] sm:$0xff]
    %v3435 = vld [vmem:[%s3414 + $0xa0] sm:$0xff]
    %v3436 = vld [vmem:[%s3414 + $0xa8] sm:$0xff]
    %v3437 = vld [vmem:[%s3414 + $0xb0] sm:$0xff]
    %v3438 = vld [vmem:[%s3414 + $0xb8] sm:$0xff]
    %v3439 = vld [vmem:[%s3414 + $0xc0] sm:$0xff]
    %v3440 = vld [vmem:[%s3414 + $0xc8] sm:$0xff]
    %v3441 = vld [vmem:[%s3414 + $0xd0] sm:$0xff]
    %v3442 = vld [vmem:[%s3414 + $0xd8] sm:$0xff]
    %v3443 = vld [vmem:[%s3414 + $0xe0] sm:$0xff]
    %v3444 = vld [vmem:[%s3414 + $0xe8] sm:$0xff]
    %v3445 = vld [vmem:[%s3414 + $0xf0] sm:$0xff]
    %v3446 = vld [vmem:[%s3414 + $0xf8] sm:$0xff]
    %v3447 = vld [vmem:[%s3414 + $0x100] sm:$0xff]
    %v3448 = vld [vmem:[%s3414 + $0x108] sm:$0xff]
    %v3449 = vld [vmem:[%s3414 + $0x110] sm:$0xff]
    %v3450 = vld [vmem:[%s3414 + $0x118] sm:$0xff]
    %v3451 = vld [vmem:[%s3414 + $0x120] sm:$0xff]
    %v3452 = vld [vmem:[%s3414 + $0x128] sm:$0xff]
    %v3453 = vld [vmem:[%s3414 + $0x130] sm:$0xff]
    %v3454 = vld [vmem:[%s3414 + $0x138] sm:$0xff]
    %v3455 = vld [vmem:[%s3414 + $0x140] sm:$0xff]
    %v3456 = vld [vmem:[%s3414 + $0x148] sm:$0xff]
    %v3457 = vld [vmem:[%s3414 + $0x150] sm:$0xff]
    %v3458 = vld [vmem:[%s3414 + $0x158] sm:$0xff]
    %v3459 = vld [vmem:[%s3414 + $0x160] sm:$0xff]
    %v3460 = vld [vmem:[%s3414 + $0x168] sm:$0xff]
    %v3461 = vld [vmem:[%s3414 + $0x170] sm:$0xff]
    %v3462 = vld [vmem:[%s3414 + $0x178] sm:$0xff]
    %s3463 = scalar_lea.vmem [#allocation7], 9
    %v3464 = vld [vmem:[%s3463] sm:$0x1]
    %v3466 = vlaneseq
    %v3467 = vshrl.u32 %v3466, 7
    %v3468 = vsub.s32 0, %v3467
    %v3469 = vrot.slane %v3464, %v3468
    %3471 = vmatprep.subr.mxu0 0.0
    %3472 = vmatpush1.msra.mxu0 %v3415
    %3473 = vmatprep.subr.mxu0 0.0
    %3474 = vmatpush1.msra.mxu0 %v3416
    %3475 = vmatprep.subr.mxu0 0.0
    %3476 = vmatpush1.msra.mxu0 %v3417
    %3477 = vmatprep.subr.mxu0 0.0
    %3478 = vmatpush1.msra.mxu0 %v3418
    %3479 = vmatprep.subr.mxu0 0.0
    %3480 = vmatpush1.msra.mxu0 %v3419
    %3481 = vmatprep.subr.mxu0 0.0
    %3482 = vmatpush1.msra.mxu0 %v3420
    %3483 = vmatprep.subr.mxu0 0.0
    %3484 = vmatpush1.msra.mxu0 %v3421
    %3485 = vmatprep.subr.mxu0 0.0
    %3486 = vmatpush1.msra.mxu0 %v3422
    %3487 = vmatprep.subr.mxu0 0.0
    %3488 = vmatpush1.msra.mxu0 %v3423
    %3489 = vmatprep.subr.mxu0 0.0
    %3490 = vmatpush1.msra.mxu0 %v3424
    %3491 = vmatprep.subr.mxu0 0.0
    %3492 = vmatpush1.msra.mxu0 %v3425
    %3493 = vmatprep.subr.mxu0 0.0
    %3494 = vmatpush1.msra.mxu0 %v3426
    %3495 = vmatprep.subr.mxu0 0.0
    %3496 = vmatpush1.msra.mxu0 %v3427
    %3497 = vmatprep.subr.mxu0 0.0
    %3498 = vmatpush1.msra.mxu0 %v3428
    %3499 = vmatprep.subr.mxu0 0.0
    %3500 = vmatpush1.msra.mxu0 %v3429
    %3501 = vmatprep.subr.mxu0 0.0
    %3502 = vmatpush1.msra.mxu0 %v3430
    %3503 = vmatprep.subr.mxu0 0.0
    %3504 = vmatpush1.msra.mxu0 %v3431
    %3505 = vmatprep.subr.mxu0 0.0
    %3506 = vmatpush1.msra.mxu0 %v3432
    %3507 = vmatprep.subr.mxu0 0.0
    %3508 = vmatpush1.msra.mxu0 %v3433
    %3509 = vmatprep.subr.mxu0 0.0
    %3510 = vmatpush1.msra.mxu0 %v3434
    %3511 = vmatprep.subr.mxu0 0.0
    %3512 = vmatpush1.msra.mxu0 %v3435
    %3513 = vmatprep.subr.mxu0 0.0
    %3514 = vmatpush1.msra.mxu0 %v3436
    %3515 = vmatprep.subr.mxu0 0.0
    %3516 = vmatpush1.msra.mxu0 %v3437
    %3517 = vmatprep.subr.mxu0 0.0
    %3518 = vmatpush1.msra.mxu0 %v3438
    %3519 = vmatprep.subr.mxu0 0.0
    %3520 = vmatpush1.msra.mxu0 %v3439
    %3521 = vmatprep.subr.mxu0 0.0
    %3522 = vmatpush1.msra.mxu0 %v3440
    %3523 = vmatprep.subr.mxu0 0.0
    %3524 = vmatpush1.msra.mxu0 %v3441
    %3525 = vmatprep.subr.mxu0 0.0
    %3526 = vmatpush1.msra.mxu0 %v3442
    %3527 = vmatprep.subr.mxu0 0.0
    %3528 = vmatpush1.msra.mxu0 %v3443
    %3529 = vmatprep.subr.mxu0 0.0
    %3530 = vmatpush1.msra.mxu0 %v3444
    %3531 = vmatprep.subr.mxu0 0.0
    %3532 = vmatpush1.msra.mxu0 %v3445
    %3533 = vmatprep.subr.mxu0 0.0
    %3534 = vmatpush1.msra.mxu0 %v3446
    %3535 = vmatprep.mubr.f32.mxu0 %v3398
    %3536 = vmatmul.mubr.f32.gmra.mrb[0].mxu0 %v3407
    %v3537 = vpop.f32.mrb[0].mxu0
    %v3538 = vadd.f32 %v3469, %v3537
    %v3539 = vpop.f32.mrb[0].mxu0
    %3540 = vmatprep.mubr.f32.mxu0 %v3399
    %3541 = vmatmul.mubr.f32.gmra.mrb[0].mxu0 %v3404
    %v3542 = vpop.f32.mrb[0].mxu0
    %v3543 = vadd.f32 %v3469, %v3542
    %v3544 = vpop.f32.mrb[0].mxu0
    %3545 = vdwg.mxu0
    %3546 = vmatprep.subr.mxu0 0.0
    %3547 = vmatpush1.msra.mxu0 %v3447
    %3548 = vmatprep.subr.mxu0 0.0
    %3549 = vmatpush1.msra.mxu0 %v3448
    %3550 = vmatprep.subr.mxu0 0.0
    %3551 = vmatpush1.msra.mxu0 %v3449
    %3552 = vmatprep.subr.mxu0 0.0
    %3553 = vmatpush1.msra.mxu0 %v3450
    %3554 = vmatprep.subr.mxu0 0.0
    %3555 = vmatpush1.msra.mxu0 %v3451
    %3556 = vmatprep.subr.mxu0 0.0
    %3557 = vmatpush1.msra.mxu0 %v3452
    %3558 = vmatprep.subr.mxu0 0.0
    %3559 = vmatpush1.msra.mxu0 %v3453
    %3560 = vmatprep.subr.mxu0 0.0
    %3561 = vmatpush1.msra.mxu0 %v3454
    %3562 = vmatprep.subr.mxu0 0.0
    %3563 = vmatpush1.msra.mxu0 %v3455
    %3564 = vmatprep.subr.mxu0 0.0
    %3565 = vmatpush1.msra.mxu0 %v3456
    %3566 = vmatprep.subr.mxu0 0.0
    %3567 = vmatpush1.msra.mxu0 %v3457
    %3568 = vmatprep.subr.mxu0 0.0
    %3569 = vmatpush1.msra.mxu0 %v3458
    %3570 = vmatprep.subr.mxu0 0.0
    %3571 = vmatpush1.msra.mxu0 %v3459
    %3572 = vmatprep.subr.mxu0 0.0
    %3573 = vmatpush1.msra.mxu0 %v3460
    %3574 = vmatprep.subr.mxu0 0.0
    %3575 = vmatpush1.msra.mxu0 %v3461
    %3576 = vmatprep.subr.mxu0 0.0
    %3577 = vmatpush1.msra.mxu0 %v3462
    %3578 = vmatprep.subr.mxu0 0.0
    %3579 = vmatpush1.msra.mxu0 0.0
    %3580 = vmatprep.subr.mxu0 0.0
    %3581 = vmatpush1.msra.mxu0 0.0
    %3582 = vmatprep.subr.mxu0 0.0
    %3583 = vmatpush1.msra.mxu0 0.0
    %3584 = vmatprep.subr.mxu0 0.0
    %3585 = vmatpush1.msra.mxu0 0.0
    %3586 = vmatprep.subr.mxu0 0.0
    %3587 = vmatpush1.msra.mxu0 0.0
    %3588 = vmatprep.subr.mxu0 0.0
    %3589 = vmatpush1.msra.mxu0 0.0
    %3590 = vmatprep.subr.mxu0 0.0
    %3591 = vmatpush1.msra.mxu0 0.0
    %3592 = vmatprep.subr.mxu0 0.0
    %3593 = vmatpush1.msra.mxu0 0.0
    %3594 = vmatprep.subr.mxu0 0.0
    %3595 = vmatpush1.msra.mxu0 0.0
    %3596 = vmatprep.subr.mxu0 0.0
    %3597 = vmatpush1.msra.mxu0 0.0
    %3598 = vmatprep.subr.mxu0 0.0
    %3599 = vmatpush1.msra.mxu0 0.0
    %3600 = vmatprep.subr.mxu0 0.0
    %3601 = vmatpush1.msra.mxu0 0.0
    %3602 = vmatprep.subr.mxu0 0.0
    %3603 = vmatpush1.msra.mxu0 0.0
    %3604 = vmatprep.subr.mxu0 0.0
    %3605 = vmatpush1.msra.mxu0 0.0
    %3606 = vmatprep.subr.mxu0 0.0
    %3607 = vmatpush1.msra.mxu0 0.0
    %3608 = vmatprep.subr.mxu0 0.0
    %3609 = vmatpush1.msra.mxu0 0.0
    %3610 = vmatprep.mubr.f32.mxu0 0.0
    %3611 = vmatmul.mubr.f32.gmra.mrb[0].mxu0 %v3410
    %v3612 = vpop.f32.mrb[0].mxu0
    %v3613 = vadd.f32 %v3538, %v3612
    %v3614 = vpop.f32.mrb[0].mxu0
    %3615 = vmatprep.mubr.f32.mxu0 0.0
    %3616 = vmatmul.mubr.f32.gmra.mrb[0].mxu0 %v3413
    %v3617 = vpop.f32.mrb[0].mxu0
    %v3618 = vadd.f32 %v3543, %v3617
    %v3619 = vpop.f32.mrb[0].mxu0
    %3620 = vdwg.mxu0
    %v3621 = vadd.f32 %v3613, %v3175
    %v3622 = vadd.f32 %v3618, %v3176
    %v3623 = vld [vmem:[#allocation18] sm:$0xff]
    %v3624 = vld [vmem:[#allocation18 + $0x8] sm:$0xff]
    %v3625 = vld [vmem:[#allocation18 + $0x10] sm:$0xff]
    %v3626 = vld [vmem:[#allocation18 + $0x18] sm:$0xff]
    %v3627 = vld [vmem:[#allocation18 + $0x20] sm:$0xff]
    %v3628 = vld [vmem:[#allocation18 + $0x28] sm:$0xff]
    %v3629 = vld [vmem:[#allocation18 + $0x30] sm:$0xff]
    %v3630 = vld [vmem:[#allocation18 + $0x38] sm:$0xff]
    %v3631 = vld [vmem:[#allocation18 + $0x40] sm:$0xff]
    %v3632 = vld [vmem:[#allocation18 + $0x48] sm:$0xff]
    %v3633 = vld [vmem:[#allocation18 + $0x50] sm:$0xff]
    %v3634 = vld [vmem:[#allocation18 + $0x58] sm:$0xff]
    %v3635 = vld [vmem:[#allocation18 + $0x60] sm:$0xff]
    %v3636 = vld [vmem:[#allocation18 + $0x68] sm:$0xff]
    %v3637 = vld [vmem:[#allocation18 + $0x70] sm:$0xff]
    %v3638 = vld [vmem:[#allocation18 + $0x78] sm:$0xff]
    %v3639 = vld [vmem:[#allocation19] sm:$0x1]
    %v3641 = vlaneseq
    %v3642 = vshrl.u32 %v3641, 7
    %v3643 = vsub.s32 0, %v3642
    %v3644 = vrot.slane %v3639, %v3643
    %3646 = vmatprep.subr.mxu0 0.0
    %3647 = vmatpush1.msra.mxu0 %v3623
    %3648 = vmatprep.subr.mxu0 0.0
    %3649 = vmatpush1.msra.mxu0 %v3624
    %3650 = vmatprep.subr.mxu0 0.0
    %3651 = vmatpush1.msra.mxu0 %v3625
    %3652 = vmatprep.subr.mxu0 0.0
    %3653 = vmatpush1.msra.mxu0 %v3626
    %3654 = vmatprep.subr.mxu0 0.0
    %3655 = vmatpush1.msra.mxu0 %v3627
    %3656 = vmatprep.subr.mxu0 0.0
    %3657 = vmatpush1.msra.mxu0 %v3628
    %3658 = vmatprep.subr.mxu0 0.0
    %3659 = vmatpush1.msra.mxu0 %v3629
    %3660 = vmatprep.subr.mxu0 0.0
    %3661 = vmatpush1.msra.mxu0 %v3630
    %3662 = vmatprep.subr.mxu0 0.0
    %3663 = vmatpush1.msra.mxu0 %v3631
    %3664 = vmatprep.subr.mxu0 0.0
    %3665 = vmatpush1.msra.mxu0 %v3632
    %3666 = vmatprep.subr.mxu0 0.0
    %3667 = vmatpush1.msra.mxu0 %v3633
    %3668 = vmatprep.subr.mxu0 0.0
    %3669 = vmatpush1.msra.mxu0 %v3634
    %3670 = vmatprep.subr.mxu0 0.0
    %3671 = vmatpush1.msra.mxu0 %v3635
    %3672 = vmatprep.subr.mxu0 0.0
    %3673 = vmatpush1.msra.mxu0 %v3636
    %3674 = vmatprep.subr.mxu0 0.0
    %3675 = vmatpush1.msra.mxu0 %v3637
    %3676 = vmatprep.subr.mxu0 0.0
    %3677 = vmatpush1.msra.mxu0 %v3638
    %3678 = vmatprep.subr.mxu0 0.0
    %3679 = vmatpush1.msra.mxu0 0.0
    %3680 = vmatprep.subr.mxu0 0.0
    %3681 = vmatpush1.msra.mxu0 0.0
    %3682 = vmatprep.subr.mxu0 0.0
    %3683 = vmatpush1.msra.mxu0 0.0
    %3684 = vmatprep.subr.mxu0 0.0
    %3685 = vmatpush1.msra.mxu0 0.0
    %3686 = vmatprep.subr.mxu0 0.0
    %3687 = vmatpush1.msra.mxu0 0.0
    %3688 = vmatprep.subr.mxu0 0.0
    %3689 = vmatpush1.msra.mxu0 0.0
    %3690 = vmatprep.subr.mxu0 0.0
    %3691 = vmatpush1.msra.mxu0 0.0
    %3692 = vmatprep.subr.mxu0 0.0
    %3693 = vmatpush1.msra.mxu0 0.0
    %3694 = vmatprep.subr.mxu0 0.0
    %3695 = vmatpush1.msra.mxu0 0.0
    %3696 = vmatprep.subr.mxu0 0.0
    %3697 = vmatpush1.msra.mxu0 0.0
    %3698 = vmatprep.subr.mxu0 0.0
    %3699 = vmatpush1.msra.mxu0 0.0
    %3700 = vmatprep.subr.mxu0 0.0
    %3701 = vmatpush1.msra.mxu0 0.0
    %3702 = vmatprep.subr.mxu0 0.0
    %3703 = vmatpush1.msra.mxu0 0.0
    %3704 = vmatprep.subr.mxu0 0.0
    %3705 = vmatpush1.msra.mxu0 0.0
    %3706 = vmatprep.subr.mxu0 0.0
    %3707 = vmatpush1.msra.mxu0 0.0
    %3708 = vmatprep.subr.mxu0 0.0
    %3709 = vmatpush1.msra.mxu0 0.0
    %3710 = vmatprep.mubr.f32.mxu0 0.0
    %3711 = vmatmul.mubr.f32.gmra.mrb[0].mxu0 %v3621
    %v3712 = vpop.f32.mrb[0].mxu0
    %v3713 = vadd.f32 %v3644, %v3712
    %v3714 = vpop.f32.mrb[0].mxu0
    %3715 = vmatprep.mubr.f32.mxu0 0.0
    %3716 = vmatmul.mubr.f32.gmra.mrb[0].mxu0 %v3622
    %v3717 = vpop.f32.mrb[0].mxu0
    %v3718 = vadd.f32 %v3644, %v3717
    %v3719 = vpop.f32.mrb[0].mxu0
    %3720 = vdwg.mxu0
    %v3721 = vsub.f32 0.0, %v3713
    %v3722 = vsub.f32 0.0, %v3718
    %v3723 = vmul.f32 %v3721, 1.442695
    %v3724 = vpow.pop %v3723
    %v3725 = vmul.f32 %v3722, 1.442695
    %v3726 = vpow.pop %v3725
    %v3727 = vadd.f32 %v3724, 1.0
    %v3728 = vadd.f32 %v3726, 1.0
    %v3729 = vrcp.pop %v3727
    %v3730 = vmul.f32 1.0, %v3729
    %v3731 = vrcp.pop %v3728
    %v3732 = vmul.f32 1.0, %v3731
    %v3733 = vmul.f32 %v1537, %v3730
    %v3734 = vmul.f32 %v1538, %v3732
    %v3735 = vadd.f32 %v3733, %v645
    %v3736 = vadd.f32 %v3734, %v646
    %v3739 = vrot.slane %v3735, 7
    %v3740 = vrot.slane %v3736, 7
    %v3741 = vsel %vm203, %v3739, %v3740
    %v3744 = vsel %vm203, 0.0, %v3739
    %v3745 = vrot.slane %v3735, 1
    %v3746 = vrot.slane %v3736, 1
    %v3747 = vsel %vm210, %v3745, %v3746
    %v3750 = vsel %vm210, %v3746, 0.0
    %s3751 = scalar_lea.vmem [#allocation6], 3840
    %v3752 = vld [vmem:[%s3751] sm:$0xff]
    %v3753 = vld [vmem:[%s3751 + $0x8] sm:$0xff]
    %v3754 = vld [vmem:[%s3751 + $0x10] sm:$0xff]
    %v3755 = vld [vmem:[%s3751 + $0x18] sm:$0xff]
    %v3756 = vld [vmem:[%s3751 + $0x20] sm:$0xff]
    %v3757 = vld [vmem:[%s3751 + $0x28] sm:$0xff]
    %v3758 = vld [vmem:[%s3751 + $0x30] sm:$0xff]
    %v3759 = vld [vmem:[%s3751 + $0x38] sm:$0xff]
    %v3760 = vld [vmem:[%s3751 + $0x40] sm:$0xff]
    %v3761 = vld [vmem:[%s3751 + $0x48] sm:$0xff]
    %v3762 = vld [vmem:[%s3751 + $0x50] sm:$0xff]
    %v3763 = vld [vmem:[%s3751 + $0x58] sm:$0xff]
    %v3764 = vld [vmem:[%s3751 + $0x60] sm:$0xff]
    %v3765 = vld [vmem:[%s3751 + $0x68] sm:$0xff]
    %v3766 = vld [vmem:[%s3751 + $0x70] sm:$0xff]
    %v3767 = vld [vmem:[%s3751 + $0x78] sm:$0xff]
    %v3768 = vld [vmem:[%s3751 + $0x80] sm:$0xff]
    %v3769 = vld [vmem:[%s3751 + $0x88] sm:$0xff]
    %v3770 = vld [vmem:[%s3751 + $0x90] sm:$0xff]
    %v3771 = vld [vmem:[%s3751 + $0x98] sm:$0xff]
    %v3772 = vld [vmem:[%s3751 + $0xa0] sm:$0xff]
    %v3773 = vld [vmem:[%s3751 + $0xa8] sm:$0xff]
    %v3774 = vld [vmem:[%s3751 + $0xb0] sm:$0xff]
    %v3775 = vld [vmem:[%s3751 + $0xb8] sm:$0xff]
    %v3776 = vld [vmem:[%s3751 + $0xc0] sm:$0xff]
    %v3777 = vld [vmem:[%s3751 + $0xc8] sm:$0xff]
    %v3778 = vld [vmem:[%s3751 + $0xd0] sm:$0xff]
    %v3779 = vld [vmem:[%s3751 + $0xd8] sm:$0xff]
    %v3780 = vld [vmem:[%s3751 + $0xe0] sm:$0xff]
    %v3781 = vld [vmem:[%s3751 + $0xe8] sm:$0xff]
    %v3782 = vld [vmem:[%s3751 + $0xf0] sm:$0xff]
    %v3783 = vld [vmem:[%s3751 + $0xf8] sm:$0xff]
    %v3784 = vld [vmem:[%s3751 + $0x100] sm:$0xff]
    %v3785 = vld [vmem:[%s3751 + $0x108] sm:$0xff]
    %v3786 = vld [vmem:[%s3751 + $0x110] sm:$0xff]
    %v3787 = vld [vmem:[%s3751 + $0x118] sm:$0xff]
    %v3788 = vld [vmem:[%s3751 + $0x120] sm:$0xff]
    %v3789 = vld [vmem:[%s3751 + $0x128] sm:$0xff]
    %v3790 = vld [vmem:[%s3751 + $0x130] sm:$0xff]
    %v3791 = vld [vmem:[%s3751 + $0x138] sm:$0xff]
    %v3792 = vld [vmem:[%s3751 + $0x140] sm:$0xff]
    %v3793 = vld [vmem:[%s3751 + $0x148] sm:$0xff]
    %v3794 = vld [vmem:[%s3751 + $0x150] sm:$0xff]
    %v3795 = vld [vmem:[%s3751 + $0x158] sm:$0xff]
    %v3796 = vld [vmem:[%s3751 + $0x160] sm:$0xff]
    %v3797 = vld [vmem:[%s3751 + $0x168] sm:$0xff]
    %v3798 = vld [vmem:[%s3751 + $0x170] sm:$0xff]
    %v3799 = vld [vmem:[%s3751 + $0x178] sm:$0xff]
    %s3800 = scalar_lea.vmem [#allocation7], 10
    %v3801 = vld [vmem:[%s3800] sm:$0x1]
    %v3803 = vlaneseq
    %v3804 = vshrl.u32 %v3803, 7
    %v3805 = vsub.s32 0, %v3804
    %v3806 = vrot.slane %v3801, %v3805
    %3808 = vmatprep.subr.mxu0 0.0
    %3809 = vmatpush1.msra.mxu0 %v3752
    %3810 = vmatprep.subr.mxu0 0.0
    %3811 = vmatpush1.msra.mxu0 %v3753
    %3812 = vmatprep.subr.mxu0 0.0
    %3813 = vmatpush1.msra.mxu0 %v3754
    %3814 = vmatprep.subr.mxu0 0.0
    %3815 = vmatpush1.msra.mxu0 %v3755
    %3816 = vmatprep.subr.mxu0 0.0
    %3817 = vmatpush1.msra.mxu0 %v3756
    %3818 = vmatprep.subr.mxu0 0.0
    %3819 = vmatpush1.msra.mxu0 %v3757
    %3820 = vmatprep.subr.mxu0 0.0
    %3821 = vmatpush1.msra.mxu0 %v3758
    %3822 = vmatprep.subr.mxu0 0.0
    %3823 = vmatpush1.msra.mxu0 %v3759
    %3824 = vmatprep.subr.mxu0 0.0
    %3825 = vmatpush1.msra.mxu0 %v3760
    %3826 = vmatprep.subr.mxu0 0.0
    %3827 = vmatpush1.msra.mxu0 %v3761
    %3828 = vmatprep.subr.mxu0 0.0
    %3829 = vmatpush1.msra.mxu0 %v3762
    %3830 = vmatprep.subr.mxu0 0.0
    %3831 = vmatpush1.msra.mxu0 %v3763
    %3832 = vmatprep.subr.mxu0 0.0
    %3833 = vmatpush1.msra.mxu0 %v3764
    %3834 = vmatprep.subr.mxu0 0.0
    %3835 = vmatpush1.msra.mxu0 %v3765
    %3836 = vmatprep.subr.mxu0 0.0
    %3837 = vmatpush1.msra.mxu0 %v3766
    %3838 = vmatprep.subr.mxu0 0.0
    %3839 = vmatpush1.msra.mxu0 %v3767
    %3840 = vmatprep.subr.mxu0 0.0
    %3841 = vmatpush1.msra.mxu0 %v3768
    %3842 = vmatprep.subr.mxu0 0.0
    %3843 = vmatpush1.msra.mxu0 %v3769
    %3844 = vmatprep.subr.mxu0 0.0
    %3845 = vmatpush1.msra.mxu0 %v3770
    %3846 = vmatprep.subr.mxu0 0.0
    %3847 = vmatpush1.msra.mxu0 %v3771
    %3848 = vmatprep.subr.mxu0 0.0
    %3849 = vmatpush1.msra.mxu0 %v3772
    %3850 = vmatprep.subr.mxu0 0.0
    %3851 = vmatpush1.msra.mxu0 %v3773
    %3852 = vmatprep.subr.mxu0 0.0
    %3853 = vmatpush1.msra.mxu0 %v3774
    %3854 = vmatprep.subr.mxu0 0.0
    %3855 = vmatpush1.msra.mxu0 %v3775
    %3856 = vmatprep.subr.mxu0 0.0
    %3857 = vmatpush1.msra.mxu0 %v3776
    %3858 = vmatprep.subr.mxu0 0.0
    %3859 = vmatpush1.msra.mxu0 %v3777
    %3860 = vmatprep.subr.mxu0 0.0
    %3861 = vmatpush1.msra.mxu0 %v3778
    %3862 = vmatprep.subr.mxu0 0.0
    %3863 = vmatpush1.msra.mxu0 %v3779
    %3864 = vmatprep.subr.mxu0 0.0
    %3865 = vmatpush1.msra.mxu0 %v3780
    %3866 = vmatprep.subr.mxu0 0.0
    %3867 = vmatpush1.msra.mxu0 %v3781
    %3868 = vmatprep.subr.mxu0 0.0
    %3869 = vmatpush1.msra.mxu0 %v3782
    %3870 = vmatprep.subr.mxu0 0.0
    %3871 = vmatpush1.msra.mxu0 %v3783
    %3872 = vmatprep.mubr.f32.mxu0 %v3735
    %3873 = vmatmul.mubr.f32.gmra.mrb[0].mxu0 %v3744
    %v3874 = vpop.f32.mrb[0].mxu0
    %v3875 = vadd.f32 %v3806, %v3874
    %v3876 = vpop.f32.mrb[0].mxu0
    %3877 = vmatprep.mubr.f32.mxu0 %v3736
    %3878 = vmatmul.mubr.f32.gmra.mrb[0].mxu0 %v3741
    %v3879 = vpop.f32.mrb[0].mxu0
    %v3880 = vadd.f32 %v3806, %v3879
    %v3881 = vpop.f32.mrb[0].mxu0
    %3882 = vdwg.mxu0
    %3883 = vmatprep.subr.mxu0 0.0
    %3884 = vmatpush1.msra.mxu0 %v3784
    %3885 = vmatprep.subr.mxu0 0.0
    %3886 = vmatpush1.msra.mxu0 %v3785
    %3887 = vmatprep.subr.mxu0 0.0
    %3888 = vmatpush1.msra.mxu0 %v3786
    %3889 = vmatprep.subr.mxu0 0.0
    %3890 = vmatpush1.msra.mxu0 %v3787
    %3891 = vmatprep.subr.mxu0 0.0
    %3892 = vmatpush1.msra.mxu0 %v3788
    %3893 = vmatprep.subr.mxu0 0.0
    %3894 = vmatpush1.msra.mxu0 %v3789
    %3895 = vmatprep.subr.mxu0 0.0
    %3896 = vmatpush1.msra.mxu0 %v3790
    %3897 = vmatprep.subr.mxu0 0.0
    %3898 = vmatpush1.msra.mxu0 %v3791
    %3899 = vmatprep.subr.mxu0 0.0
    %3900 = vmatpush1.msra.mxu0 %v3792
    %3901 = vmatprep.subr.mxu0 0.0
    %3902 = vmatpush1.msra.mxu0 %v3793
    %3903 = vmatprep.subr.mxu0 0.0
    %3904 = vmatpush1.msra.mxu0 %v3794
    %3905 = vmatprep.subr.mxu0 0.0
    %3906 = vmatpush1.msra.mxu0 %v3795
    %3907 = vmatprep.subr.mxu0 0.0
    %3908 = vmatpush1.msra.mxu0 %v3796
    %3909 = vmatprep.subr.mxu0 0.0
    %3910 = vmatpush1.msra.mxu0 %v3797
    %3911 = vmatprep.subr.mxu0 0.0
    %3912 = vmatpush1.msra.mxu0 %v3798
    %3913 = vmatprep.subr.mxu0 0.0
    %3914 = vmatpush1.msra.mxu0 %v3799
    %3915 = vmatprep.subr.mxu0 0.0
    %3916 = vmatpush1.msra.mxu0 0.0
    %3917 = vmatprep.subr.mxu0 0.0
    %3918 = vmatpush1.msra.mxu0 0.0
    %3919 = vmatprep.subr.mxu0 0.0
    %3920 = vmatpush1.msra.mxu0 0.0
    %3921 = vmatprep.subr.mxu0 0.0
    %3922 = vmatpush1.msra.mxu0 0.0
    %3923 = vmatprep.subr.mxu0 0.0
    %3924 = vmatpush1.msra.mxu0 0.0
    %3925 = vmatprep.subr.mxu0 0.0
    %3926 = vmatpush1.msra.mxu0 0.0
    %3927 = vmatprep.subr.mxu0 0.0
    %3928 = vmatpush1.msra.mxu0 0.0
    %3929 = vmatprep.subr.mxu0 0.0
    %3930 = vmatpush1.msra.mxu0 0.0
    %3931 = vmatprep.subr.mxu0 0.0
    %3932 = vmatpush1.msra.mxu0 0.0
    %3933 = vmatprep.subr.mxu0 0.0
    %3934 = vmatpush1.msra.mxu0 0.0
    %3935 = vmatprep.subr.mxu0 0.0
    %3936 = vmatpush1.msra.mxu0 0.0
    %3937 = vmatprep.subr.mxu0 0.0
    %3938 = vmatpush1.msra.mxu0 0.0
    %3939 = vmatprep.subr.mxu0 0.0
    %3940 = vmatpush1.msra.mxu0 0.0
    %3941 = vmatprep.subr.mxu0 0.0
    %3942 = vmatpush1.msra.mxu0 0.0
    %3943 = vmatprep.subr.mxu0 0.0
    %3944 = vmatpush1.msra.mxu0 0.0
    %3945 = vmatprep.subr.mxu0 0.0
    %3946 = vmatpush1.msra.mxu0 0.0
    %3947 = vmatprep.mubr.f32.mxu0 0.0
    %3948 = vmatmul.mubr.f32.gmra.mrb[0].mxu0 %v3747
    %v3949 = vpop.f32.mrb[0].mxu0
    %v3950 = vadd.f32 %v3875, %v3949
    %v3951 = vpop.f32.mrb[0].mxu0
    %3952 = vmatprep.mubr.f32.mxu0 0.0
    %3953 = vmatmul.mubr.f32.gmra.mrb[0].mxu0 %v3750
    %v3954 = vpop.f32.mrb[0].mxu0
    %v3955 = vadd.f32 %v3880, %v3954
    %v3956 = vpop.f32.mrb[0].mxu0
    %3957 = vdwg.mxu0
    %v3958 = vmax.f32 %v3950, 0.0
    %v3959 = vmax.f32 %v3955, 0.0
    %v3962 = vrot.slane %v3958, 7
    %v3963 = vrot.slane %v3959, 7
    %v3964 = vsel %vm203, %v3962, %v3963
    %v3967 = vsel %vm203, 0.0, %v3962
    %v3968 = vrot.slane %v3958, 1
    %v3969 = vrot.slane %v3959, 1
    %v3970 = vsel %vm210, %v3968, %v3969
    %v3973 = vsel %vm210, %v3969, 0.0
    %s3974 = scalar_lea.vmem [#allocation6], 4224
    %v3975 = vld [vmem:[%s3974] sm:$0xff]
    %v3976 = vld [vmem:[%s3974 + $0x8] sm:$0xff]
    %v3977 = vld [vmem:[%s3974 + $0x10] sm:$0xff]
    %v3978 = vld [vmem:[%s3974 + $0x18] sm:$0xff]
    %v3979 = vld [vmem:[%s3974 + $0x20] sm:$0xff]
    %v3980 = vld [vmem:[%s3974 + $0x28] sm:$0xff]
    %v3981 = vld [vmem:[%s3974 + $0x30] sm:$0xff]
    %v3982 = vld [vmem:[%s3974 + $0x38] sm:$0xff]
    %v3983 = vld [vmem:[%s3974 + $0x40] sm:$0xff]
    %v3984 = vld [vmem:[%s3974 + $0x48] sm:$0xff]
    %v3985 = vld [vmem:[%s3974 + $0x50] sm:$0xff]
    %v3986 = vld [vmem:[%s3974 + $0x58] sm:$0xff]
    %v3987 = vld [vmem:[%s3974 + $0x60] sm:$0xff]
    %v3988 = vld [vmem:[%s3974 + $0x68] sm:$0xff]
    %v3989 = vld [vmem:[%s3974 + $0x70] sm:$0xff]
    %v3990 = vld [vmem:[%s3974 + $0x78] sm:$0xff]
    %v3991 = vld [vmem:[%s3974 + $0x80] sm:$0xff]
    %v3992 = vld [vmem:[%s3974 + $0x88] sm:$0xff]
    %v3993 = vld [vmem:[%s3974 + $0x90] sm:$0xff]
    %v3994 = vld [vmem:[%s3974 + $0x98] sm:$0xff]
    %v3995 = vld [vmem:[%s3974 + $0xa0] sm:$0xff]
    %v3996 = vld [vmem:[%s3974 + $0xa8] sm:$0xff]
    %v3997 = vld [vmem:[%s3974 + $0xb0] sm:$0xff]
    %v3998 = vld [vmem:[%s3974 + $0xb8] sm:$0xff]
    %v3999 = vld [vmem:[%s3974 + $0xc0] sm:$0xff]
    %v4000 = vld [vmem:[%s3974 + $0xc8] sm:$0xff]
    %v4001 = vld [vmem:[%s3974 + $0xd0] sm:$0xff]
    %v4002 = vld [vmem:[%s3974 + $0xd8] sm:$0xff]
    %v4003 = vld [vmem:[%s3974 + $0xe0] sm:$0xff]
    %v4004 = vld [vmem:[%s3974 + $0xe8] sm:$0xff]
    %v4005 = vld [vmem:[%s3974 + $0xf0] sm:$0xff]
    %v4006 = vld [vmem:[%s3974 + $0xf8] sm:$0xff]
    %v4007 = vld [vmem:[%s3974 + $0x100] sm:$0xff]
    %v4008 = vld [vmem:[%s3974 + $0x108] sm:$0xff]
    %v4009 = vld [vmem:[%s3974 + $0x110] sm:$0xff]
    %v4010 = vld [vmem:[%s3974 + $0x118] sm:$0xff]
    %v4011 = vld [vmem:[%s3974 + $0x120] sm:$0xff]
    %v4012 = vld [vmem:[%s3974 + $0x128] sm:$0xff]
    %v4013 = vld [vmem:[%s3974 + $0x130] sm:$0xff]
    %v4014 = vld [vmem:[%s3974 + $0x138] sm:$0xff]
    %v4015 = vld [vmem:[%s3974 + $0x140] sm:$0xff]
    %v4016 = vld [vmem:[%s3974 + $0x148] sm:$0xff]
    %v4017 = vld [vmem:[%s3974 + $0x150] sm:$0xff]
    %v4018 = vld [vmem:[%s3974 + $0x158] sm:$0xff]
    %v4019 = vld [vmem:[%s3974 + $0x160] sm:$0xff]
    %v4020 = vld [vmem:[%s3974 + $0x168] sm:$0xff]
    %v4021 = vld [vmem:[%s3974 + $0x170] sm:$0xff]
    %v4022 = vld [vmem:[%s3974 + $0x178] sm:$0xff]
    %s4023 = scalar_lea.vmem [#allocation7], 11
    %v4024 = vld [vmem:[%s4023] sm:$0x1]
    %v4026 = vlaneseq
    %v4027 = vshrl.u32 %v4026, 7
    %v4028 = vsub.s32 0, %v4027
    %v4029 = vrot.slane %v4024, %v4028
    %4031 = vmatprep.subr.mxu0 0.0
    %4032 = vmatpush1.msra.mxu0 %v3975
    %4033 = vmatprep.subr.mxu0 0.0
    %4034 = vmatpush1.msra.mxu0 %v3976
    %4035 = vmatprep.subr.mxu0 0.0
    %4036 = vmatpush1.msra.mxu0 %v3977
    %4037 = vmatprep.subr.mxu0 0.0
    %4038 = vmatpush1.msra.mxu0 %v3978
    %4039 = vmatprep.subr.mxu0 0.0
    %4040 = vmatpush1.msra.mxu0 %v3979
    %4041 = vmatprep.subr.mxu0 0.0
    %4042 = vmatpush1.msra.mxu0 %v3980
    %4043 = vmatprep.subr.mxu0 0.0
    %4044 = vmatpush1.msra.mxu0 %v3981
    %4045 = vmatprep.subr.mxu0 0.0
    %4046 = vmatpush1.msra.mxu0 %v3982
    %4047 = vmatprep.subr.mxu0 0.0
    %4048 = vmatpush1.msra.mxu0 %v3983
    %4049 = vmatprep.subr.mxu0 0.0
    %4050 = vmatpush1.msra.mxu0 %v3984
    %4051 = vmatprep.subr.mxu0 0.0
    %4052 = vmatpush1.msra.mxu0 %v3985
    %4053 = vmatprep.subr.mxu0 0.0
    %4054 = vmatpush1.msra.mxu0 %v3986
    %4055 = vmatprep.subr.mxu0 0.0
    %4056 = vmatpush1.msra.mxu0 %v3987
    %4057 = vmatprep.subr.mxu0 0.0
    %4058 = vmatpush1.msra.mxu0 %v3988
    %4059 = vmatprep.subr.mxu0 0.0
    %4060 = vmatpush1.msra.mxu0 %v3989
    %4061 = vmatprep.subr.mxu0 0.0
    %4062 = vmatpush1.msra.mxu0 %v3990
    %4063 = vmatprep.subr.mxu0 0.0
    %4064 = vmatpush1.msra.mxu0 %v3991
    %4065 = vmatprep.subr.mxu0 0.0
    %4066 = vmatpush1.msra.mxu0 %v3992
    %4067 = vmatprep.subr.mxu0 0.0
    %4068 = vmatpush1.msra.mxu0 %v3993
    %4069 = vmatprep.subr.mxu0 0.0
    %4070 = vmatpush1.msra.mxu0 %v3994
    %4071 = vmatprep.subr.mxu0 0.0
    %4072 = vmatpush1.msra.mxu0 %v3995
    %4073 = vmatprep.subr.mxu0 0.0
    %4074 = vmatpush1.msra.mxu0 %v3996
    %4075 = vmatprep.subr.mxu0 0.0
    %4076 = vmatpush1.msra.mxu0 %v3997
    %4077 = vmatprep.subr.mxu0 0.0
    %4078 = vmatpush1.msra.mxu0 %v3998
    %4079 = vmatprep.subr.mxu0 0.0
    %4080 = vmatpush1.msra.mxu0 %v3999
    %4081 = vmatprep.subr.mxu0 0.0
    %4082 = vmatpush1.msra.mxu0 %v4000
    %4083 = vmatprep.subr.mxu0 0.0
    %4084 = vmatpush1.msra.mxu0 %v4001
    %4085 = vmatprep.subr.mxu0 0.0
    %4086 = vmatpush1.msra.mxu0 %v4002
    %4087 = vmatprep.subr.mxu0 0.0
    %4088 = vmatpush1.msra.mxu0 %v4003
    %4089 = vmatprep.subr.mxu0 0.0
    %4090 = vmatpush1.msra.mxu0 %v4004
    %4091 = vmatprep.subr.mxu0 0.0
    %4092 = vmatpush1.msra.mxu0 %v4005
    %4093 = vmatprep.subr.mxu0 0.0
    %4094 = vmatpush1.msra.mxu0 %v4006
    %4095 = vmatprep.mubr.f32.mxu0 %v3958
    %4096 = vmatmul.mubr.f32.gmra.mrb[0].mxu0 %v3967
    %v4097 = vpop.f32.mrb[0].mxu0
    %v4098 = vadd.f32 %v4029, %v4097
    %v4099 = vpop.f32.mrb[0].mxu0
    %4100 = vmatprep.mubr.f32.mxu0 %v3959
    %4101 = vmatmul.mubr.f32.gmra.mrb[0].mxu0 %v3964
    %v4102 = vpop.f32.mrb[0].mxu0
    %v4103 = vadd.f32 %v4029, %v4102
    %v4104 = vpop.f32.mrb[0].mxu0
    %4105 = vdwg.mxu0
    %4106 = vmatprep.subr.mxu0 0.0
    %4107 = vmatpush1.msra.mxu0 %v4007
    %4108 = vmatprep.subr.mxu0 0.0
    %4109 = vmatpush1.msra.mxu0 %v4008
    %4110 = vmatprep.subr.mxu0 0.0
    %4111 = vmatpush1.msra.mxu0 %v4009
    %4112 = vmatprep.subr.mxu0 0.0
    %4113 = vmatpush1.msra.mxu0 %v4010
    %4114 = vmatprep.subr.mxu0 0.0
    %4115 = vmatpush1.msra.mxu0 %v4011
    %4116 = vmatprep.subr.mxu0 0.0
    %4117 = vmatpush1.msra.mxu0 %v4012
    %4118 = vmatprep.subr.mxu0 0.0
    %4119 = vmatpush1.msra.mxu0 %v4013
    %4120 = vmatprep.subr.mxu0 0.0
    %4121 = vmatpush1.msra.mxu0 %v4014
    %4122 = vmatprep.subr.mxu0 0.0
    %4123 = vmatpush1.msra.mxu0 %v4015
    %4124 = vmatprep.subr.mxu0 0.0
    %4125 = vmatpush1.msra.mxu0 %v4016
    %4126 = vmatprep.subr.mxu0 0.0
    %4127 = vmatpush1.msra.mxu0 %v4017
    %4128 = vmatprep.subr.mxu0 0.0
    %4129 = vmatpush1.msra.mxu0 %v4018
    %4130 = vmatprep.subr.mxu0 0.0
    %4131 = vmatpush1.msra.mxu0 %v4019
    %4132 = vmatprep.subr.mxu0 0.0
    %4133 = vmatpush1.msra.mxu0 %v4020
    %4134 = vmatprep.subr.mxu0 0.0
    %4135 = vmatpush1.msra.mxu0 %v4021
    %4136 = vmatprep.subr.mxu0 0.0
    %4137 = vmatpush1.msra.mxu0 %v4022
    %4138 = vmatprep.subr.mxu0 0.0
    %4139 = vmatpush1.msra.mxu0 0.0
    %4140 = vmatprep.subr.mxu0 0.0
    %4141 = vmatpush1.msra.mxu0 0.0
    %4142 = vmatprep.subr.mxu0 0.0
    %4143 = vmatpush1.msra.mxu0 0.0
    %4144 = vmatprep.subr.mxu0 0.0
    %4145 = vmatpush1.msra.mxu0 0.0
    %4146 = vmatprep.subr.mxu0 0.0
    %4147 = vmatpush1.msra.mxu0 0.0
    %4148 = vmatprep.subr.mxu0 0.0
    %4149 = vmatpush1.msra.mxu0 0.0
    %4150 = vmatprep.subr.mxu0 0.0
    %4151 = vmatpush1.msra.mxu0 0.0
    %4152 = vmatprep.subr.mxu0 0.0
    %4153 = vmatpush1.msra.mxu0 0.0
    %4154 = vmatprep.subr.mxu0 0.0
    %4155 = vmatpush1.msra.mxu0 0.0
    %4156 = vmatprep.subr.mxu0 0.0
    %4157 = vmatpush1.msra.mxu0 0.0
    %4158 = vmatprep.subr.mxu0 0.0
    %4159 = vmatpush1.msra.mxu0 0.0
    %4160 = vmatprep.subr.mxu0 0.0
    %4161 = vmatpush1.msra.mxu0 0.0
    %4162 = vmatprep.subr.mxu0 0.0
    %4163 = vmatpush1.msra.mxu0 0.0
    %4164 = vmatprep.subr.mxu0 0.0
    %4165 = vmatpush1.msra.mxu0 0.0
    %4166 = vmatprep.subr.mxu0 0.0
    %4167 = vmatpush1.msra.mxu0 0.0
    %4168 = vmatprep.subr.mxu0 0.0
    %4169 = vmatpush1.msra.mxu0 0.0
    %4170 = vmatprep.mubr.f32.mxu0 0.0
    %4171 = vmatmul.mubr.f32.gmra.mrb[0].mxu0 %v3970
    %v4172 = vpop.f32.mrb[0].mxu0
    %v4173 = vadd.f32 %v4098, %v4172
    %v4174 = vpop.f32.mrb[0].mxu0
    %4175 = vmatprep.mubr.f32.mxu0 0.0
    %4176 = vmatmul.mubr.f32.gmra.mrb[0].mxu0 %v3973
    %v4177 = vpop.f32.mrb[0].mxu0
    %v4178 = vadd.f32 %v4103, %v4177
    %v4179 = vpop.f32.mrb[0].mxu0
    %4180 = vdwg.mxu0
    %v4181 = vadd.f32 %v4173, %v3735
    %v4182 = vadd.f32 %v4178, %v3736
    %v4185 = vrot.slane %v4181, 7
    %v4186 = vrot.slane %v4182, 7
    %v4187 = vsel %vm203, %v4185, %v4186
    %v4190 = vsel %vm203, 0.0, %v4185
    %v4191 = vrot.slane %v4181, 1
    %v4192 = vrot.slane %v4182, 1
    %v4193 = vsel %vm210, %v4191, %v4192
    %v4196 = vsel %vm210, %v4192, 0.0
    %s4197 = scalar_lea.vmem [#allocation6], 4608
    %v4198 = vld [vmem:[%s4197] sm:$0xff]
    %v4199 = vld [vmem:[%s4197 + $0x8] sm:$0xff]
    %v4200 = vld [vmem:[%s4197 + $0x10] sm:$0xff]
    %v4201 = vld [vmem:[%s4197 + $0x18] sm:$0xff]
    %v4202 = vld [vmem:[%s4197 + $0x20] sm:$0xff]
    %v4203 = vld [vmem:[%s4197 + $0x28] sm:$0xff]
    %v4204 = vld [vmem:[%s4197 + $0x30] sm:$0xff]
    %v4205 = vld [vmem:[%s4197 + $0x38] sm:$0xff]
    %v4206 = vld [vmem:[%s4197 + $0x40] sm:$0xff]
    %v4207 = vld [vmem:[%s4197 + $0x48] sm:$0xff]
    %v4208 = vld [vmem:[%s4197 + $0x50] sm:$0xff]
    %v4209 = vld [vmem:[%s4197 + $0x58] sm:$0xff]
    %v4210 = vld [vmem:[%s4197 + $0x60] sm:$0xff]
    %v4211 = vld [vmem:[%s4197 + $0x68] sm:$0xff]
    %v4212 = vld [vmem:[%s4197 + $0x70] sm:$0xff]
    %v4213 = vld [vmem:[%s4197 + $0x78] sm:$0xff]
    %v4214 = vld [vmem:[%s4197 + $0x80] sm:$0xff]
    %v4215 = vld [vmem:[%s4197 + $0x88] sm:$0xff]
    %v4216 = vld [vmem:[%s4197 + $0x90] sm:$0xff]
    %v4217 = vld [vmem:[%s4197 + $0x98] sm:$0xff]
    %v4218 = vld [vmem:[%s4197 + $0xa0] sm:$0xff]
    %v4219 = vld [vmem:[%s4197 + $0xa8] sm:$0xff]
    %v4220 = vld [vmem:[%s4197 + $0xb0] sm:$0xff]
    %v4221 = vld [vmem:[%s4197 + $0xb8] sm:$0xff]
    %v4222 = vld [vmem:[%s4197 + $0xc0] sm:$0xff]
    %v4223 = vld [vmem:[%s4197 + $0xc8] sm:$0xff]
    %v4224 = vld [vmem:[%s4197 + $0xd0] sm:$0xff]
    %v4225 = vld [vmem:[%s4197 + $0xd8] sm:$0xff]
    %v4226 = vld [vmem:[%s4197 + $0xe0] sm:$0xff]
    %v4227 = vld [vmem:[%s4197 + $0xe8] sm:$0xff]
    %v4228 = vld [vmem:[%s4197 + $0xf0] sm:$0xff]
    %v4229 = vld [vmem:[%s4197 + $0xf8] sm:$0xff]
    %v4230 = vld [vmem:[%s4197 + $0x100] sm:$0xff]
    %v4231 = vld [vmem:[%s4197 + $0x108] sm:$0xff]
    %v4232 = vld [vmem:[%s4197 + $0x110] sm:$0xff]
    %v4233 = vld [vmem:[%s4197 + $0x118] sm:$0xff]
    %v4234 = vld [vmem:[%s4197 + $0x120] sm:$0xff]
    %v4235 = vld [vmem:[%s4197 + $0x128] sm:$0xff]
    %v4236 = vld [vmem:[%s4197 + $0x130] sm:$0xff]
    %v4237 = vld [vmem:[%s4197 + $0x138] sm:$0xff]
    %v4238 = vld [vmem:[%s4197 + $0x140] sm:$0xff]
    %v4239 = vld [vmem:[%s4197 + $0x148] sm:$0xff]
    %v4240 = vld [vmem:[%s4197 + $0x150] sm:$0xff]
    %v4241 = vld [vmem:[%s4197 + $0x158] sm:$0xff]
    %v4242 = vld [vmem:[%s4197 + $0x160] sm:$0xff]
    %v4243 = vld [vmem:[%s4197 + $0x168] sm:$0xff]
    %v4244 = vld [vmem:[%s4197 + $0x170] sm:$0xff]
    %v4245 = vld [vmem:[%s4197 + $0x178] sm:$0xff]
    %s4246 = scalar_lea.vmem [#allocation7], 12
    %v4247 = vld [vmem:[%s4246] sm:$0x1]
    %v4249 = vlaneseq
    %v4250 = vshrl.u32 %v4249, 7
    %v4251 = vsub.s32 0, %v4250
    %v4252 = vrot.slane %v4247, %v4251
    %4254 = vmatprep.subr.mxu0 0.0
    %4255 = vmatpush1.msra.mxu0 %v4198
    %4256 = vmatprep.subr.mxu0 0.0
    %4257 = vmatpush1.msra.mxu0 %v4199
    %4258 = vmatprep.subr.mxu0 0.0
    %4259 = vmatpush1.msra.mxu0 %v4200
    %4260 = vmatprep.subr.mxu0 0.0
    %4261 = vmatpush1.msra.mxu0 %v4201
    %4262 = vmatprep.subr.mxu0 0.0
    %4263 = vmatpush1.msra.mxu0 %v4202
    %4264 = vmatprep.subr.mxu0 0.0
    %4265 = vmatpush1.msra.mxu0 %v4203
    %4266 = vmatprep.subr.mxu0 0.0
    %4267 = vmatpush1.msra.mxu0 %v4204
    %4268 = vmatprep.subr.mxu0 0.0
    %4269 = vmatpush1.msra.mxu0 %v4205
    %4270 = vmatprep.subr.mxu0 0.0
    %4271 = vmatpush1.msra.mxu0 %v4206
    %4272 = vmatprep.subr.mxu0 0.0
    %4273 = vmatpush1.msra.mxu0 %v4207
    %4274 = vmatprep.subr.mxu0 0.0
    %4275 = vmatpush1.msra.mxu0 %v4208
    %4276 = vmatprep.subr.mxu0 0.0
    %4277 = vmatpush1.msra.mxu0 %v4209
    %4278 = vmatprep.subr.mxu0 0.0
    %4279 = vmatpush1.msra.mxu0 %v4210
    %4280 = vmatprep.subr.mxu0 0.0
    %4281 = vmatpush1.msra.mxu0 %v4211
    %4282 = vmatprep.subr.mxu0 0.0
    %4283 = vmatpush1.msra.mxu0 %v4212
    %4284 = vmatprep.subr.mxu0 0.0
    %4285 = vmatpush1.msra.mxu0 %v4213
    %4286 = vmatprep.subr.mxu0 0.0
    %4287 = vmatpush1.msra.mxu0 %v4214
    %4288 = vmatprep.subr.mxu0 0.0
    %4289 = vmatpush1.msra.mxu0 %v4215
    %4290 = vmatprep.subr.mxu0 0.0
    %4291 = vmatpush1.msra.mxu0 %v4216
    %4292 = vmatprep.subr.mxu0 0.0
    %4293 = vmatpush1.msra.mxu0 %v4217
    %4294 = vmatprep.subr.mxu0 0.0
    %4295 = vmatpush1.msra.mxu0 %v4218
    %4296 = vmatprep.subr.mxu0 0.0
    %4297 = vmatpush1.msra.mxu0 %v4219
    %4298 = vmatprep.subr.mxu0 0.0
    %4299 = vmatpush1.msra.mxu0 %v4220
    %4300 = vmatprep.subr.mxu0 0.0
    %4301 = vmatpush1.msra.mxu0 %v4221
    %4302 = vmatprep.subr.mxu0 0.0
    %4303 = vmatpush1.msra.mxu0 %v4222
    %4304 = vmatprep.subr.mxu0 0.0
    %4305 = vmatpush1.msra.mxu0 %v4223
    %4306 = vmatprep.subr.mxu0 0.0
    %4307 = vmatpush1.msra.mxu0 %v4224
    %4308 = vmatprep.subr.mxu0 0.0
    %4309 = vmatpush1.msra.mxu0 %v4225
    %4310 = vmatprep.subr.mxu0 0.0
    %4311 = vmatpush1.msra.mxu0 %v4226
    %4312 = vmatprep.subr.mxu0 0.0
    %4313 = vmatpush1.msra.mxu0 %v4227
    %4314 = vmatprep.subr.mxu0 0.0
    %4315 = vmatpush1.msra.mxu0 %v4228
    %4316 = vmatprep.subr.mxu0 0.0
    %4317 = vmatpush1.msra.mxu0 %v4229
    %4318 = vmatprep.mubr.f32.mxu0 %v4181
    %4319 = vmatmul.mubr.f32.gmra.mrb[0].mxu0 %v4190
    %v4320 = vpop.f32.mrb[0].mxu0
    %v4321 = vadd.f32 %v4252, %v4320
    %v4322 = vpop.f32.mrb[0].mxu0
    %4323 = vmatprep.mubr.f32.mxu0 %v4182
    %4324 = vmatmul.mubr.f32.gmra.mrb[0].mxu0 %v4187
    %v4325 = vpop.f32.mrb[0].mxu0
    %v4326 = vadd.f32 %v4252, %v4325
    %v4327 = vpop.f32.mrb[0].mxu0
    %4328 = vdwg.mxu0
    %4329 = vmatprep.subr.mxu0 0.0
    %4330 = vmatpush1.msra.mxu0 %v4230
    %4331 = vmatprep.subr.mxu0 0.0
    %4332 = vmatpush1.msra.mxu0 %v4231
    %4333 = vmatprep.subr.mxu0 0.0
    %4334 = vmatpush1.msra.mxu0 %v4232
    %4335 = vmatprep.subr.mxu0 0.0
    %4336 = vmatpush1.msra.mxu0 %v4233
    %4337 = vmatprep.subr.mxu0 0.0
    %4338 = vmatpush1.msra.mxu0 %v4234
    %4339 = vmatprep.subr.mxu0 0.0
    %4340 = vmatpush1.msra.mxu0 %v4235
    %4341 = vmatprep.subr.mxu0 0.0
    %4342 = vmatpush1.msra.mxu0 %v4236
    %4343 = vmatprep.subr.mxu0 0.0
    %4344 = vmatpush1.msra.mxu0 %v4237
    %4345 = vmatprep.subr.mxu0 0.0
    %4346 = vmatpush1.msra.mxu0 %v4238
    %4347 = vmatprep.subr.mxu0 0.0
    %4348 = vmatpush1.msra.mxu0 %v4239
    %4349 = vmatprep.subr.mxu0 0.0
    %4350 = vmatpush1.msra.mxu0 %v4240
    %4351 = vmatprep.subr.mxu0 0.0
    %4352 = vmatpush1.msra.mxu0 %v4241
    %4353 = vmatprep.subr.mxu0 0.0
    %4354 = vmatpush1.msra.mxu0 %v4242
    %4355 = vmatprep.subr.mxu0 0.0
    %4356 = vmatpush1.msra.mxu0 %v4243
    %4357 = vmatprep.subr.mxu0 0.0
    %4358 = vmatpush1.msra.mxu0 %v4244
    %4359 = vmatprep.subr.mxu0 0.0
    %4360 = vmatpush1.msra.mxu0 %v4245
    %4361 = vmatprep.subr.mxu0 0.0
    %4362 = vmatpush1.msra.mxu0 0.0
    %4363 = vmatprep.subr.mxu0 0.0
    %4364 = vmatpush1.msra.mxu0 0.0
    %4365 = vmatprep.subr.mxu0 0.0
    %4366 = vmatpush1.msra.mxu0 0.0
    %4367 = vmatprep.subr.mxu0 0.0
    %4368 = vmatpush1.msra.mxu0 0.0
    %4369 = vmatprep.subr.mxu0 0.0
    %4370 = vmatpush1.msra.mxu0 0.0
    %4371 = vmatprep.subr.mxu0 0.0
    %4372 = vmatpush1.msra.mxu0 0.0
    %4373 = vmatprep.subr.mxu0 0.0
    %4374 = vmatpush1.msra.mxu0 0.0
    %4375 = vmatprep.subr.mxu0 0.0
    %4376 = vmatpush1.msra.mxu0 0.0
    %4377 = vmatprep.subr.mxu0 0.0
    %4378 = vmatpush1.msra.mxu0 0.0
    %4379 = vmatprep.subr.mxu0 0.0
    %4380 = vmatpush1.msra.mxu0 0.0
    %4381 = vmatprep.subr.mxu0 0.0
    %4382 = vmatpush1.msra.mxu0 0.0
    %4383 = vmatprep.subr.mxu0 0.0
    %4384 = vmatpush1.msra.mxu0 0.0
    %4385 = vmatprep.subr.mxu0 0.0
    %4386 = vmatpush1.msra.mxu0 0.0
    %4387 = vmatprep.subr.mxu0 0.0
    %4388 = vmatpush1.msra.mxu0 0.0
    %4389 = vmatprep.subr.mxu0 0.0
    %4390 = vmatpush1.msra.mxu0 0.0
    %4391 = vmatprep.subr.mxu0 0.0
    %4392 = vmatpush1.msra.mxu0 0.0
    %4393 = vmatprep.mubr.f32.mxu0 0.0
    %4394 = vmatmul.mubr.f32.gmra.mrb[0].mxu0 %v4193
    %v4395 = vpop.f32.mrb[0].mxu0
    %v4396 = vadd.f32 %v4321, %v4395
    %v4397 = vpop.f32.mrb[0].mxu0
    %4398 = vmatprep.mubr.f32.mxu0 0.0
    %4399 = vmatmul.mubr.f32.gmra.mrb[0].mxu0 %v4196
    %v4400 = vpop.f32.mrb[0].mxu0
    %v4401 = vadd.f32 %v4326, %v4400
    %v4402 = vpop.f32.mrb[0].mxu0
    %4403 = vdwg.mxu0
    %v4404 = vmax.f32 %v4396, 0.0
    %v4405 = vmax.f32 %v4401, 0.0
    %v4408 = vrot.slane %v4404, 7
    %v4409 = vrot.slane %v4405, 7
    %v4410 = vsel %vm203, %v4408, %v4409
    %v4413 = vsel %vm203, 0.0, %v4408
    %v4414 = vrot.slane %v4404, 1
    %v4415 = vrot.slane %v4405, 1
    %v4416 = vsel %vm210, %v4414, %v4415
    %v4419 = vsel %vm210, %v4415, 0.0
    %s4420 = scalar_lea.vmem [#allocation6], 4992
    %v4421 = vld [vmem:[%s4420] sm:$0xff]
    %v4422 = vld [vmem:[%s4420 + $0x8] sm:$0xff]
    %v4423 = vld [vmem:[%s4420 + $0x10] sm:$0xff]
    %v4424 = vld [vmem:[%s4420 + $0x18] sm:$0xff]
    %v4425 = vld [vmem:[%s4420 + $0x20] sm:$0xff]
    %v4426 = vld [vmem:[%s4420 + $0x28] sm:$0xff]
    %v4427 = vld [vmem:[%s4420 + $0x30] sm:$0xff]
    %v4428 = vld [vmem:[%s4420 + $0x38] sm:$0xff]
    %v4429 = vld [vmem:[%s4420 + $0x40] sm:$0xff]
    %v4430 = vld [vmem:[%s4420 + $0x48] sm:$0xff]
    %v4431 = vld [vmem:[%s4420 + $0x50] sm:$0xff]
    %v4432 = vld [vmem:[%s4420 + $0x58] sm:$0xff]
    %v4433 = vld [vmem:[%s4420 + $0x60] sm:$0xff]
    %v4434 = vld [vmem:[%s4420 + $0x68] sm:$0xff]
    %v4435 = vld [vmem:[%s4420 + $0x70] sm:$0xff]
    %v4436 = vld [vmem:[%s4420 + $0x78] sm:$0xff]
    %v4437 = vld [vmem:[%s4420 + $0x80] sm:$0xff]
    %v4438 = vld [vmem:[%s4420 + $0x88] sm:$0xff]
    %v4439 = vld [vmem:[%s4420 + $0x90] sm:$0xff]
    %v4440 = vld [vmem:[%s4420 + $0x98] sm:$0xff]
    %v4441 = vld [vmem:[%s4420 + $0xa0] sm:$0xff]
    %v4442 = vld [vmem:[%s4420 + $0xa8] sm:$0xff]
    %v4443 = vld [vmem:[%s4420 + $0xb0] sm:$0xff]
    %v4444 = vld [vmem:[%s4420 + $0xb8] sm:$0xff]
    %v4445 = vld [vmem:[%s4420 + $0xc0] sm:$0xff]
    %v4446 = vld [vmem:[%s4420 + $0xc8] sm:$0xff]
    %v4447 = vld [vmem:[%s4420 + $0xd0] sm:$0xff]
    %v4448 = vld [vmem:[%s4420 + $0xd8] sm:$0xff]
    %v4449 = vld [vmem:[%s4420 + $0xe0] sm:$0xff]
    %v4450 = vld [vmem:[%s4420 + $0xe8] sm:$0xff]
    %v4451 = vld [vmem:[%s4420 + $0xf0] sm:$0xff]
    %v4452 = vld [vmem:[%s4420 + $0xf8] sm:$0xff]
    %v4453 = vld [vmem:[%s4420 + $0x100] sm:$0xff]
    %v4454 = vld [vmem:[%s4420 + $0x108] sm:$0xff]
    %v4455 = vld [vmem:[%s4420 + $0x110] sm:$0xff]
    %v4456 = vld [vmem:[%s4420 + $0x118] sm:$0xff]
    %v4457 = vld [vmem:[%s4420 + $0x120] sm:$0xff]
    %v4458 = vld [vmem:[%s4420 + $0x128] sm:$0xff]
    %v4459 = vld [vmem:[%s4420 + $0x130] sm:$0xff]
    %v4460 = vld [vmem:[%s4420 + $0x138] sm:$0xff]
    %v4461 = vld [vmem:[%s4420 + $0x140] sm:$0xff]
    %v4462 = vld [vmem:[%s4420 + $0x148] sm:$0xff]
    %v4463 = vld [vmem:[%s4420 + $0x150] sm:$0xff]
    %v4464 = vld [vmem:[%s4420 + $0x158] sm:$0xff]
    %v4465 = vld [vmem:[%s4420 + $0x160] sm:$0xff]
    %v4466 = vld [vmem:[%s4420 + $0x168] sm:$0xff]
    %v4467 = vld [vmem:[%s4420 + $0x170] sm:$0xff]
    %v4468 = vld [vmem:[%s4420 + $0x178] sm:$0xff]
    %s4469 = scalar_lea.vmem [#allocation7], 13
    %v4470 = vld [vmem:[%s4469] sm:$0x1]
    %v4472 = vlaneseq
    %v4473 = vshrl.u32 %v4472, 7
    %v4474 = vsub.s32 0, %v4473
    %v4475 = vrot.slane %v4470, %v4474
    %4477 = vmatprep.subr.mxu0 0.0
    %4478 = vmatpush1.msra.mxu0 %v4421
    %4479 = vmatprep.subr.mxu0 0.0
    %4480 = vmatpush1.msra.mxu0 %v4422
    %4481 = vmatprep.subr.mxu0 0.0
    %4482 = vmatpush1.msra.mxu0 %v4423
    %4483 = vmatprep.subr.mxu0 0.0
    %4484 = vmatpush1.msra.mxu0 %v4424
    %4485 = vmatprep.subr.mxu0 0.0
    %4486 = vmatpush1.msra.mxu0 %v4425
    %4487 = vmatprep.subr.mxu0 0.0
    %4488 = vmatpush1.msra.mxu0 %v4426
    %4489 = vmatprep.subr.mxu0 0.0
    %4490 = vmatpush1.msra.mxu0 %v4427
    %4491 = vmatprep.subr.mxu0 0.0
    %4492 = vmatpush1.msra.mxu0 %v4428
    %4493 = vmatprep.subr.mxu0 0.0
    %4494 = vmatpush1.msra.mxu0 %v4429
    %4495 = vmatprep.subr.mxu0 0.0
    %4496 = vmatpush1.msra.mxu0 %v4430
    %4497 = vmatprep.subr.mxu0 0.0
    %4498 = vmatpush1.msra.mxu0 %v4431
    %4499 = vmatprep.subr.mxu0 0.0
    %4500 = vmatpush1.msra.mxu0 %v4432
    %4501 = vmatprep.subr.mxu0 0.0
    %4502 = vmatpush1.msra.mxu0 %v4433
    %4503 = vmatprep.subr.mxu0 0.0
    %4504 = vmatpush1.msra.mxu0 %v4434
    %4505 = vmatprep.subr.mxu0 0.0
    %4506 = vmatpush1.msra.mxu0 %v4435
    %4507 = vmatprep.subr.mxu0 0.0
    %4508 = vmatpush1.msra.mxu0 %v4436
    %4509 = vmatprep.subr.mxu0 0.0
    %4510 = vmatpush1.msra.mxu0 %v4437
    %4511 = vmatprep.subr.mxu0 0.0
    %4512 = vmatpush1.msra.mxu0 %v4438
    %4513 = vmatprep.subr.mxu0 0.0
    %4514 = vmatpush1.msra.mxu0 %v4439
    %4515 = vmatprep.subr.mxu0 0.0
    %4516 = vmatpush1.msra.mxu0 %v4440
    %4517 = vmatprep.subr.mxu0 0.0
    %4518 = vmatpush1.msra.mxu0 %v4441
    %4519 = vmatprep.subr.mxu0 0.0
    %4520 = vmatpush1.msra.mxu0 %v4442
    %4521 = vmatprep.subr.mxu0 0.0
    %4522 = vmatpush1.msra.mxu0 %v4443
    %4523 = vmatprep.subr.mxu0 0.0
    %4524 = vmatpush1.msra.mxu0 %v4444
    %4525 = vmatprep.subr.mxu0 0.0
    %4526 = vmatpush1.msra.mxu0 %v4445
    %4527 = vmatprep.subr.mxu0 0.0
    %4528 = vmatpush1.msra.mxu0 %v4446
    %4529 = vmatprep.subr.mxu0 0.0
    %4530 = vmatpush1.msra.mxu0 %v4447
    %4531 = vmatprep.subr.mxu0 0.0
    %4532 = vmatpush1.msra.mxu0 %v4448
    %4533 = vmatprep.subr.mxu0 0.0
    %4534 = vmatpush1.msra.mxu0 %v4449
    %4535 = vmatprep.subr.mxu0 0.0
    %4536 = vmatpush1.msra.mxu0 %v4450
    %4537 = vmatprep.subr.mxu0 0.0
    %4538 = vmatpush1.msra.mxu0 %v4451
    %4539 = vmatprep.subr.mxu0 0.0
    %4540 = vmatpush1.msra.mxu0 %v4452
    %4541 = vmatprep.mubr.f32.mxu0 %v4404
    %4542 = vmatmul.mubr.f32.gmra.mrb[0].mxu0 %v4413
    %v4543 = vpop.f32.mrb[0].mxu0
    %v4544 = vadd.f32 %v4475, %v4543
    %v4545 = vpop.f32.mrb[0].mxu0
    %4546 = vmatprep.mubr.f32.mxu0 %v4405
    %4547 = vmatmul.mubr.f32.gmra.mrb[0].mxu0 %v4410
    %v4548 = vpop.f32.mrb[0].mxu0
    %v4549 = vadd.f32 %v4475, %v4548
    %v4550 = vpop.f32.mrb[0].mxu0
    %4551 = vdwg.mxu0
    %4552 = vmatprep.subr.mxu0 0.0
    %4553 = vmatpush1.msra.mxu0 %v4453
    %4554 = vmatprep.subr.mxu0 0.0
    %4555 = vmatpush1.msra.mxu0 %v4454
    %4556 = vmatprep.subr.mxu0 0.0
    %4557 = vmatpush1.msra.mxu0 %v4455
    %4558 = vmatprep.subr.mxu0 0.0
    %4559 = vmatpush1.msra.mxu0 %v4456
    %4560 = vmatprep.subr.mxu0 0.0
    %4561 = vmatpush1.msra.mxu0 %v4457
    %4562 = vmatprep.subr.mxu0 0.0
    %4563 = vmatpush1.msra.mxu0 %v4458
    %4564 = vmatprep.subr.mxu0 0.0
    %4565 = vmatpush1.msra.mxu0 %v4459
    %4566 = vmatprep.subr.mxu0 0.0
    %4567 = vmatpush1.msra.mxu0 %v4460
    %4568 = vmatprep.subr.mxu0 0.0
    %4569 = vmatpush1.msra.mxu0 %v4461
    %4570 = vmatprep.subr.mxu0 0.0
    %4571 = vmatpush1.msra.mxu0 %v4462
    %4572 = vmatprep.subr.mxu0 0.0
    %4573 = vmatpush1.msra.mxu0 %v4463
    %4574 = vmatprep.subr.mxu0 0.0
    %4575 = vmatpush1.msra.mxu0 %v4464
    %4576 = vmatprep.subr.mxu0 0.0
    %4577 = vmatpush1.msra.mxu0 %v4465
    %4578 = vmatprep.subr.mxu0 0.0
    %4579 = vmatpush1.msra.mxu0 %v4466
    %4580 = vmatprep.subr.mxu0 0.0
    %4581 = vmatpush1.msra.mxu0 %v4467
    %4582 = vmatprep.subr.mxu0 0.0
    %4583 = vmatpush1.msra.mxu0 %v4468
    %4584 = vmatprep.subr.mxu0 0.0
    %4585 = vmatpush1.msra.mxu0 0.0
    %4586 = vmatprep.subr.mxu0 0.0
    %4587 = vmatpush1.msra.mxu0 0.0
    %4588 = vmatprep.subr.mxu0 0.0
    %4589 = vmatpush1.msra.mxu0 0.0
    %4590 = vmatprep.subr.mxu0 0.0
    %4591 = vmatpush1.msra.mxu0 0.0
    %4592 = vmatprep.subr.mxu0 0.0
    %4593 = vmatpush1.msra.mxu0 0.0
    %4594 = vmatprep.subr.mxu0 0.0
    %4595 = vmatpush1.msra.mxu0 0.0
    %4596 = vmatprep.subr.mxu0 0.0
    %4597 = vmatpush1.msra.mxu0 0.0
    %4598 = vmatprep.subr.mxu0 0.0
    %4599 = vmatpush1.msra.mxu0 0.0
    %4600 = vmatprep.subr.mxu0 0.0
    %4601 = vmatpush1.msra.mxu0 0.0
    %4602 = vmatprep.subr.mxu0 0.0
    %4603 = vmatpush1.msra.mxu0 0.0
    %4604 = vmatprep.subr.mxu0 0.0
    %4605 = vmatpush1.msra.mxu0 0.0
    %4606 = vmatprep.subr.mxu0 0.0
    %4607 = vmatpush1.msra.mxu0 0.0
    %4608 = vmatprep.subr.mxu0 0.0
    %4609 = vmatpush1.msra.mxu0 0.0
    %4610 = vmatprep.subr.mxu0 0.0
    %4611 = vmatpush1.msra.mxu0 0.0
    %4612 = vmatprep.subr.mxu0 0.0
    %4613 = vmatpush1.msra.mxu0 0.0
    %4614 = vmatprep.subr.mxu0 0.0
    %4615 = vmatpush1.msra.mxu0 0.0
    %4616 = vmatprep.mubr.f32.mxu0 0.0
    %4617 = vmatmul.mubr.f32.gmra.mrb[0].mxu0 %v4416
    %v4618 = vpop.f32.mrb[0].mxu0
    %v4619 = vadd.f32 %v4544, %v4618
    %v4620 = vpop.f32.mrb[0].mxu0
    %4621 = vmatprep.mubr.f32.mxu0 0.0
    %4622 = vmatmul.mubr.f32.gmra.mrb[0].mxu0 %v4419
    %v4623 = vpop.f32.mrb[0].mxu0
    %v4624 = vadd.f32 %v4549, %v4623
    %v4625 = vpop.f32.mrb[0].mxu0
    %4626 = vdwg.mxu0
    %v4627 = vadd.f32 %v4619, %v4181
    %v4628 = vadd.f32 %v4624, %v4182
    %v4631 = vrot.slane %v4627, 7
    %v4632 = vrot.slane %v4628, 7
    %v4633 = vsel %vm203, %v4631, %v4632
    %v4636 = vsel %vm203, 0.0, %v4631
    %v4637 = vrot.slane %v4627, 1
    %v4638 = vrot.slane %v4628, 1
    %v4639 = vsel %vm210, %v4637, %v4638
    %v4642 = vsel %vm210, %v4638, 0.0
    %s4643 = scalar_lea.vmem [#allocation6], 5376
    %v4644 = vld [vmem:[%s4643] sm:$0xff]
    %v4645 = vld [vmem:[%s4643 + $0x8] sm:$0xff]
    %v4646 = vld [vmem:[%s4643 + $0x10] sm:$0xff]
    %v4647 = vld [vmem:[%s4643 + $0x18] sm:$0xff]
    %v4648 = vld [vmem:[%s4643 + $0x20] sm:$0xff]
    %v4649 = vld [vmem:[%s4643 + $0x28] sm:$0xff]
    %v4650 = vld [vmem:[%s4643 + $0x30] sm:$0xff]
    %v4651 = vld [vmem:[%s4643 + $0x38] sm:$0xff]
    %v4652 = vld [vmem:[%s4643 + $0x40] sm:$0xff]
    %v4653 = vld [vmem:[%s4643 + $0x48] sm:$0xff]
    %v4654 = vld [vmem:[%s4643 + $0x50] sm:$0xff]
    %v4655 = vld [vmem:[%s4643 + $0x58] sm:$0xff]
    %v4656 = vld [vmem:[%s4643 + $0x60] sm:$0xff]
    %v4657 = vld [vmem:[%s4643 + $0x68] sm:$0xff]
    %v4658 = vld [vmem:[%s4643 + $0x70] sm:$0xff]
    %v4659 = vld [vmem:[%s4643 + $0x78] sm:$0xff]
    %v4660 = vld [vmem:[%s4643 + $0x80] sm:$0xff]
    %v4661 = vld [vmem:[%s4643 + $0x88] sm:$0xff]
    %v4662 = vld [vmem:[%s4643 + $0x90] sm:$0xff]
    %v4663 = vld [vmem:[%s4643 + $0x98] sm:$0xff]
    %v4664 = vld [vmem:[%s4643 + $0xa0] sm:$0xff]
    %v4665 = vld [vmem:[%s4643 + $0xa8] sm:$0xff]
    %v4666 = vld [vmem:[%s4643 + $0xb0] sm:$0xff]
    %v4667 = vld [vmem:[%s4643 + $0xb8] sm:$0xff]
    %v4668 = vld [vmem:[%s4643 + $0xc0] sm:$0xff]
    %v4669 = vld [vmem:[%s4643 + $0xc8] sm:$0xff]
    %v4670 = vld [vmem:[%s4643 + $0xd0] sm:$0xff]
    %v4671 = vld [vmem:[%s4643 + $0xd8] sm:$0xff]
    %v4672 = vld [vmem:[%s4643 + $0xe0] sm:$0xff]
    %v4673 = vld [vmem:[%s4643 + $0xe8] sm:$0xff]
    %v4674 = vld [vmem:[%s4643 + $0xf0] sm:$0xff]
    %v4675 = vld [vmem:[%s4643 + $0xf8] sm:$0xff]
    %v4676 = vld [vmem:[%s4643 + $0x100] sm:$0xff]
    %v4677 = vld [vmem:[%s4643 + $0x108] sm:$0xff]
    %v4678 = vld [vmem:[%s4643 + $0x110] sm:$0xff]
    %v4679 = vld [vmem:[%s4643 + $0x118] sm:$0xff]
    %v4680 = vld [vmem:[%s4643 + $0x120] sm:$0xff]
    %v4681 = vld [vmem:[%s4643 + $0x128] sm:$0xff]
    %v4682 = vld [vmem:[%s4643 + $0x130] sm:$0xff]
    %v4683 = vld [vmem:[%s4643 + $0x138] sm:$0xff]
    %v4684 = vld [vmem:[%s4643 + $0x140] sm:$0xff]
    %v4685 = vld [vmem:[%s4643 + $0x148] sm:$0xff]
    %v4686 = vld [vmem:[%s4643 + $0x150] sm:$0xff]
    %v4687 = vld [vmem:[%s4643 + $0x158] sm:$0xff]
    %v4688 = vld [vmem:[%s4643 + $0x160] sm:$0xff]
    %v4689 = vld [vmem:[%s4643 + $0x168] sm:$0xff]
    %v4690 = vld [vmem:[%s4643 + $0x170] sm:$0xff]
    %v4691 = vld [vmem:[%s4643 + $0x178] sm:$0xff]
    %s4692 = scalar_lea.vmem [#allocation7], 14
    %v4693 = vld [vmem:[%s4692] sm:$0x1]
    %v4695 = vlaneseq
    %v4696 = vshrl.u32 %v4695, 7
    %v4697 = vsub.s32 0, %v4696
    %v4698 = vrot.slane %v4693, %v4697
    %4700 = vmatprep.subr.mxu0 0.0
    %4701 = vmatpush1.msra.mxu0 %v4644
    %4702 = vmatprep.subr.mxu0 0.0
    %4703 = vmatpush1.msra.mxu0 %v4645
    %4704 = vmatprep.subr.mxu0 0.0
    %4705 = vmatpush1.msra.mxu0 %v4646
    %4706 = vmatprep.subr.mxu0 0.0
    %4707 = vmatpush1.msra.mxu0 %v4647
    %4708 = vmatprep.subr.mxu0 0.0
    %4709 = vmatpush1.msra.mxu0 %v4648
    %4710 = vmatprep.subr.mxu0 0.0
    %4711 = vmatpush1.msra.mxu0 %v4649
    %4712 = vmatprep.subr.mxu0 0.0
    %4713 = vmatpush1.msra.mxu0 %v4650
    %4714 = vmatprep.subr.mxu0 0.0
    %4715 = vmatpush1.msra.mxu0 %v4651
    %4716 = vmatprep.subr.mxu0 0.0
    %4717 = vmatpush1.msra.mxu0 %v4652
    %4718 = vmatprep.subr.mxu0 0.0
    %4719 = vmatpush1.msra.mxu0 %v4653
    %4720 = vmatprep.subr.mxu0 0.0
    %4721 = vmatpush1.msra.mxu0 %v4654
    %4722 = vmatprep.subr.mxu0 0.0
    %4723 = vmatpush1.msra.mxu0 %v4655
    %4724 = vmatprep.subr.mxu0 0.0
    %4725 = vmatpush1.msra.mxu0 %v4656
    %4726 = vmatprep.subr.mxu0 0.0
    %4727 = vmatpush1.msra.mxu0 %v4657
    %4728 = vmatprep.subr.mxu0 0.0
    %4729 = vmatpush1.msra.mxu0 %v4658
    %4730 = vmatprep.subr.mxu0 0.0
    %4731 = vmatpush1.msra.mxu0 %v4659
    %4732 = vmatprep.subr.mxu0 0.0
    %4733 = vmatpush1.msra.mxu0 %v4660
    %4734 = vmatprep.subr.mxu0 0.0
    %4735 = vmatpush1.msra.mxu0 %v4661
    %4736 = vmatprep.subr.mxu0 0.0
    %4737 = vmatpush1.msra.mxu0 %v4662
    %4738 = vmatprep.subr.mxu0 0.0
    %4739 = vmatpush1.msra.mxu0 %v4663
    %4740 = vmatprep.subr.mxu0 0.0
    %4741 = vmatpush1.msra.mxu0 %v4664
    %4742 = vmatprep.subr.mxu0 0.0
    %4743 = vmatpush1.msra.mxu0 %v4665
    %4744 = vmatprep.subr.mxu0 0.0
    %4745 = vmatpush1.msra.mxu0 %v4666
    %4746 = vmatprep.subr.mxu0 0.0
    %4747 = vmatpush1.msra.mxu0 %v4667
    %4748 = vmatprep.subr.mxu0 0.0
    %4749 = vmatpush1.msra.mxu0 %v4668
    %4750 = vmatprep.subr.mxu0 0.0
    %4751 = vmatpush1.msra.mxu0 %v4669
    %4752 = vmatprep.subr.mxu0 0.0
    %4753 = vmatpush1.msra.mxu0 %v4670
    %4754 = vmatprep.subr.mxu0 0.0
    %4755 = vmatpush1.msra.mxu0 %v4671
    %4756 = vmatprep.subr.mxu0 0.0
    %4757 = vmatpush1.msra.mxu0 %v4672
    %4758 = vmatprep.subr.mxu0 0.0
    %4759 = vmatpush1.msra.mxu0 %v4673
    %4760 = vmatprep.subr.mxu0 0.0
    %4761 = vmatpush1.msra.mxu0 %v4674
    %4762 = vmatprep.subr.mxu0 0.0
    %4763 = vmatpush1.msra.mxu0 %v4675
    %4764 = vmatprep.mubr.f32.mxu0 %v4627
    %4765 = vmatmul.mubr.f32.gmra.mrb[0].mxu0 %v4636
    %v4766 = vpop.f32.mrb[0].mxu0
    %v4767 = vadd.f32 %v4698, %v4766
    %v4768 = vpop.f32.mrb[0].mxu0
    %4769 = vmatprep.mubr.f32.mxu0 %v4628
    %4770 = vmatmul.mubr.f32.gmra.mrb[0].mxu0 %v4633
    %v4771 = vpop.f32.mrb[0].mxu0
    %v4772 = vadd.f32 %v4698, %v4771
    %v4773 = vpop.f32.mrb[0].mxu0
    %4774 = vdwg.mxu0
    %4775 = vmatprep.subr.mxu0 0.0
    %4776 = vmatpush1.msra.mxu0 %v4676
    %4777 = vmatprep.subr.mxu0 0.0
    %4778 = vmatpush1.msra.mxu0 %v4677
    %4779 = vmatprep.subr.mxu0 0.0
    %4780 = vmatpush1.msra.mxu0 %v4678
    %4781 = vmatprep.subr.mxu0 0.0
    %4782 = vmatpush1.msra.mxu0 %v4679
    %4783 = vmatprep.subr.mxu0 0.0
    %4784 = vmatpush1.msra.mxu0 %v4680
    %4785 = vmatprep.subr.mxu0 0.0
    %4786 = vmatpush1.msra.mxu0 %v4681
    %4787 = vmatprep.subr.mxu0 0.0
    %4788 = vmatpush1.msra.mxu0 %v4682
    %4789 = vmatprep.subr.mxu0 0.0
    %4790 = vmatpush1.msra.mxu0 %v4683
    %4791 = vmatprep.subr.mxu0 0.0
    %4792 = vmatpush1.msra.mxu0 %v4684
    %4793 = vmatprep.subr.mxu0 0.0
    %4794 = vmatpush1.msra.mxu0 %v4685
    %4795 = vmatprep.subr.mxu0 0.0
    %4796 = vmatpush1.msra.mxu0 %v4686
    %4797 = vmatprep.subr.mxu0 0.0
    %4798 = vmatpush1.msra.mxu0 %v4687
    %4799 = vmatprep.subr.mxu0 0.0
    %4800 = vmatpush1.msra.mxu0 %v4688
    %4801 = vmatprep.subr.mxu0 0.0
    %4802 = vmatpush1.msra.mxu0 %v4689
    %4803 = vmatprep.subr.mxu0 0.0
    %4804 = vmatpush1.msra.mxu0 %v4690
    %4805 = vmatprep.subr.mxu0 0.0
    %4806 = vmatpush1.msra.mxu0 %v4691
    %4807 = vmatprep.subr.mxu0 0.0
    %4808 = vmatpush1.msra.mxu0 0.0
    %4809 = vmatprep.subr.mxu0 0.0
    %4810 = vmatpush1.msra.mxu0 0.0
    %4811 = vmatprep.subr.mxu0 0.0
    %4812 = vmatpush1.msra.mxu0 0.0
    %4813 = vmatprep.subr.mxu0 0.0
    %4814 = vmatpush1.msra.mxu0 0.0
    %4815 = vmatprep.subr.mxu0 0.0
    %4816 = vmatpush1.msra.mxu0 0.0
    %4817 = vmatprep.subr.mxu0 0.0
    %4818 = vmatpush1.msra.mxu0 0.0
    %4819 = vmatprep.subr.mxu0 0.0
    %4820 = vmatpush1.msra.mxu0 0.0
    %4821 = vmatprep.subr.mxu0 0.0
    %4822 = vmatpush1.msra.mxu0 0.0
    %4823 = vmatprep.subr.mxu0 0.0
    %4824 = vmatpush1.msra.mxu0 0.0
    %4825 = vmatprep.subr.mxu0 0.0
    %4826 = vmatpush1.msra.mxu0 0.0
    %4827 = vmatprep.subr.mxu0 0.0
    %4828 = vmatpush1.msra.mxu0 0.0
    %4829 = vmatprep.subr.mxu0 0.0
    %4830 = vmatpush1.msra.mxu0 0.0
    %4831 = vmatprep.subr.mxu0 0.0
    %4832 = vmatpush1.msra.mxu0 0.0
    %4833 = vmatprep.subr.mxu0 0.0
    %4834 = vmatpush1.msra.mxu0 0.0
    %4835 = vmatprep.subr.mxu0 0.0
    %4836 = vmatpush1.msra.mxu0 0.0
    %4837 = vmatprep.subr.mxu0 0.0
    %4838 = vmatpush1.msra.mxu0 0.0
    %4839 = vmatprep.mubr.f32.mxu0 0.0
    %4840 = vmatmul.mubr.f32.gmra.mrb[0].mxu0 %v4639
    %v4841 = vpop.f32.mrb[0].mxu0
    %v4842 = vadd.f32 %v4767, %v4841
    %v4843 = vpop.f32.mrb[0].mxu0
    %4844 = vmatprep.mubr.f32.mxu0 0.0
    %4845 = vmatmul.mubr.f32.gmra.mrb[0].mxu0 %v4642
    %v4846 = vpop.f32.mrb[0].mxu0
    %v4847 = vadd.f32 %v4772, %v4846
    %v4848 = vpop.f32.mrb[0].mxu0
    %4849 = vdwg.mxu0
    %4850 = vst [vmem:[%s13] sm:$0xff] %v4842
    %4851 = vst [vmem:[%s13 + $0x8] sm:$0xff] %v4847
    // Predicated region
    $region102: #{_lambda_.1} parent=1 // pred_check
      _
    $region103: #{_lambda_.1} parent=1 // pred_check_branch
      %4853 = sbr.rel (0) target = $region105
    $region104: #{_lambda_.1} parent=1 // pred_region
      _
    $region105: #{_lambda_.1} parent=1 // pred_fallthru
      _
    // Predicated region
    $region106: #{_lambda_.1} parent=1 // pred_check
      _
    $region107: #{_lambda_.1} parent=1 // pred_check_branch
      %4855 = sbr.rel (0) target = $region109
    $region108: #{_lambda_.1} parent=1 // pred_region
      _
    $region109: #{_lambda_.1} parent=1 // pred_fallthru
      _
    %4856 = vsyncpa [#allocation3], 1
    %4857 = vsyncpa [#allocation5], 1
    %4858 = vsyncpa [#allocation8], 1
    %4859 = vsyncpa [#allocation11], 1
    %4860 = vsyncpa [#allocation14], 1
    %4861 = vsyncpa [#allocation17], 1
    %4862 = vsyncpa [#allocation20], 1

</llo_original>
